<compile_context>
chip_gen: v7x
topology: tpu7x:2x2x1
jax: 0.10.0
libtpu: 0.0.40
codegen_flags: <defaults>
</compile_context>

<pallas_src>
import functools
import math

import jax
import jax.numpy as jnp
from jax import lax
from jax.experimental import pallas as pl
from jax.experimental.pallas import tpu as pltpu

_VMEM_LIMIT = 64 * 1024 * 1024     # explicit scoped-VMEM budget (v7x physical = 64 MiB)


# ----------------------------------------------------------------------------
# tiling helpers
# ----------------------------------------------------------------------------
def _pick_tile(dim, target, align):
    """Largest block size <= target that is `align`-aligned and divides dim; else full dim."""
    if dim <= target:
        return dim
    t = (target // align) * align
    while t >= align:
        if dim % t == 0:
            return t
        t -= align
    # TODO(synk): no aligned divisor (prime-ish dim) -> untiled fallback.
    return dim


def _pick_face_tile(M, L, target):
    """tm = nb*L (face aligned, needed for the pos fold), dividing M = n_faces*L.
    Prefers nb*L % 8 == 0 and keeps M//tm >= 2 so the M grid axis stays parallel."""
    n_faces = M // L
    nb_cap = max(1, target // L)
    if n_faces >= 2:
        nb_cap = min(nb_cap, max(1, n_faces // 2))
    best, best_aligned = 1, None
    for d in range(1, nb_cap + 1):
        if n_faces % d == 0:
            best = d
            if (d * L) % 8 == 0:
                best_aligned = d
    nb = best_aligned if best_aligned is not None else best
    return nb * L


# ----------------------------------------------------------------------------
# Kernel 1: tiled, pipelined linear layer(s) sharing one activation read.
#   y_i = x @ Wt_i + b_i (+ pos tiled over rows)   Wt_i pre-transposed (K, N)
# ----------------------------------------------------------------------------
def _fused_linear_kernel(*refs, n_out, has_pos, pos_reps):
    x_ref = refs[0]
    w_refs = refs[1:1 + n_out]
    b_refs = refs[1 + n_out:1 + 2 * n_out]
    idx = 1 + 2 * n_out
    pos_ref = refs[idx] if has_pos else None
    idx += int(has_pos)
    o_refs = refs[idx:idx + n_out]
    acc_refs = refs[idx + n_out:idx + 2 * n_out]

    @pl.when(pl.program_id(2) == 0)
    def _():
        for acc in acc_refs:
            acc[...] = jnp.zeros_like(acc)

    x = x_ref[...]                      # bf16 tile, read once, reused for every output
    for w_ref, acc in zip(w_refs, acc_refs):
        acc[...] += jnp.dot(x, w_ref[...], preferred_element_type=jnp.float32)

    @pl.when(pl.program_id(2) == pl.num_programs(2) - 1)
    def _():
        extra = None
        if has_pos:
            # (x + pos) @ W == x @ W + pos @ W : add the tiny precomputed (L, tn)
            # pos-projection tile here (tm is a multiple of L).
            # TODO(synk): for L not a multiple of 8, prefer a wrapper-side (tm, N)
            # pos slab with a j-outermost grid instead of the in-kernel tile.
            extra = jnp.tile(pos_ref[...].astype(jnp.float32), (pos_reps, 1))
        for b_ref, o_ref, acc in zip(b_refs, o_refs, acc_refs):
            y = acc[...] + b_ref[...].astype(jnp.float32)
            if extra is not None:
                y = y + extra
            o_ref[...] = y.astype(o_ref.dtype)


def pallas_fused_linear(x2d, weights_t, biases, pos_add=None,
                        out_dtype=jnp.bfloat16, tm=512, tn=256, tk=1024,
                        vmem_limit=_VMEM_LIMIT):
    """x2d: (M, K) bf16; weights_t: list of (K, N) bf16; biases: list of (1, N) f32;
    pos_add: optional (L, N) f32 added to every output, tiled over rows (M % L == 0)."""
    M, K = x2d.shape
    n_out = len(weights_t)
    N = weights_t[0].shape[1]
    for w in weights_t:
        assert w.shape == (K, N)

    if pos_add is not None:
        L_pos = int(pos_add.shape[0])
        assert pos_add.shape == (L_pos, N) and M % L_pos == 0
        tm = _pick_face_tile(M, L_pos, tm)
        pos_reps = tm // L_pos
    else:
        cap = max(16, M // 2) if M >= 32 else M     # keep >=2 M-tiles for v7x 2 TCs
        tm = _pick_tile(M, min(tm, cap), 16)        # 16: bf16 sublane packing
        pos_reps = 0
    tn = _pick_tile(N, tn, 128)                     # lane-dense output tiles
    tk = _pick_tile(K, tk, 128)
    grid = (M // tm, N // tn, K // tk)

    in_specs = [pl.BlockSpec((tm, tk), lambda i, j, k: (i, k))]
    in_specs += [pl.BlockSpec((tk, tn), lambda i, j, k: (k, j)) for _ in range(n_out)]
    in_specs += [pl.BlockSpec((1, tn), lambda i, j, k: (0, j)) for _ in range(n_out)]
    args = [x2d] + list(weights_t) + [jnp.reshape(b, (1, N)) for b in biases]
    if pos_add is not None:
        in_specs.append(pl.BlockSpec((pos_add.shape[0], tn), lambda i, j, k: (0, j)))
        args.append(pos_add)

    out_specs = tuple(pl.BlockSpec((tm, tn), lambda i, j, k: (i, j)) for _ in range(n_out))
    out_shape = tuple(jax.ShapeDtypeStruct((M, N), out_dtype) for _ in range(n_out))
    scratch = [pltpu.VMEM((tm, tn), jnp.float32) for _ in range(n_out)]
    if n_out == 1:
        out_specs, out_shape = out_specs[0], out_shape[0]

    out_bytes = 2 if out_dtype == jnp.bfloat16 else 4
    cost = pl.CostEstimate(
        flops=2 * M * N * K * n_out,
        transcendentals=0,
        bytes_accessed=M * K * 2 + n_out * (K * N * 2 + M * N * out_bytes))

    kernel = functools.partial(_fused_linear_kernel, n_out=n_out,
                               has_pos=pos_add is not None, pos_reps=pos_reps)
    return pl.pallas_call(
        kernel,
        out_shape=out_shape,
        grid=grid,
        in_specs=in_specs,
        out_specs=out_specs,
        scratch_shapes=scratch,
        compiler_params=pltpu.CompilerParams(
            dimension_semantics=("parallel", "parallel", "arbitrary"),
            vmem_limit_bytes=vmem_limit),
        cost_estimate=cost,
    )(*args)


def pallas_linear(x2d, w_t, b, pos_add=None, **kw):
    return pallas_fused_linear(x2d, [w_t], [b], pos_add=pos_add, **kw)


# ----------------------------------------------------------------------------
# Kernel 2: multi-head self-attention over the (N, L, h*d_k) layout.
#   - 1/sqrt(d_k) folded into the Q projection weights
#   - per-head outputs stored directly into their lane slice (no concat)
#   - padded faces skipped via prefetched valid flags
#   TODO(synk): online-softmax Sk tiling for long L (v7x 64 MiB K/V residency)
# ----------------------------------------------------------------------------
def _mha_kernel(valid_ref, q_ref, k_ref, v_ref, o_ref, *, num_heads):
    n = pl.program_id(0)

    @pl.when(valid_ref[n] > 0)
    def _():
        D = q_ref.shape[-1]
        d_k = D // num_heads
        q = q_ref[0]                              # (tq, D) bf16 (pre-scaled)
        k = k_ref[0]                              # (L,  D) bf16
        v = v_ref[0]
        for h in range(num_heads):                # heads are static lane slices
            lo = h * d_k
            s = lax.dot_general(q[:, lo:lo + d_k], k[:, lo:lo + d_k],
                                (((1,), (1,)), ((), ())),
                                preferred_element_type=jnp.float32)       # (tq, L)
            m = jnp.max(s, axis=-1, keepdims=True)
            e = jnp.exp(s - m)
            p = e * pl.reciprocal(jnp.sum(e, axis=-1, keepdims=True), approx=True)
            o_ref[0, :, lo:lo + d_k] = jnp.dot(
                p.astype(jnp.bfloat16), v[:, lo:lo + d_k],
                preferred_element_type=jnp.float32).astype(o_ref.dtype)


def pallas_mha(q, k, v, valid, *, num_heads, tq=256, vmem_limit=_VMEM_LIMIT):
    N, L, D = q.shape
    tq = _pick_tile(L, tq, 16) if L % 16 == 0 else _pick_tile(L, tq, 8)
    kernel = functools.partial(_mha_kernel, num_heads=num_heads)
    cost = pl.CostEstimate(flops=4 * N * L * L * D, transcendentals=N * L * L,
                           bytes_accessed=4 * N * L * D * 2)
    return pl.pallas_call(
        kernel,
        out_shape=jax.ShapeDtypeStruct((N, L, D), q.dtype),
        grid_spec=pltpu.PrefetchScalarGridSpec(
            num_scalar_prefetch=1,
            grid=(N, L // tq),
            in_specs=[pl.BlockSpec((1, tq, D), lambda n, i, valid: (n, i, 0)),
                      pl.BlockSpec((1, L, D), lambda n, i, valid: (n, 0, 0)),
                      pl.BlockSpec((1, L, D), lambda n, i, valid: (n, 0, 0))],
            out_specs=pl.BlockSpec((1, tq, D), lambda n, i, valid: (n, i, 0))),
        compiler_params=pltpu.CompilerParams(
            dimension_semantics=("parallel", "parallel"),
            vmem_limit_bytes=vmem_limit),
        cost_estimate=cost,
    )(valid, q, k, v)


# ----------------------------------------------------------------------------
# Kernel 3: fused output projection + residual + softmax pooler (per face).
#   y1 = y0 + a @ Wo^T + b is kept entirely in VMEM; only the pooled (1, D)
#   row is written.  Padded faces write exact zeros.  Wo / bias / pooler weight
#   blocks have a constant index -> DMA'd once for the whole grid.
#   TODO(synk): batch nb faces per grid step when N is in the hundreds.
# ----------------------------------------------------------------------------
def _out_proj_pool_kernel(valid_ref, a_ref, w_ref, b_ref, r_ref, wp_ref, o_ref):
    n = pl.program_id(0)
    is_valid = valid_ref[n] > 0

    @pl.when(is_valid)
    def _():
        y1 = (jnp.dot(a_ref[0], w_ref[...], preferred_element_type=jnp.float32)
              + b_ref[...].astype(jnp.float32)
              + r_ref[0].astype(jnp.float32))                                # (L, D)
        wp = wp_ref[...].astype(jnp.float32)                                 # (1, D)
        # pooler bias dropped: single-logit softmax is shift invariant
        logits = lax.dot_general(y1, wp, (((1,), (1,)), ((), ())),
                                 preferred_element_type=jnp.float32)         # (L, 1)
        m = jnp.max(logits, axis=0, keepdims=True)
        e = jnp.exp(logits - m)
        w = e * pl.reciprocal(jnp.sum(e, axis=0, keepdims=True), approx=True)
        # weighted token sum on the MXU: (1, L) x (L, D) -> (1, D)
        o_ref[0] = lax.dot_general(w, y1, (((0,), (0,)), ((), ())),
                                   preferred_element_type=jnp.float32)

    @pl.when(jnp.logical_not(is_valid))
    def _():
        o_ref[...] = jnp.zeros_like(o_ref)


def pallas_out_proj_pool(a3, r3, wo_t, bo, w_pool, valid, vmem_limit=_VMEM_LIMIT):
    N, L, D = a3.shape
    Dout = wo_t.shape[1]
    cost = pl.CostEstimate(
        flops=2 * N * L * D * Dout + 4 * N * L * Dout,
        transcendentals=N * L,
        bytes_accessed=N * L * D * 2 + N * L * Dout * 2 + D * Dout * 2 + N * Dout * 4)
    return pl.pallas_call(
        _out_proj_pool_kernel,
        out_shape=jax.ShapeDtypeStruct((N, 1, Dout), jnp.float32),
        grid_spec=pltpu.PrefetchScalarGridSpec(
            num_scalar_prefetch=1,
            grid=(N,),
            in_specs=[pl.BlockSpec((1, L, D), lambda n, valid: (n, 0, 0)),
                      pl.BlockSpec((D, Dout), lambda n, valid: (0, 0)),
                      pl.BlockSpec((1, Dout), lambda n, valid: (0, 0)),
                      pl.BlockSpec((1, L, Dout), lambda n, valid: (n, 0, 0)),
                      pl.BlockSpec((1, Dout), lambda n, valid: (0, 0))],
            out_specs=pl.BlockSpec((1, 1, Dout), lambda n, valid: (n, 0, 0))),
        compiler_params=pltpu.CompilerParams(
            dimension_semantics=("parallel",),
            vmem_limit_bytes=vmem_limit),
        cost_estimate=cost,
    )(valid, a3, wo_t, bo, r3, w_pool)


# ----------------------------------------------------------------------------
# Parameters
# ----------------------------------------------------------------------------
def init_params(key, in_dim, out_dim):
    ks = jax.random.split(key, 14)
    F_ = in_dim // 2

    def lin_init(kw, kb, dout, din):
        bound = 1.0 / math.sqrt(din)
        w = jax.random.uniform(kw, (dout, din), jnp.float32, -bound, bound)
        b = jax.random.uniform(kb, (dout,), jnp.float32, -bound, bound)
        return w, b

    p = {"row_embed": jax.random.normal(ks[0], (64, F_), jnp.float32),
         "col_embed": jax.random.normal(ks[1], (64, F_), jnp.float32)}
    p["w_in"], p["b_in"] = lin_init(ks[2], ks[3], out_dim, in_dim)
    p["wq"], p["bq"] = lin_init(ks[4], ks[5], out_dim, out_dim)
    p["wk"], p["bk"] = lin_init(ks[6], ks[7], out_dim, out_dim)
    p["wv"], p["bv"] = lin_init(ks[8], ks[9], out_dim, out_dim)
    p["wo"], p["bo"] = lin_init(ks[10], ks[11], out_dim, out_dim)
    p["w_pool"], p["b_pool"] = lin_init(ks[12], ks[13], 1, out_dim)
    return p


def prep_params(p, num_heads):
    """Pre-transpose weights (lane-dense), cast to bf16, fold 1/sqrt(d_k) into Q."""
    out_dim = p["wq"].shape[0]
    # Dropping the pooler bias is only valid for a single logit (shift invariance).
    assert p["w_pool"].shape[0] == 1
    scale = 1.0 / math.sqrt(out_dim // num_heads)

    def t_bf16(w):
        return jnp.asarray(w.T, dtype=jnp.bfloat16)

    def b_row(b):
        return jnp.asarray(b, jnp.float32).reshape(1, -1)

    return {
        "pos_row": p["row_embed"], "pos_col": p["col_embed"],
        "w_in_t": t_bf16(p["w_in"]), "b_in": b_row(p["b_in"]),
        "wq_t": t_bf16(p["wq"] * scale), "bq": b_row(p["bq"] * scale),
        "wk_t": t_bf16(p["wk"]), "bk": b_row(p["bk"]),
        "wv_t": t_bf16(p["wv"]), "bv": b_row(p["bv"]),
        "wo_t": t_bf16(p["wo"]), "bo": b_row(p["bo"]),
        "w_pool": jnp.asarray(p["w_pool"], jnp.float32),          # (1, out_dim)
    }


# ----------------------------------------------------------------------------
# VTP_wrapper forward (eval mode)
# ----------------------------------------------------------------------------
def vtp_wrapper_forward(prep, faces, mask, *, num_heads):
    """faces: (B, C, T, H, W) feature volume (feat_extrator output); mask: (B, 1, T)."""
    B, C, T, H, W = faces.shape
    D = prep["wo_t"].shape[1]
    N, L = B * T, H * W

    # TODO(synk): feat_extrator is an injected module with no definition; identity here.
    tokens2d = jnp.transpose(faces, (0, 2, 3, 4, 1)).reshape(N * L, C).astype(jnp.bfloat16)
    lens = jnp.sum(mask.astype(jnp.int32), axis=(1, 2))                        # (B,)
    valid = (jnp.arange(T)[None, :] < lens[:, None]).astype(jnp.int32).reshape(N)

    # PositionEmbeddingLearned, folded into the input projection:
    #   (x + pos) @ W_in == x @ W_in + pos @ W_in  (pos_proj is a tiny (L, D) array)
    F_ = C // 2
    col = prep["pos_col"][:W]
    row = prep["pos_row"][:H]
    pos = jnp.concatenate(
        [jnp.broadcast_to(col[None, :, :], (H, W, F_)),
         jnp.broadcast_to(row[:, None, :], (H, W, F_))], axis=-1).reshape(L, C)
    pos_proj = jnp.dot(pos.astype(jnp.bfloat16), prep["w_in_t"],
                       preferred_element_type=jnp.float32)                     # (L, D)

    # encoder: input projection (+pos), fused QKV, MHSA, fused out-proj+residual+pooler
    y0 = pallas_linear(tokens2d, prep["w_in_t"], prep["b_in"], pos_add=pos_proj)   # (N*L, D)
    q, k, v = pallas_fused_linear(
        y0, [prep["wq_t"], prep["wk_t"], prep["wv_t"]],
        [prep["bq"], prep["bk"], prep["bv"]])                                      # x read once
    a = pallas_mha(q.reshape(N, L, D), k.reshape(N, L, D), v.reshape(N, L, D),
                   valid, num_heads=num_heads)                                     # (N, L, D)
    pooled = pallas_out_proj_pool(a, y0.reshape(N, L, D), prep["wo_t"], prep["bo"],
                                  prep["w_pool"], valid)                           # (N, 1, D)

    # padded faces were written as exact zeros in-kernel (== spec's re-pad loop)
    return pooled.reshape(B, T, D)


# ----------------------------------------------------------------------------
# Pure-JAX reference (f32, literal variable-length loops) for the self-check
# ----------------------------------------------------------------------------
def reference_forward(params, faces, mask, *, num_heads):
    B, C, T, H, W = faces.shape
    feats = jnp.transpose(faces, (0, 2, 1, 3, 4))                 # faces.transpose(1, 2)
    lens = [int(x) for x in jnp.sum(mask.astype(jnp.int32), axis=(1, 2))]
    face_tokens = jnp.concatenate([feats[b, :l] for b, l in enumerate(lens)], axis=0)

    F_ = C // 2
    col = params["col_embed"][:W]
    row = params["row_embed"][:H]
    pos = jnp.concatenate([jnp.broadcast_to(col[None, :, :], (H, W, F_)),
                           jnp.broadcast_to(row[:, None, :], (H, W, F_))], axis=-1)
    face_tokens = face_tokens + jnp.transpose(pos, (2, 0, 1))[None]

    x = jnp.transpose(face_tokens, (0, 2, 3, 1)).reshape(-1, H * W, C)
    lin = lambda t, w, b: t @ w.T + b
    y0 = lin(x, params["w_in"], params["b_in"])
    D = params["wq"].shape[0]
    d_k = D // num_heads
    Nv, L = x.shape[0], H * W
    heads = lambda t: t.reshape(Nv, L, num_heads, d_k)
    q = heads(lin(y0, params["wq"], params["bq"]))
    k = heads(lin(y0, params["wk"], params["bk"]))
    v = heads(lin(y0, params["wv"], params["bv"]))
    s = jnp.einsum("nqhd,nkhd->nhqk", q, k) / math.sqrt(d_k)
    p = jax.nn.softmax(s, axis=-1)
    a = jnp.einsum("nhqk,nkhd->nqhd", p, v).reshape(Nv, L, D)
    y1 = y0 + lin(a, params["wo"], params["bo"])

    logits = lin(y1, params["w_pool"], params["b_pool"])          # (Nv, L, 1)
    w = jax.nn.softmax(logits, axis=1)
    emb = jnp.sum(y1 * w, axis=1)                                 # (Nv, D)

    outs, start = [], 0
    for l in lens:
        cur = emb[start:start + l]
        if l != T:
            cur = jnp.concatenate([cur, jnp.zeros((T - l, D), cur.dtype)], axis=0)
        start += l
        outs.append(cur)
    return jnp.stack(outs, axis=0)


# ----------------------------------------------------------------------------
if __name__ == "__main__":
    B, T, H, W = 2, 4, 4, 4
    in_dim, out_dim, num_heads = 64, 128, 4        # out_dim multiple of 128 -> lane-dense stores

    root = jax.random.PRNGKey(0)
    kp, kf = jax.random.split(root)
    params = init_params(kp, in_dim, out_dim)
    prep = prep_params(params, num_heads)

    faces = jax.random.normal(kf, (B, in_dim, T, H, W), jnp.float32)
    mask = jnp.array([[[1, 1, 1, 1]],
                      [[1, 1, 0, 0]]], jnp.float32)               # lens = [4, 2]

    fwd = jax.jit(functools.partial(vtp_wrapper_forward, num_heads=num_heads))
    out = jax.block_until_ready(fwd(prep, faces, mask))

    ref = reference_forward(params, faces, mask, num_heads=num_heads)
    assert out.shape == (B, T, out_dim)
    # bf16 matmul path (autocast-equivalent) + approx reciprocal vs f32 reference
    assert jnp.allclose(out, ref, atol=5e-2, rtol=5e-2), float(jnp.max(jnp.abs(out - ref)))

    print("KERNEL_OK")
</pallas_src>

<mosaic_0001>
module attributes {stable_mosaic.version = 11 : i64} {
  func.func @_fused_linear_kernel(%arg0: i32, %arg1: i32, %arg2: i32, %arg3: memref<64x64xbf16, #tpu.memory_space<vmem>>, %arg4: memref<64x128xbf16, #tpu.memory_space<vmem>>, %arg5: memref<1x128xf32, #tpu.memory_space<vmem>>, %arg6: memref<16x128xf32, #tpu.memory_space<vmem>>, %arg7: memref<64x128xbf16, #tpu.memory_space<vmem>>, %arg8: memref<64x128xf32, #tpu.memory_space<vmem>>) attributes {dimension_semantics = [#tpu.dimension_semantics<parallel>, #tpu.dimension_semantics<parallel>, #tpu.dimension_semantics<arbitrary>], iteration_bounds = array<i64: 2, 1, 1>, scalar_prefetch = 0 : i64, scratch_operands = 1 : i64, tpu.core_type = #tpu.core_type<tc>, window_params = [{transform_indices = @transform_0, window_bounds = array<i64: 64, 64>}, {transform_indices = @transform_1, window_bounds = array<i64: 64, 128>}, {transform_indices = @transform_2, window_bounds = array<i64: 1, 128>}, {transform_indices = @transform_3, window_bounds = array<i64: 16, 128>}, {transform_indices = @transform_4, window_bounds = array<i64: 64, 128>}]} {
    %c0_i32 = arith.constant 0 : i32
    %0 = arith.cmpi eq, %arg2, %c0_i32 : i32
    %1 = arith.extui %0 : i1 to i32
    %c0_i32_0 = arith.constant 0 : i32
    %2 = arith.cmpi ne, %1, %c0_i32_0 : i32
    scf.if %2 {
      %cst_10 = arith.constant 0.000000e+00 : f32
      %12 = vector.broadcast %cst_10 : f32 to vector<64x128xf32>
      %c0_11 = arith.constant 0 : index
      %c0_12 = arith.constant 0 : index
      %13 = vector.load %arg8[%c0_11, %c0_12] : memref<64x128xf32, #tpu.memory_space<vmem>>, vector<64x128xf32>
      tpu.vector_store %arg8[%c0_11, %c0_12], %12 {strides = array<i32>} : memref<64x128xf32, #tpu.memory_space<vmem>>, vector<64x128xf32>,
    } else {
    }
    %c0 = arith.constant 0 : index
    %c0_1 = arith.constant 0 : index
    %3 = vector.load %arg3[%c0, %c0_1] : memref<64x64xbf16, #tpu.memory_space<vmem>>, vector<64x64xbf16>
    %c0_2 = arith.constant 0 : index
    %c0_3 = arith.constant 0 : index
    %4 = vector.load %arg8[%c0_2, %c0_3] : memref<64x128xf32, #tpu.memory_space<vmem>>, vector<64x128xf32>
    %c0_4 = arith.constant 0 : index
    %c0_5 = arith.constant 0 : index
    %5 = vector.load %arg4[%c0_4, %c0_5] : memref<64x128xbf16, #tpu.memory_space<vmem>>, vector<64x128xbf16>
    %cst = arith.constant dense<0.000000e+00> : vector<64x128xf32>
    %6 = tpu.matmul %3, %5, %cst {dimension_numbers = #tpu.dot_dimension_numbers<[1], [0], [0], [1], [0, 0, 1, 1], [], []>} : vector<64x64xbf16>, vector<64x128xbf16>, vector<64x128xf32> -> vector<64x128xf32>
    %7 = arith.addf %4, %6 : vector<64x128xf32>
    %c0_6 = arith.constant 0 : index
    %c0_7 = arith.constant 0 : index
    %8 = vector.load %arg8[%c0_6, %c0_7] : memref<64x128xf32, #tpu.memory_space<vmem>>, vector<64x128xf32>
    tpu.vector_store %arg8[%c0_6, %c0_7], %7 {strides = array<i32>} : memref<64x128xf32, #tpu.memory_space<vmem>>, vector<64x128xf32>,
    %c0_i32_8 = arith.constant 0 : i32
    %9 = arith.cmpi eq, %arg2, %c0_i32_8 : i32
    %10 = arith.extui %9 : i1 to i32
    %c0_i32_9 = arith.constant 0 : i32
    %11 = arith.cmpi ne, %10, %c0_i32_9 : i32
    scf.if %11 {
      %c0_10 = arith.constant 0 : index
      %c0_11 = arith.constant 0 : index
      %12 = vector.load %arg6[%c0_10, %c0_11] : memref<16x128xf32, #tpu.memory_space<vmem>>, vector<16x128xf32>
      %13 = tpu.concatenate %12, %12, %12, %12 in 0 : vector<16x128xf32>, vector<16x128xf32>, vector<16x128xf32>, vector<16x128xf32> -> vector<64x128xf32>
      %c0_12 = arith.constant 0 : index
      %c0_13 = arith.constant 0 : index
      %14 = vector.load %arg8[%c0_12, %c0_13] : memref<64x128xf32, #tpu.memory_space<vmem>>, vector<64x128xf32>
      %c0_14 = arith.constant 0 : index
      %c0_15 = arith.constant 0 : index
      %15 = vector.load %arg5[%c0_14, %c0_15] : memref<1x128xf32, #tpu.memory_space<vmem>>, vector<1x128xf32>
      %16 = vector.broadcast %15 : vector<1x128xf32> to vector<64x128xf32>
      %17 = arith.addf %14, %16 : vector<64x128xf32>
      %18 = arith.addf %17, %13 : vector<64x128xf32>
      %19 = arith.truncf %18 : vector<64x128xf32> to vector<64x128xbf16>
      %c0_16 = arith.constant 0 : index
      %c0_17 = arith.constant 0 : index
      %20 = vector.load %arg7[%c0_16, %c0_17] : memref<64x128xbf16, #tpu.memory_space<vmem>>, vector<64x128xbf16>
      tpu.vector_store %arg7[%c0_16, %c0_17], %19 {strides = array<i32>} : memref<64x128xbf16, #tpu.memory_space<vmem>>, vector<64x128xbf16>,
    } else {
    }
    return
  }
  func.func @transform_0(%arg0: i32, %arg1: i32, %arg2: i32) -> (i32, i32) {
    %c0_i32 = arith.constant 0 : i32
    return %arg0, %arg2 : i32, i32
  }
  func.func @transform_1(%arg0: i32, %arg1: i32, %arg2: i32) -> (i32, i32) {
    %c0_i32 = arith.constant 0 : i32
    return %arg2, %arg1 : i32, i32
  }
  func.func @transform_2(%arg0: i32, %arg1: i32, %arg2: i32) -> (i32, i32) {
    %c0_i32 = arith.constant 0 : i32
    %c0_i32_0 = arith.constant 0 : i32
    return %c0_i32, %arg1 : i32, i32
  }
  func.func @transform_3(%arg0: i32, %arg1: i32, %arg2: i32) -> (i32, i32) {
    %c0_i32 = arith.constant 0 : i32
    %c0_i32_0 = arith.constant 0 : i32
    return %c0_i32, %arg1 : i32, i32
  }
  func.func @transform_4(%arg0: i32, %arg1: i32, %arg2: i32) -> (i32, i32) {
    %c0_i32 = arith.constant 0 : i32
    return %arg0, %arg1 : i32, i32
  }
}

module attributes {stable_mosaic.version = 11 : i64} {
  func.func @_fused_linear_kernel(%arg0: i32, %arg1: i32, %arg2: i32, %arg3: memref<64x128xbf16, #tpu.memory_space<vmem>>, %arg4: memref<128x128xbf16, #tpu.memory_space<vmem>>, %arg5: memref<128x128xbf16, #tpu.memory_space<vmem>>, %arg6: memref<128x128xbf16, #tpu.memory_space<vmem>>, %arg7: memref<1x128xf32, #tpu.memory_space<vmem>>, %arg8: memref<1x128xf32, #tpu.memory_space<vmem>>, %arg9: memref<1x128xf32, #tpu.memory_space<vmem>>, %arg10: memref<64x128xbf16, #tpu.memory_space<vmem>>, %arg11: memref<64x128xbf16, #tpu.memory_space<vmem>>, %arg12: memref<64x128xbf16, #tpu.memory_space<vmem>>, %arg13: memref<64x128xf32, #tpu.memory_space<vmem>>, %arg14: memref<64x128xf32, #tpu.memory_space<vmem>>, %arg15: memref<64x128xf32, #tpu.memory_space<vmem>>) attributes {dimension_semantics = [#tpu.dimension_semantics<parallel>, #tpu.dimension_semantics<parallel>, #tpu.dimension_semantics<arbitrary>], iteration_bounds = array<i64: 2, 1, 1>, scalar_prefetch = 0 : i64, scratch_operands = 3 : i64, tpu.core_type = #tpu.core_type<tc>, window_params = [{transform_indices = @transform_0, window_bounds = array<i64: 64, 128>}, {transform_indices = @transform_1, window_bounds = array<i64: 128, 128>}, {transform_indices = @transform_2, window_bounds = array<i64: 128, 128>}, {transform_indices = @transform_3, window_bounds = array<i64: 128, 128>}, {transform_indices = @transform_4, window_bounds = array<i64: 1, 128>}, {transform_indices = @transform_5, window_bounds = array<i64: 1, 128>}, {transform_indices = @transform_6, window_bounds = array<i64: 1, 128>}, {transform_indices = @transform_7, window_bounds = array<i64: 64, 128>}, {transform_indices = @transform_8, window_bounds = array<i64: 64, 128>}, {transform_indices = @transform_9, window_bounds = array<i64: 64, 128>}]} {
    %c0_i32 = arith.constant 0 : i32
    %0 = arith.cmpi eq, %arg2, %c0_i32 : i32
    %1 = arith.extui %0 : i1 to i32
    %c0_i32_0 = arith.constant 0 : i32
    %2 = arith.cmpi ne, %1, %c0_i32_0 : i32
    scf.if %2 {
      %cst_24 = arith.constant 0.000000e+00 : f32
      %22 = vector.broadcast %cst_24 : f32 to vector<64x128xf32>
      %c0_25 = arith.constant 0 : index
      %c0_26 = arith.constant 0 : index
      %23 = vector.load %arg13[%c0_25, %c0_26] : memref<64x128xf32, #tpu.memory_space<vmem>>, vector<64x128xf32>
      tpu.vector_store %arg13[%c0_25, %c0_26], %22 {strides = array<i32>} : memref<64x128xf32, #tpu.memory_space<vmem>>, vector<64x128xf32>,
      %cst_27 = arith.constant 0.000000e+00 : f32
      %24 = vector.broadcast %cst_27 : f32 to vector<64x128xf32>
      %c0_28 = arith.constant 0 : index
      %c0_29 = arith.constant 0 : index
      %25 = vector.load %arg14[%c0_28, %c0_29] : memref<64x128xf32, #tpu.memory_space<vmem>>, vector<64x128xf32>
      tpu.vector_store %arg14[%c0_28, %c0_29], %24 {strides = array<i32>} : memref<64x128xf32, #tpu.memory_space<vmem>>, vector<64x128xf32>,
      %cst_30 = arith.constant 0.000000e+00 : f32
      %26 = vector.broadcast %cst_30 : f32 to vector<64x128xf32>
      %c0_31 = arith.constant 0 : index
      %c0_32 = arith.constant 0 : index
      %27 = vector.load %arg15[%c0_31, %c0_32] : memref<64x128xf32, #tpu.memory_space<vmem>>, vector<64x128xf32>
      tpu.vector_store %arg15[%c0_31, %c0_32], %26 {strides = array<i32>} : memref<64x128xf32, #tpu.memory_space<vmem>>, vector<64x128xf32>,
    } else {
    }
    %c0 = arith.constant 0 : index
    %c0_1 = arith.constant 0 : index
    %3 = vector.load %arg3[%c0, %c0_1] : memref<64x128xbf16, #tpu.memory_space<vmem>>, vector<64x128xbf16>
    %c0_2 = arith.constant 0 : index
    %c0_3 = arith.constant 0 : index
    %4 = vector.load %arg13[%c0_2, %c0_3] : memref<64x128xf32, #tpu.memory_space<vmem>>, vector<64x128xf32>
    %c0_4 = arith.constant 0 : index
    %c0_5 = arith.constant 0 : index
    %5 = vector.load %arg4[%c0_4, %c0_5] : memref<128x128xbf16, #tpu.memory_space<vmem>>, vector<128x128xbf16>
    %cst = arith.constant dense<0.000000e+00> : vector<64x128xf32>
    %6 = tpu.matmul %3, %5, %cst {dimension_numbers = #tpu.dot_dimension_numbers<[1], [0], [0], [1], [0, 0, 1, 1], [], []>} : vector<64x128xbf16>, vector<128x128xbf16>, vector<64x128xf32> -> vector<64x128xf32>
    %7 = arith.addf %4, %6 : vector<64x128xf32>
    %c0_6 = arith.constant 0 : index
    %c0_7 = arith.constant 0 : index
    %8 = vector.load %arg13[%c0_6, %c0_7] : memref<64x128xf32, #tpu.memory_space<vmem>>, vector<64x128xf32>
    tpu.vector_store %arg13[%c0_6, %c0_7], %7 {strides = array<i32>} : memref<64x128xf32, #tpu.memory_space<vmem>>, vector<64x128xf32>,
    %c0_8 = arith.constant 0 : index
    %c0_9 = arith.constant 0 : index
    %9 = vector.load %arg14[%c0_8, %c0_9] : memref<64x128xf32, #tpu.memory_space<vmem>>, vector<64x128xf32>
    %c0_10 = arith.constant 0 : index
    %c0_11 = arith.constant 0 : index
    %10 = vector.load %arg5[%c0_10, %c0_11] : memref<128x128xbf16, #tpu.memory_space<vmem>>, vector<128x128xbf16>
    %cst_12 = arith.constant dense<0.000000e+00> : vector<64x128xf32>
    %11 = tpu.matmul %3, %10, %cst_12 {dimension_numbers = #tpu.dot_dimension_numbers<[1], [0], [0], [1], [0, 0, 1, 1], [], []>} : vector<64x128xbf16>, vector<128x128xbf16>, vector<64x128xf32> -> vector<64x128xf32>
    %12 = arith.addf %9, %11 : vector<64x128xf32>
    %c0_13 = arith.constant 0 : index
    %c0_14 = arith.constant 0 : index
    %13 = vector.load %arg14[%c0_13, %c0_14] : memref<64x128xf32, #tpu.memory_space<vmem>>, vector<64x128xf32>
    tpu.vector_store %arg14[%c0_13, %c0_14], %12 {strides = array<i32>} : memref<64x128xf32, #tpu.memory_space<vmem>>, vector<64x128xf32>,
    %c0_15 = arith.constant 0 : index
    %c0_16 = arith.constant 0 : index
    %14 = vector.load %arg15[%c0_15, %c0_16] : memref<64x128xf32, #tpu.memory_space<vmem>>, vector<64x128xf32>
    %c0_17 = arith.constant 0 : index
    %c0_18 = arith.constant 0 : index
    %15 = vector.load %arg6[%c0_17, %c0_18] : memref<128x128xbf16, #tpu.memory_space<vmem>>, vector<128x128xbf16>
    %cst_19 = arith.constant dense<0.000000e+00> : vector<64x128xf32>
    %16 = tpu.matmul %3, %15, %cst_19 {dimension_numbers = #tpu.dot_dimension_numbers<[1], [0], [0], [1], [0, 0, 1, 1], [], []>} : vector<64x128xbf16>, vector<128x128xbf16>, vector<64x128xf32> -> vector<64x128xf32>
    %17 = arith.addf %14, %16 : vector<64x128xf32>
    %c0_20 = arith.constant 0 : index
    %c0_21 = arith.constant 0 : index
    %18 = vector.load %arg15[%c0_20, %c0_21] : memref<64x128xf32, #tpu.memory_space<vmem>>, vector<64x128xf32>
    tpu.vector_store %arg15[%c0_20, %c0_21], %17 {strides = array<i32>} : memref<64x128xf32, #tpu.memory_space<vmem>>, vector<64x128xf32>,
    %c0_i32_22 = arith.constant 0 : i32
    %19 = arith.cmpi eq, %arg2, %c0_i32_22 : i32
    %20 = arith.extui %19 : i1 to i32
    %c0_i32_23 = arith.constant 0 : i32
    %21 = arith.cmpi ne, %20, %c0_i32_23 : i32
    scf.if %21 {
      %c0_24 = arith.constant 0 : index
      %c0_25 = arith.constant 0 : index
      %22 = vector.load %arg13[%c0_24, %c0_25] : memref<64x128xf32, #tpu.memory_space<vmem>>, vector<64x128xf32>
      %c0_26 = arith.constant 0 : index
      %c0_27 = arith.constant 0 : index
      %23 = vector.load %arg7[%c0_26, %c0_27] : memref<1x128xf32, #tpu.memory_space<vmem>>, vector<1x128xf32>
      %24 = vector.broadcast %23 : vector<1x128xf32> to vector<64x128xf32>
      %25 = arith.addf %22, %24 : vector<64x128xf32>
      %26 = arith.truncf %25 : vector<64x128xf32> to vector<64x128xbf16>
      %c0_28 = arith.constant 0 : index
      %c0_29 = arith.constant 0 : index
      %27 = vector.load %arg10[%c0_28, %c0_29] : memref<64x128xbf16, #tpu.memory_space<vmem>>, vector<64x128xbf16>
      tpu.vector_store %arg10[%c0_28, %c0_29], %26 {strides = array<i32>} : memref<64x128xbf16, #tpu.memory_space<vmem>>, vector<64x128xbf16>,
      %c0_30 = arith.constant 0 : index
      %c0_31 = arith.constant 0 : index
      %28 = vector.load %arg14[%c0_30, %c0_31] : memref<64x128xf32, #tpu.memory_space<vmem>>, vector<64x128xf32>
      %c0_32 = arith.constant 0 : index
      %c0_33 = arith.constant 0 : index
      %29 = vector.load %arg8[%c0_32, %c0_33] : memref<1x128xf32, #tpu.memory_space<vmem>>, vector<1x128xf32>
      %30 = vector.broadcast %29 : vector<1x128xf32> to vector<64x128xf32>
      %31 = arith.addf %28, %30 : vector<64x128xf32>
      %32 = arith.truncf %31 : vector<64x128xf32> to vector<64x128xbf16>
      %c0_34 = arith.constant 0 : index
      %c0_35 = arith.constant 0 : index
      %33 = vector.load %arg11[%c0_34, %c0_35] : memref<64x128xbf16, #tpu.memory_space<vmem>>, vector<64x128xbf16>
      tpu.vector_store %arg11[%c0_34, %c0_35], %32 {strides = array<i32>} : memref<64x128xbf16, #tpu.memory_space<vmem>>, vector<64x128xbf16>,
      %c0_36 = arith.constant 0 : index
      %c0_37 = arith.constant 0 : index
      %34 = vector.load %arg15[%c0_36, %c0_37] : memref<64x128xf32, #tpu.memory_space<vmem>>, vector<64x128xf32>
      %c0_38 = arith.constant 0 : index
      %c0_39 = arith.constant 0 : index
      %35 = vector.load %arg9[%c0_38, %c0_39] : memref<1x128xf32, #tpu.memory_space<vmem>>, vector<1x128xf32>
      %36 = vector.broadcast %35 : vector<1x128xf32> to vector<64x128xf32>
      %37 = arith.addf %34, %36 : vector<64x128xf32>
      %38 = arith.truncf %37 : vector<64x128xf32> to vector<64x128xbf16>
      %c0_40 = arith.constant 0 : index
      %c0_41 = arith.constant 0 : index
      %39 = vector.load %arg12[%c0_40, %c0_41] : memref<64x128xbf16, #tpu.memory_space<vmem>>, vector<64x128xbf16>
      tpu.vector_store %arg12[%c0_40, %c0_41], %38 {strides = array<i32>} : memref<64x128xbf16, #tpu.memory_space<vmem>>, vector<64x128xbf16>,
    } else {
    }
    return
  }
  func.func @transform_0(%arg0: i32, %arg1: i32, %arg2: i32) -> (i32, i32) {
    %c0_i32 = arith.constant 0 : i32
    return %arg0, %arg2 : i32, i32
  }
  func.func @transform_1(%arg0: i32, %arg1: i32, %arg2: i32) -> (i32, i32) {
    %c0_i32 = arith.constant 0 : i32
    return %arg2, %arg1 : i32, i32
  }
  func.func @transform_2(%arg0: i32, %arg1: i32, %arg2: i32) -> (i32, i32) {
    %c0_i32 = arith.constant 0 : i32
    return %arg2, %arg1 : i32, i32
  }
  func.func @transform_3(%arg0: i32, %arg1: i32, %arg2: i32) -> (i32, i32) {
    %c0_i32 = arith.constant 0 : i32
    return %arg2, %arg1 : i32, i32
  }
  func.func @transform_4(%arg0: i32, %arg1: i32, %arg2: i32) -> (i32, i32) {
    %c0_i32 = arith.constant 0 : i32
    %c0_i32_0 = arith.constant 0 : i32
    return %c0_i32, %arg1 : i32, i32
  }
  func.func @transform_5(%arg0: i32, %arg1: i32, %arg2: i32) -> (i32, i32) {
    %c0_i32 = arith.constant 0 : i32
    %c0_i32_0 = arith.constant 0 : i32
    return %c0_i32, %arg1 : i32, i32
  }
  func.func @transform_6(%arg0: i32, %arg1: i32, %arg2: i32) -> (i32, i32) {
    %c0_i32 = arith.constant 0 : i32
    %c0_i32_0 = arith.constant 0 : i32
    return %c0_i32, %arg1 : i32, i32
  }
  func.func @transform_7(%arg0: i32, %arg1: i32, %arg2: i32) -> (i32, i32) {
    %c0_i32 = arith.constant 0 : i32
    return %arg0, %arg1 : i32, i32
  }
  func.func @transform_8(%arg0: i32, %arg1: i32, %arg2: i32) -> (i32, i32) {
    %c0_i32 = arith.constant 0 : i32
    return %arg0, %arg1 : i32, i32
  }
  func.func @transform_9(%arg0: i32, %arg1: i32, %arg2: i32) -> (i32, i32) {
    %c0_i32 = arith.constant 0 : i32
    return %arg0, %arg1 : i32, i32
  }
}

module attributes {stable_mosaic.version = 11 : i64} {
  func.func @_out_proj_pool_kernel(%arg0: i32, %arg1: memref<8xi32, #tpu.memory_space<smem>>, %arg2: memref<1x16x128xbf16, #tpu.memory_space<vmem>>, %arg3: memref<128x128xbf16, #tpu.memory_space<vmem>>, %arg4: memref<1x128xf32, #tpu.memory_space<vmem>>, %arg5: memref<1x16x128xbf16, #tpu.memory_space<vmem>>, %arg6: memref<1x128xf32, #tpu.memory_space<vmem>>, %arg7: memref<1x1x128xf32, #tpu.memory_space<vmem>>) attributes {dimension_semantics = [#tpu.dimension_semantics<parallel>], iteration_bounds = array<i64: 8>, scalar_prefetch = 1 : i64, scratch_operands = 0 : i64, tpu.core_type = #tpu.core_type<tc>, window_params = [{transform_indices = @transform_0, window_bounds = array<i64: 1, 16, 128>}, {pipeline_mode = #tpu.pipeline_mode<synchronous>, transform_indices = @transform_1, window_bounds = array<i64: 128, 128>}, {pipeline_mode = #tpu.pipeline_mode<synchronous>, transform_indices = @transform_2, window_bounds = array<i64: 1, 128>}, {transform_indices = @transform_3, window_bounds = array<i64: 1, 16, 128>}, {pipeline_mode = #tpu.pipeline_mode<synchronous>, transform_indices = @transform_4, window_bounds = array<i64: 1, 128>}, {transform_indices = @transform_5, window_bounds = array<i64: 1, 1, 128>}]} {
    %0 = arith.index_cast %arg0 : i32 to index
    %1 = memref.load %arg1[%0] : memref<8xi32, #tpu.memory_space<smem>>
    %c0_i32 = arith.constant 0 : i32
    %2 = arith.cmpi sgt, %1, %c0_i32 : i32
    %3 = arith.extui %2 : i1 to i32
    %c0_i32_0 = arith.constant 0 : i32
    %4 = arith.cmpi ne, %3, %c0_i32_0 : i32
    scf.if %4 {
      %c0 = arith.constant 0 : index
      %c0_2 = arith.constant 0 : index
      %c0_3 = arith.constant 0 : index
      %8 = vector.load %arg2[%c0, %c0_2, %c0_3] : memref<1x16x128xbf16, #tpu.memory_space<vmem>>, vector<1x16x128xbf16>
      %9 = vector.shape_cast %8 : vector<1x16x128xbf16> to vector<16x128xbf16>
      %c0_4 = arith.constant 0 : index
      %c0_5 = arith.constant 0 : index
      %10 = vector.load %arg3[%c0_4, %c0_5] : memref<128x128xbf16, #tpu.memory_space<vmem>>, vector<128x128xbf16>
      %cst = arith.constant dense<0.000000e+00> : vector<16x128xf32>
      %11 = tpu.matmul %9, %10, %cst {dimension_numbers = #tpu.dot_dimension_numbers<[1], [0], [0], [1], [0, 0, 1, 1], [], []>} : vector<16x128xbf16>, vector<128x128xbf16>, vector<16x128xf32> -> vector<16x128xf32>
      %c0_6 = arith.constant 0 : index
      %c0_7 = arith.constant 0 : index
      %12 = vector.load %arg4[%c0_6, %c0_7] : memref<1x128xf32, #tpu.memory_space<vmem>>, vector<1x128xf32>
      %13 = vector.broadcast %12 : vector<1x128xf32> to vector<16x128xf32>
      %14 = arith.addf %11, %13 : vector<16x128xf32>
      %c0_8 = arith.constant 0 : index
      %c0_9 = arith.constant 0 : index
      %c0_10 = arith.constant 0 : index
      %15 = vector.load %arg5[%c0_8, %c0_9, %c0_10] : memref<1x16x128xbf16, #tpu.memory_space<vmem>>, vector<1x16x128xbf16>
      %16 = vector.shape_cast %15 : vector<1x16x128xbf16> to vector<16x128xbf16>
      %17 = arith.extf %16 : vector<16x128xbf16> to vector<16x128xf32>
      %18 = arith.addf %14, %17 : vector<16x128xf32>
      %c0_11 = arith.constant 0 : index
      %c0_12 = arith.constant 0 : index
      %19 = vector.load %arg6[%c0_11, %c0_12] : memref<1x128xf32, #tpu.memory_space<vmem>>, vector<1x128xf32>
      %cst_13 = arith.constant dense<0.000000e+00> : vector<16x1xf32>
      %20 = tpu.matmul %18, %19, %cst_13 {dimension_numbers = #tpu.dot_dimension_numbers<[1], [1], [0], [0], [0, 0, 1, 0], [], []>} : vector<16x128xf32>, vector<1x128xf32>, vector<16x1xf32> -> vector<16x1xf32>
      %cst_14 = arith.constant dense<0xFF800000> : vector<1xf32>
      %21 = vector.multi_reduction <maximumf>, %20, %cst_14 [0] : vector<16x1xf32> to vector<1xf32>
      %22 = vector.shape_cast %21 : vector<1xf32> to vector<1x1xf32>
      %23 = vector.broadcast %22 : vector<1x1xf32> to vector<16x1xf32>
      %24 = arith.subf %20, %23 : vector<16x1xf32>
      %25 = math.exp %24 : vector<16x1xf32>
      %cst_15 = arith.constant dense<0.000000e+00> : vector<1xf32>
      %26 = vector.multi_reduction <add>, %25, %cst_15 [0] : vector<16x1xf32> to vector<1xf32>
      %27 = vector.shape_cast %26 : vector<1xf32> to vector<1x1xf32>
      %28 = tpu.reciprocal %27 {approx = true} : vector<1x1xf32> -> vector<1x1xf32>
      %29 = vector.broadcast %28 : vector<1x1xf32> to vector<16x1xf32>
      %30 = arith.mulf %25, %29 : vector<16x1xf32>
      %cst_16 = arith.constant dense<0.000000e+00> : vector<1x128xf32>
      %31 = tpu.matmul %30, %18, %cst_16 {dimension_numbers = #tpu.dot_dimension_numbers<[0], [0], [1], [1], [0, 1, 1, 1], [], []>} : vector<16x1xf32>, vector<16x128xf32>, vector<1x128xf32> -> vector<1x128xf32>
      %c0_17 = arith.constant 0 : index
      %c0_18 = arith.constant 0 : index
      %c0_19 = arith.constant 0 : index
      %32 = vector.load %arg7[%c0_17, %c0_18, %c0_19] : memref<1x1x128xf32, #tpu.memory_space<vmem>>, vector<1x1x128xf32>
      %33 = vector.shape_cast %32 : vector<1x1x128xf32> to vector<1x128xf32>
      %34 = vector.shape_cast %31 : vector<1x128xf32> to vector<1x1x128xf32>
      tpu.vector_store %arg7[%c0_17, %c0_18, %c0_19], %34 {strides = array<i32>} : memref<1x1x128xf32, #tpu.memory_space<vmem>>, vector<1x1x128xf32>,
    } else {
    }
    %true = arith.constant true
    %5 = arith.xori %2, %true : i1
    %6 = arith.extui %5 : i1 to i32
    %c0_i32_1 = arith.constant 0 : i32
    %7 = arith.cmpi ne, %6, %c0_i32_1 : i32
    scf.if %7 {
      %cst = arith.constant 0.000000e+00 : f32
      %8 = vector.broadcast %cst : f32 to vector<1x1x128xf32>
      %c0 = arith.constant 0 : index
      %c0_2 = arith.constant 0 : index
      %c0_3 = arith.constant 0 : index
      %9 = vector.load %arg7[%c0, %c0_2, %c0_3] : memref<1x1x128xf32, #tpu.memory_space<vmem>>, vector<1x1x128xf32>
      tpu.vector_store %arg7[%c0, %c0_2, %c0_3], %8 {strides = array<i32>} : memref<1x1x128xf32, #tpu.memory_space<vmem>>, vector<1x1x128xf32>,
    } else {
    }
    return
  }
  func.func @transform_0(%arg0: i32, %arg1: memref<8xi32, #tpu.memory_space<smem>>) -> (i32, i32, i32) {
    %c0_i32 = arith.constant 0 : i32
    %c0_i32_0 = arith.constant 0 : i32
    %c0_i32_1 = arith.constant 0 : i32
    return %arg0, %c0_i32, %c0_i32_0 : i32, i32, i32
  }
  func.func @transform_1(%arg0: i32, %arg1: memref<8xi32, #tpu.memory_space<smem>>) -> (i32, i32) {
    %c0_i32 = arith.constant 0 : i32
    %c0_i32_0 = arith.constant 0 : i32
    %c0_i32_1 = arith.constant 0 : i32
    return %c0_i32, %c0_i32_0 : i32, i32
  }
  func.func @transform_2(%arg0: i32, %arg1: memref<8xi32, #tpu.memory_space<smem>>) -> (i32, i32) {
    %c0_i32 = arith.constant 0 : i32
    %c0_i32_0 = arith.constant 0 : i32
    %c0_i32_1 = arith.constant 0 : i32
    return %c0_i32, %c0_i32_0 : i32, i32
  }
  func.func @transform_3(%arg0: i32, %arg1: memref<8xi32, #tpu.memory_space<smem>>) -> (i32, i32, i32) {
    %c0_i32 = arith.constant 0 : i32
    %c0_i32_0 = arith.constant 0 : i32
    %c0_i32_1 = arith.constant 0 : i32
    return %arg0, %c0_i32, %c0_i32_0 : i32, i32, i32
  }
  func.func @transform_4(%arg0: i32, %arg1: memref<8xi32, #tpu.memory_space<smem>>) -> (i32, i32) {
    %c0_i32 = arith.constant 0 : i32
    %c0_i32_0 = arith.constant 0 : i32
    %c0_i32_1 = arith.constant 0 : i32
    return %c0_i32, %c0_i32_0 : i32, i32
  }
  func.func @transform_5(%arg0: i32, %arg1: memref<8xi32, #tpu.memory_space<smem>>) -> (i32, i32, i32) {
    %c0_i32 = arith.constant 0 : i32
    %c0_i32_0 = arith.constant 0 : i32
    %c0_i32_1 = arith.constant 0 : i32
    return %arg0, %c0_i32, %c0_i32_0 : i32, i32, i32
  }
}

module attributes {stable_mosaic.version = 11 : i64} {
  func.func @_mha_kernel(%arg0: i32, %arg1: i32, %arg2: memref<8xi32, #tpu.memory_space<smem>>, %arg3: memref<1x16x128xbf16, #tpu.memory_space<vmem>>, %arg4: memref<1x16x128xbf16, #tpu.memory_space<vmem>>, %arg5: memref<1x16x128xbf16, #tpu.memory_space<vmem>>, %arg6: memref<1x16x128xbf16, #tpu.memory_space<vmem>>) attributes {dimension_semantics = [#tpu.dimension_semantics<parallel>, #tpu.dimension_semantics<parallel>], iteration_bounds = array<i64: 8, 1>, scalar_prefetch = 1 : i64, scratch_operands = 0 : i64, tpu.core_type = #tpu.core_type<tc>, window_params = [{transform_indices = @transform_0, window_bounds = array<i64: 1, 16, 128>}, {transform_indices = @transform_1, window_bounds = array<i64: 1, 16, 128>}, {transform_indices = @transform_2, window_bounds = array<i64: 1, 16, 128>}, {transform_indices = @transform_3, window_bounds = array<i64: 1, 16, 128>}]} {
    %0 = arith.index_cast %arg0 : i32 to index
    %1 = memref.load %arg2[%0] : memref<8xi32, #tpu.memory_space<smem>>
    %c0_i32 = arith.constant 0 : i32
    %2 = arith.cmpi sgt, %1, %c0_i32 : i32
    %3 = arith.extui %2 : i1 to i32
    %c0_i32_0 = arith.constant 0 : i32
    %4 = arith.cmpi ne, %3, %c0_i32_0 : i32
    scf.if %4 {
      %c0 = arith.constant 0 : index
      %c0_1 = arith.constant 0 : index
      %c0_2 = arith.constant 0 : index
      %5 = vector.load %arg3[%c0, %c0_1, %c0_2] : memref<1x16x128xbf16, #tpu.memory_space<vmem>>, vector<1x16x128xbf16>
      %6 = vector.shape_cast %5 : vector<1x16x128xbf16> to vector<16x128xbf16>
      %c0_3 = arith.constant 0 : index
      %c0_4 = arith.constant 0 : index
      %c0_5 = arith.constant 0 : index
      %7 = vector.load %arg4[%c0_3, %c0_4, %c0_5] : memref<1x16x128xbf16, #tpu.memory_space<vmem>>, vector<1x16x128xbf16>
      %8 = vector.shape_cast %7 : vector<1x16x128xbf16> to vector<16x128xbf16>
      %c0_6 = arith.constant 0 : index
      %c0_7 = arith.constant 0 : index
      %c0_8 = arith.constant 0 : index
      %9 = vector.load %arg5[%c0_6, %c0_7, %c0_8] : memref<1x16x128xbf16, #tpu.memory_space<vmem>>, vector<1x16x128xbf16>
      %10 = vector.shape_cast %9 : vector<1x16x128xbf16> to vector<16x128xbf16>
      %11 = vector.extract_strided_slice %6 {offsets = [0, 0], sizes = [16, 32], strides = [1, 1]} : vector<16x128xbf16> to vector<16x32xbf16>
      %12 = vector.extract_strided_slice %8 {offsets = [0, 0], sizes = [16, 32], strides = [1, 1]} : vector<16x128xbf16> to vector<16x32xbf16>
      %cst = arith.constant dense<0.000000e+00> : vector<16x16xf32>
      %13 = tpu.matmul %11, %12, %cst {dimension_numbers = #tpu.dot_dimension_numbers<[1], [1], [0], [0], [0, 0, 1, 0], [], []>} : vector<16x32xbf16>, vector<16x32xbf16>, vector<16x16xf32> -> vector<16x16xf32>
      %cst_9 = arith.constant dense<0xFF800000> : vector<16xf32>
      %14 = vector.multi_reduction <maximumf>, %13, %cst_9 [1] : vector<16x16xf32> to vector<16xf32>
      %15 = vector.shape_cast %14 : vector<16xf32> to vector<16x1xf32>
      %16 = vector.broadcast %15 : vector<16x1xf32> to vector<16x16xf32>
      %17 = arith.subf %13, %16 : vector<16x16xf32>
      %18 = math.exp %17 : vector<16x16xf32>
      %cst_10 = arith.constant dense<0.000000e+00> : vector<16xf32>
      %19 = vector.multi_reduction <add>, %18, %cst_10 [1] : vector<16x16xf32> to vector<16xf32>
      %20 = vector.shape_cast %19 : vector<16xf32> to vector<16x1xf32>
      %21 = tpu.reciprocal %20 {approx = true} : vector<16x1xf32> -> vector<16x1xf32>
      %22 = vector.broadcast %21 : vector<16x1xf32> to vector<16x16xf32>
      %23 = arith.mulf %18, %22 : vector<16x16xf32>
      %24 = arith.truncf %23 : vector<16x16xf32> to vector<16x16xbf16>
      %25 = vector.extract_strided_slice %10 {offsets = [0, 0], sizes = [16, 32], strides = [1, 1]} : vector<16x128xbf16> to vector<16x32xbf16>
      %cst_11 = arith.constant dense<0.000000e+00> : vector<16x32xf32>
      %26 = tpu.matmul %24, %25, %cst_11 {dimension_numbers = #tpu.dot_dimension_numbers<[1], [0], [0], [1], [0, 0, 1, 1], [], []>} : vector<16x16xbf16>, vector<16x32xbf16>, vector<16x32xf32> -> vector<16x32xf32>
      %27 = arith.truncf %26 : vector<16x32xf32> to vector<16x32xbf16>
      %c0_12 = arith.constant 0 : index
      %c0_13 = arith.constant 0 : index
      %c0_14 = arith.constant 0 : index
      %28 = vector.load %arg6[%c0_12, %c0_13, %c0_14] : memref<1x16x128xbf16, #tpu.memory_space<vmem>>, vector<1x16x32xbf16>
      %29 = vector.shape_cast %28 : vector<1x16x32xbf16> to vector<16x32xbf16>
      %30 = vector.shape_cast %27 : vector<16x32xbf16> to vector<1x16x32xbf16>
      tpu.vector_store %arg6[%c0_12, %c0_13, %c0_14], %30 {strides = array<i32>} : memref<1x16x128xbf16, #tpu.memory_space<vmem>>, vector<1x16x32xbf16>,
      %31 = vector.extract_strided_slice %6 {offsets = [0, 32], sizes = [16, 32], strides = [1, 1]} : vector<16x128xbf16> to vector<16x32xbf16>
      %32 = vector.extract_strided_slice %8 {offsets = [0, 32], sizes = [16, 32], strides = [1, 1]} : vector<16x128xbf16> to vector<16x32xbf16>
      %cst_15 = arith.constant dense<0.000000e+00> : vector<16x16xf32>
      %33 = tpu.matmul %31, %32, %cst_15 {dimension_numbers = #tpu.dot_dimension_numbers<[1], [1], [0], [0], [0, 0, 1, 0], [], []>} : vector<16x32xbf16>, vector<16x32xbf16>, vector<16x16xf32> -> vector<16x16xf32>
      %cst_16 = arith.constant dense<0xFF800000> : vector<16xf32>
      %34 = vector.multi_reduction <maximumf>, %33, %cst_16 [1] : vector<16x16xf32> to vector<16xf32>
      %35 = vector.shape_cast %34 : vector<16xf32> to vector<16x1xf32>
      %36 = vector.broadcast %35 : vector<16x1xf32> to vector<16x16xf32>
      %37 = arith.subf %33, %36 : vector<16x16xf32>
      %38 = math.exp %37 : vector<16x16xf32>
      %cst_17 = arith.constant dense<0.000000e+00> : vector<16xf32>
      %39 = vector.multi_reduction <add>, %38, %cst_17 [1] : vector<16x16xf32> to vector<16xf32>
      %40 = vector.shape_cast %39 : vector<16xf32> to vector<16x1xf32>
      %41 = tpu.reciprocal %40 {approx = true} : vector<16x1xf32> -> vector<16x1xf32>
      %42 = vector.broadcast %41 : vector<16x1xf32> to vector<16x16xf32>
      %43 = arith.mulf %38, %42 : vector<16x16xf32>
      %44 = arith.truncf %43 : vector<16x16xf32> to vector<16x16xbf16>
      %45 = vector.extract_strided_slice %10 {offsets = [0, 32], sizes = [16, 32], strides = [1, 1]} : vector<16x128xbf16> to vector<16x32xbf16>
      %cst_18 = arith.constant dense<0.000000e+00> : vector<16x32xf32>
      %46 = tpu.matmul %44, %45, %cst_18 {dimension_numbers = #tpu.dot_dimension_numbers<[1], [0], [0], [1], [0, 0, 1, 1], [], []>} : vector<16x16xbf16>, vector<16x32xbf16>, vector<16x32xf32> -> vector<16x32xf32>
      %47 = arith.truncf %46 : vector<16x32xf32> to vector<16x32xbf16>
      %c0_19 = arith.constant 0 : index
      %c0_20 = arith.constant 0 : index
      %c32 = arith.constant 32 : index
      %48 = vector.load %arg6[%c0_19, %c0_20, %c32] : memref<1x16x128xbf16, #tpu.memory_space<vmem>>, vector<1x16x32xbf16>
      %49 = vector.shape_cast %48 : vector<1x16x32xbf16> to vector<16x32xbf16>
      %50 = vector.shape_cast %47 : vector<16x32xbf16> to vector<1x16x32xbf16>
      tpu.vector_store %arg6[%c0_19, %c0_20, %c32], %50 {strides = array<i32>} : memref<1x16x128xbf16, #tpu.memory_space<vmem>>, vector<1x16x32xbf16>,
      %51 = vector.extract_strided_slice %6 {offsets = [0, 64], sizes = [16, 32], strides = [1, 1]} : vector<16x128xbf16> to vector<16x32xbf16>
      %52 = vector.extract_strided_slice %8 {offsets = [0, 64], sizes = [16, 32], strides = [1, 1]} : vector<16x128xbf16> to vector<16x32xbf16>
      %cst_21 = arith.constant dense<0.000000e+00> : vector<16x16xf32>
      %53 = tpu.matmul %51, %52, %cst_21 {dimension_numbers = #tpu.dot_dimension_numbers<[1], [1], [0], [0], [0, 0, 1, 0], [], []>} : vector<16x32xbf16>, vector<16x32xbf16>, vector<16x16xf32> -> vector<16x16xf32>
      %cst_22 = arith.constant dense<0xFF800000> : vector<16xf32>
      %54 = vector.multi_reduction <maximumf>, %53, %cst_22 [1] : vector<16x16xf32> to vector<16xf32>
      %55 = vector.shape_cast %54 : vector<16xf32> to vector<16x1xf32>
      %56 = vector.broadcast %55 : vector<16x1xf32> to vector<16x16xf32>
      %57 = arith.subf %53, %56 : vector<16x16xf32>
      %58 = math.exp %57 : vector<16x16xf32>
      %cst_23 = arith.constant dense<0.000000e+00> : vector<16xf32>
      %59 = vector.multi_reduction <add>, %58, %cst_23 [1] : vector<16x16xf32> to vector<16xf32>
      %60 = vector.shape_cast %59 : vector<16xf32> to vector<16x1xf32>
      %61 = tpu.reciprocal %60 {approx = true} : vector<16x1xf32> -> vector<16x1xf32>
      %62 = vector.broadcast %61 : vector<16x1xf32> to vector<16x16xf32>
      %63 = arith.mulf %58, %62 : vector<16x16xf32>
      %64 = arith.truncf %63 : vector<16x16xf32> to vector<16x16xbf16>
      %65 = vector.extract_strided_slice %10 {offsets = [0, 64], sizes = [16, 32], strides = [1, 1]} : vector<16x128xbf16> to vector<16x32xbf16>
      %cst_24 = arith.constant dense<0.000000e+00> : vector<16x32xf32>
      %66 = tpu.matmul %64, %65, %cst_24 {dimension_numbers = #tpu.dot_dimension_numbers<[1], [0], [0], [1], [0, 0, 1, 1], [], []>} : vector<16x16xbf16>, vector<16x32xbf16>, vector<16x32xf32> -> vector<16x32xf32>
      %67 = arith.truncf %66 : vector<16x32xf32> to vector<16x32xbf16>
      %c0_25 = arith.constant 0 : index
      %c0_26 = arith.constant 0 : index
      %c64 = arith.constant 64 : index
      %68 = vector.load %arg6[%c0_25, %c0_26, %c64] : memref<1x16x128xbf16, #tpu.memory_space<vmem>>, vector<1x16x32xbf16>
      %69 = vector.shape_cast %68 : vector<1x16x32xbf16> to vector<16x32xbf16>
      %70 = vector.shape_cast %67 : vector<16x32xbf16> to vector<1x16x32xbf16>
      tpu.vector_store %arg6[%c0_25, %c0_26, %c64], %70 {strides = array<i32>} : memref<1x16x128xbf16, #tpu.memory_space<vmem>>, vector<1x16x32xbf16>,
      %71 = vector.extract_strided_slice %6 {offsets = [0, 96], sizes = [16, 32], strides = [1, 1]} : vector<16x128xbf16> to vector<16x32xbf16>
      %72 = vector.extract_strided_slice %8 {offsets = [0, 96], sizes = [16, 32], strides = [1, 1]} : vector<16x128xbf16> to vector<16x32xbf16>
      %cst_27 = arith.constant dense<0.000000e+00> : vector<16x16xf32>
      %73 = tpu.matmul %71, %72, %cst_27 {dimension_numbers = #tpu.dot_dimension_numbers<[1], [1], [0], [0], [0, 0, 1, 0], [], []>} : vector<16x32xbf16>, vector<16x32xbf16>, vector<16x16xf32> -> vector<16x16xf32>
      %cst_28 = arith.constant dense<0xFF800000> : vector<16xf32>
      %74 = vector.multi_reduction <maximumf>, %73, %cst_28 [1] : vector<16x16xf32> to vector<16xf32>
      %75 = vector.shape_cast %74 : vector<16xf32> to vector<16x1xf32>
      %76 = vector.broadcast %75 : vector<16x1xf32> to vector<16x16xf32>
      %77 = arith.subf %73, %76 : vector<16x16xf32>
      %78 = math.exp %77 : vector<16x16xf32>
      %cst_29 = arith.constant dense<0.000000e+00> : vector<16xf32>
      %79 = vector.multi_reduction <add>, %78, %cst_29 [1] : vector<16x16xf32> to vector<16xf32>
      %80 = vector.shape_cast %79 : vector<16xf32> to vector<16x1xf32>
      %81 = tpu.reciprocal %80 {approx = true} : vector<16x1xf32> -> vector<16x1xf32>
      %82 = vector.broadcast %81 : vector<16x1xf32> to vector<16x16xf32>
      %83 = arith.mulf %78, %82 : vector<16x16xf32>
      %84 = arith.truncf %83 : vector<16x16xf32> to vector<16x16xbf16>
      %85 = vector.extract_strided_slice %10 {offsets = [0, 96], sizes = [16, 32], strides = [1, 1]} : vector<16x128xbf16> to vector<16x32xbf16>
      %cst_30 = arith.constant dense<0.000000e+00> : vector<16x32xf32>
      %86 = tpu.matmul %84, %85, %cst_30 {dimension_numbers = #tpu.dot_dimension_numbers<[1], [0], [0], [1], [0, 0, 1, 1], [], []>} : vector<16x16xbf16>, vector<16x32xbf16>, vector<16x32xf32> -> vector<16x32xf32>
      %87 = arith.truncf %86 : vector<16x32xf32> to vector<16x32xbf16>
      %c0_31 = arith.constant 0 : index
      %c0_32 = arith.constant 0 : index
      %c96 = arith.constant 96 : index
      %88 = vector.load %arg6[%c0_31, %c0_32, %c96] : memref<1x16x128xbf16, #tpu.memory_space<vmem>>, vector<1x16x32xbf16>
      %89 = vector.shape_cast %88 : vector<1x16x32xbf16> to vector<16x32xbf16>
      %90 = vector.shape_cast %87 : vector<16x32xbf16> to vector<1x16x32xbf16>
      tpu.vector_store %arg6[%c0_31, %c0_32, %c96], %90 {strides = array<i32>} : memref<1x16x128xbf16, #tpu.memory_space<vmem>>, vector<1x16x32xbf16>,
    } else {
    }
    return
  }
  func.func @transform_0(%arg0: i32, %arg1: i32, %arg2: memref<8xi32, #tpu.memory_space<smem>>) -> (i32, i32, i32) {
    %c0_i32 = arith.constant 0 : i32
    %c0_i32_0 = arith.constant 0 : i32
    return %arg0, %arg1, %c0_i32 : i32, i32, i32
  }
  func.func @transform_1(%arg0: i32, %arg1: i32, %arg2: memref<8xi32, #tpu.memory_space<smem>>) -> (i32, i32, i32) {
    %c0_i32 = arith.constant 0 : i32
    %c0_i32_0 = arith.constant 0 : i32
    %c0_i32_1 = arith.constant 0 : i32
    return %arg0, %c0_i32, %c0_i32_0 : i32, i32, i32
  }
  func.func @transform_2(%arg0: i32, %arg1: i32, %arg2: memref<8xi32, #tpu.memory_space<smem>>) -> (i32, i32, i32) {
    %c0_i32 = arith.constant 0 : i32
    %c0_i32_0 = arith.constant 0 : i32
    %c0_i32_1 = arith.constant 0 : i32
    return %arg0, %c0_i32, %c0_i32_0 : i32, i32, i32
  }
  func.func @transform_3(%arg0: i32, %arg1: i32, %arg2: memref<8xi32, #tpu.memory_space<smem>>) -> (i32, i32, i32) {
    %c0_i32 = arith.constant 0 : i32
    %c0_i32_0 = arith.constant 0 : i32
    return %arg0, %arg1, %c0_i32 : i32, i32, i32
  }
}

</mosaic_0001>

<llo_original>
// kernel: vtp_wrapper_forward.4
$region0: #{vtp_wrapper_forward.4}
  #allocation0 [shape = 'u32[]', space=smem, size = 0x4, offset = 0x4, fixed_abs, tag = 'smem constant byte address 0x4 - core index']
  #allocation1 [shape = 'u32[144,128]{1,0:T(1,128)}', space=vmem, size = 0x12000, scoped, tag = 'internal scratch']
  #allocation2 [shape = 'f32[64,128]{1,0:T(8,128)}', space=vmem, size = 0x8000, scoped, tag = 'scratch operand']
  %s0 = inlined_call_operand.hbm [shape: bf16[128,64], index: 0, kind: input, shape index: {}]
  %s1 = inlined_call_operand.hbm [shape: bf16[64,128], index: 1, kind: input, shape index: {}]
  %s2 = inlined_call_operand.hbm [shape: f32[1,128], index: 2, kind: input, shape index: {}]
  %s3 = inlined_call_operand.hbm [shape: f32[16,128], index: 3, kind: input, shape index: {}]
  %s4 = inlined_call_operand.hbm [shape: bf16[128,128], index: 4, kind: output, shape index: {}]
  %s5 = sld [smem:[#allocation0]]
  $region73: #{vtp_wrapper_forward.4} parent=0
    _
  %s7 = ssub.s32 1, %s5
  %s8 = scalar_select 0, %s7, %s5
  $region1: #{vtp_wrapper_forward.4} parent=0
    #allocation3 [shape = 'u8[32768]{0}', space=vmem, size = 0x8000, scoped, tag = 'input window, operand 0']
    #allocation4 [shape = 's32[2]{0}', space=sflag, size = 0x8, scoped, tag = 'scoped memory for vtp_wrapper_forward.4']
    #allocation5 [shape = 's32[2]{0}', space=sflag, size = 0x8, scoped, tag = 'scoped memory for vtp_wrapper_forward.4']
    #allocation6 [shape = 'u8[16384]{0}', space=vmem, size = 0x4000, scoped, tag = 'input window, operand 1, single buffered']
    #allocation7 [shape = 's32[1]{0}', space=sflag, size = 0x4, scoped, tag = 'scoped memory for vtp_wrapper_forward.4']
    #allocation8 [shape = 'u8[512]{0}', space=vmem, size = 0x400, scoped, tag = 'input window, operand 2, single buffered']
    #allocation9 [shape = 'u8[8192]{0}', space=vmem, size = 0x2000, scoped, tag = 'input window, operand 3, single buffered']
    #allocation10 [shape = 's32[1]{0}', space=sflag, size = 0x4, scoped, tag = 'scoped memory for vtp_wrapper_forward.4']
    #allocation11 [shape = 'u8[32768]{0}', space=vmem, size = 0x8000, scoped, tag = 'output window, operand 0']
    %9 = vsyncpa [#allocation4], 0
    %s10 = scalar_lea.sflag [#allocation4], 1
    %11 = vsyncpa %s10, 0
    %12 = vsyncpa [#allocation7], 0
    %13 = vsyncpa [#allocation10], 0
    %14 = vsyncpa [#allocation5], 0
    %s15 = scalar_lea.sflag [#allocation5], 1
    %16 = vsyncpa %s15, 0
    loop: start=0, step=1, limit=4
    $region2: #{vtp_wrapper_forward.4} parent=1 // loop_pre_header
      _
    $region3: #{vtp_wrapper_forward.4} parent=1 // loop_header
      %s18 = sphi 0, %s22
      %p19 = scmp.ge.s32.totalorder %s18, 4
      %s25 = sphi 0, %s44
      %s26 = sphi 0, %s40
      %s27 = sphi 0, %s36
      %s28 = sphi 0, %s25
      %s29 = sphi 0, %s26
      %s30 = sphi 0, %s27
      %s31 = sphi 0, %s28
      %s32 = sphi 0, %s29
      %s33 = sphi 0, %s30
      %s49 = sphi 0, %s51
      %s52 = sphi 0, %s49
      %s53 = sphi 0, %s52
      %s69 = sphi 0, %s53
      %s77 = sphi 0, %s79
      %s80 = sphi 0, %s77
      %s81 = sphi 0, %s80
      %s97 = sphi 0, %s81
      %s103 = sphi 0, %s105
      %s106 = sphi 0, %s103
      %s107 = sphi 0, %s106
      %s123 = sphi 0, %s107
      %s129 = sphi 0, %s131
      %s132 = sphi 0, %s129
      %s133 = sphi 0, %s132
      %s149 = sphi 0, %s133
      %s157 = sphi 0, %s159
      %s160 = sphi 0, %s157
      %s161 = sphi 0, %s160
      %s177 = sphi 0, %s161
    $region4: #{vtp_wrapper_forward.4} parent=1 // loop_header_branch
      %21 = sbr.rel (%p19) target = $region8
    $region5: #{vtp_wrapper_forward.4} parent=1 // loop_body
      %s23 = ssub.s32 %s18, 1
      %s24 = ssub.s32 %s18, 2
      %s34 = sadd.s32 1, %s27
      %p35 = scmp.ge.s32.totalorder %s34, 1
      %s36 = scalar_select %p35, 0, %s34
      %s37 = sadd.s32 1, %s26
      %s38 = scalar_select %p35, %s37, %s26
      %p39 = scmp.ge.s32.totalorder %s38, 1
      %s40 = scalar_select %p39, 0, %s38
      %s41 = sadd.s32 1, %s25
      %s42 = scalar_select %p39, %s41, %s25
      %p43 = scmp.ge.s32.totalorder %s42, 2
      %s44 = scalar_select %p43, 0, %s42
      %s45 = ssub.s32 %s25, %s44
      %s46 = ssub.s32 %s27, %s36
      %s47 = sor.u32 %s45, %s46
      %p48 = scmp.eq.s32.totalorder %s47, 0
      %s50 = sadd.s32 %s49, 1
      %s51 = scalar_select %p48, %s49, %s50
      %p54 = pneg %p48
      %p55 = scmp.eq.s32.totalorder %s18, 1
      %p56 = por %p54, %p55
      %p57 = scmp.ne.s32.totalorder %s49, %s52
      %p58 = scmp.eq.s32.totalorder %s18, 0
      %p59 = por %p57, %p58
      %p60 = scmp.ne.s32.totalorder %s49, %s52
      %p61 = scmp.eq.s32.totalorder %s23, 1
      %p62 = por %p60, %p61
      %p63 = scmp.ne.s32.totalorder %s52, %s53
      %p64 = scmp.eq.s32.totalorder %s23, 0
      %p65 = por %p63, %p64
      %p66 = scmp.ne.s32.totalorder %s52, %s53
      %p67 = scmp.eq.s32.totalorder %s24, 1
      %p68 = por %p66, %p67
      %p70 = scmp.ne.s32.totalorder %s53, %s69
      %p71 = scmp.eq.s32.totalorder %s24, 0
      %p72 = por %p70, %p71
      %s73 = ssub.s32 %s27, %s36
      %s74 = ssub.s32 %s26, %s40
      %s75 = sor.u32 %s73, %s74
      %p76 = scmp.eq.s32.totalorder %s75, 0
      %s78 = sadd.s32 %s77, 1
      %s79 = scalar_select %p76, %s77, %s78
      %p82 = pneg %p76
      %p83 = scmp.eq.s32.totalorder %s18, 1
      %p84 = por %p82, %p83
      %p85 = scmp.ne.s32.totalorder %s77, %s80
      %p86 = scmp.eq.s32.totalorder %s18, 0
      %p87 = por %p85, %p86
      %p88 = scmp.ne.s32.totalorder %s77, %s80
      %p89 = scmp.eq.s32.totalorder %s23, 1
      %p90 = por %p88, %p89
      %p91 = scmp.ne.s32.totalorder %s80, %s81
      %p92 = scmp.eq.s32.totalorder %s23, 0
      %p93 = por %p91, %p92
      %p94 = scmp.ne.s32.totalorder %s80, %s81
      %p95 = scmp.eq.s32.totalorder %s24, 1
      %p96 = por %p94, %p95
      %p98 = scmp.ne.s32.totalorder %s81, %s97
      %p99 = scmp.eq.s32.totalorder %s24, 0
      %p100 = por %p98, %p99
      %s101 = ssub.s32 %s26, %s40
      %p102 = scmp.eq.s32.totalorder %s101, 0
      %s104 = sadd.s32 %s103, 1
      %s105 = scalar_select %p102, %s103, %s104
      %p108 = pneg %p102
      %p109 = scmp.eq.s32.totalorder %s18, 1
      %p110 = por %p108, %p109
      %p111 = scmp.ne.s32.totalorder %s103, %s106
      %p112 = scmp.eq.s32.totalorder %s18, 0
      %p113 = por %p111, %p112
      %p114 = scmp.ne.s32.totalorder %s103, %s106
      %p115 = scmp.eq.s32.totalorder %s23, 1
      %p116 = por %p114, %p115
      %p117 = scmp.ne.s32.totalorder %s106, %s107
      %p118 = scmp.eq.s32.totalorder %s23, 0
      %p119 = por %p117, %p118
      %p120 = scmp.ne.s32.totalorder %s106, %s107
      %p121 = scmp.eq.s32.totalorder %s24, 1
      %p122 = por %p120, %p121
      %p124 = scmp.ne.s32.totalorder %s107, %s123
      %p125 = scmp.eq.s32.totalorder %s24, 0
      %p126 = por %p124, %p125
      %s127 = ssub.s32 %s26, %s40
      %p128 = scmp.eq.s32.totalorder %s127, 0
      %s130 = sadd.s32 %s129, 1
      %s131 = scalar_select %p128, %s129, %s130
      %p134 = pneg %p128
      %p135 = scmp.eq.s32.totalorder %s18, 1
      %p136 = por %p134, %p135
      %p137 = scmp.ne.s32.totalorder %s129, %s132
      %p138 = scmp.eq.s32.totalorder %s18, 0
      %p139 = por %p137, %p138
      %p140 = scmp.ne.s32.totalorder %s129, %s132
      %p141 = scmp.eq.s32.totalorder %s23, 1
      %p142 = por %p140, %p141
      %p143 = scmp.ne.s32.totalorder %s132, %s133
      %p144 = scmp.eq.s32.totalorder %s23, 0
      %p145 = por %p143, %p144
      %p146 = scmp.ne.s32.totalorder %s132, %s133
      %p147 = scmp.eq.s32.totalorder %s24, 1
      %p148 = por %p146, %p147
      %p150 = scmp.ne.s32.totalorder %s133, %s149
      %p151 = scmp.eq.s32.totalorder %s24, 0
      %p152 = por %p150, %p151
      %s153 = ssub.s32 %s25, %s44
      %s154 = ssub.s32 %s26, %s40
      %s155 = sor.u32 %s153, %s154
      %p156 = scmp.eq.s32.totalorder %s155, 0
      %s158 = sadd.s32 %s157, 1
      %s159 = scalar_select %p156, %s157, %s158
      %p162 = pneg %p156
      %p163 = scmp.eq.s32.totalorder %s18, 1
      %p164 = por %p162, %p163
      %p165 = scmp.ne.s32.totalorder %s157, %s160
      %p166 = scmp.eq.s32.totalorder %s18, 0
      %p167 = por %p165, %p166
      %p168 = scmp.ne.s32.totalorder %s157, %s160
      %p169 = scmp.eq.s32.totalorder %s23, 1
      %p170 = por %p168, %p169
      %p171 = scmp.ne.s32.totalorder %s160, %s161
      %p172 = scmp.eq.s32.totalorder %s23, 0
      %p173 = por %p171, %p172
      %p174 = scmp.ne.s32.totalorder %s160, %s161
      %p175 = scmp.eq.s32.totalorder %s24, 1
      %p176 = por %p174, %p175
      %p178 = scmp.ne.s32.totalorder %s161, %s177
      %p179 = scmp.eq.s32.totalorder %s24, 0
      %p180 = por %p178, %p179
      %p181 = scmp.le.s32.totalorder 1, %s18
      %p182 = scmp.lt.s32.totalorder %s18, 3
      %p183 = pnand %p181, %p182
      %p184 = pneg %p183
      // Predicated region
      $region9: #{vtp_wrapper_forward.4} parent=5 // pred_check
        _
      $region10: #{vtp_wrapper_forward.4} parent=5 // pred_check_branch
        %186 = sbr.rel (%p183) target = $region12
      $region11: #{vtp_wrapper_forward.4} parent=5 // pred_region
        %s187 = ssub.s32 %s18, 1
        // Predicated region
        $region13: #{vtp_wrapper_forward.4} parent=11 // pred_check
          %p188 = pneg %p93
        $region14: #{vtp_wrapper_forward.4} parent=11 // pred_check_branch
          %190 = sbr.rel (%p188) target = $region16
        $region15: #{vtp_wrapper_forward.4} parent=11 // pred_region
          %s191 = smul.u32 8, %s30
          %s193 = ssub.s32 512, 512
          %194 = vsyncadd [#allocation7], %s193
          %s195 = sadd.s32 %s29, %s191
          %s196 = smul.addr %s195, 64
          %s197 = scalar_lea.hbm %s1, %s196
          %s198 = sshll.u32 [#allocation6], 4
          %s199 = int_to_ptr.vmem [resolvable:$true] %s198
          %204 = dma.hbm_to_vmem [thread:$0]  %s197, 512, %s199, [#allocation7], 64, 64, 4
        $region16: #{vtp_wrapper_forward.4} parent=11 // pred_fallthru
          _
        // Predicated region
        $region17: #{vtp_wrapper_forward.4} parent=11 // pred_check
          %p205 = pneg %p119
        $region18: #{vtp_wrapper_forward.4} parent=11 // pred_check_branch
          %207 = sbr.rel (%p205) target = $region20
        $region19: #{vtp_wrapper_forward.4} parent=11 // pred_region
          %s209 = ssub.s32 16, 16
          %210 = vsyncadd [#allocation7], %s209
          %s211 = smul.addr %s29, 16
          %s212 = scalar_lea.hbm %s2, %s211
          %s214 = sshll.u32 [#allocation8], 4
          %s215 = int_to_ptr.vmem [resolvable:$true] %s214
          %217 = dma.hbm_to_vmem [thread:$0]  %s212, 16, %s215, [#allocation7]
        $region20: #{vtp_wrapper_forward.4} parent=11 // pred_fallthru
          _
        // Predicated region
        $region21: #{vtp_wrapper_forward.4} parent=11 // pred_check
          %p218 = pneg %p145
        $region22: #{vtp_wrapper_forward.4} parent=11 // pred_check_branch
          %220 = sbr.rel (%p218) target = $region24
        $region23: #{vtp_wrapper_forward.4} parent=11 // pred_region
          %s222 = ssub.s32 256, 256
          %223 = vsyncadd [#allocation10], %s222
          %s224 = smul.addr %s29, 128
          %s225 = scalar_lea.hbm %s3, %s224
          %s226 = sshll.u32 [#allocation9], 4
          %s227 = int_to_ptr.vmem [resolvable:$true] %s226
          %232 = dma.hbm_to_vmem [thread:$0]  %s225, 256, %s227, [#allocation10], 128, 128, 8
        $region24: #{vtp_wrapper_forward.4} parent=11 // pred_fallthru
          _
      $region12: #{vtp_wrapper_forward.4} parent=5 // pred_fallthru
        _
      %p233 = scmp.lt.s32.totalorder %s18, 2
      // Predicated region
      $region25: #{vtp_wrapper_forward.4} parent=5 // pred_check
        %p234 = pneg %p233
      $region26: #{vtp_wrapper_forward.4} parent=5 // pred_check_branch
        %236 = sbr.rel (%p234) target = $region28
      $region27: #{vtp_wrapper_forward.4} parent=5 // pred_region
        // Predicated region
        $region29: #{vtp_wrapper_forward.4} parent=27 // pred_check
          %p237 = pneg %p59
        $region30: #{vtp_wrapper_forward.4} parent=27 // pred_check_branch
          %239 = sbr.rel (%p237) target = $region32
        $region31: #{vtp_wrapper_forward.4} parent=27 // pred_region
          %s240 = sand.u32 %s49, 1
          %s241 = scalar_lea.sflag [#allocation4], %s240
          %s242 = sand.u32 %s49, 1
          %s243 = smul.addr %s242, 32
          %s244 = scalar_lea.vmem [#allocation3], %s243
          %s245 = smul.u32 8, %s25
          %s247 = ssub.s32 512, 512
          %248 = vsyncadd %s241, %s247
          %s249 = sadd.s32 %s27, %s245
          %s250 = smul.addr %s249, 64
          %s251 = scalar_lea.hbm %s0, %s250
          %s252 = sshll.u32 %s244, 4
          %s253 = int_to_ptr.vmem [resolvable:$true] %s252
          %258 = dma.hbm_to_vmem [thread:$0]  %s251, 512, %s253, %s241, 64, 64, 4
        $region32: #{vtp_wrapper_forward.4} parent=27 // pred_fallthru
          _
      $region28: #{vtp_wrapper_forward.4} parent=5 // pred_fallthru
        _
      %p259 = scmp.le.s32.totalorder 1, %s18
      %p260 = scmp.lt.s32.totalorder %s18, 3
      %p261 = pnand %p259, %p260
      %p262 = pneg %p261
      // Predicated region
      $region33: #{vtp_wrapper_forward.4} parent=5 // pred_check
        _
      $region34: #{vtp_wrapper_forward.4} parent=5 // pred_check_branch
        %264 = sbr.rel (%p261) target = $region36
      $region35: #{vtp_wrapper_forward.4} parent=5 // pred_region
        %s265 = ssub.s32 %s18, 1
        %s266 = sand.u32 %s52, 1
        %s267 = scalar_lea.sflag [#allocation4], %s266
        %s268 = sand.u32 %s52, 1
        %s269 = smul.addr %s268, 32
        %s270 = scalar_lea.vmem [#allocation3], %s269
        // Predicated region
        $region37: #{vtp_wrapper_forward.4} parent=35 // pred_check
          %p271 = pneg %p65
        $region38: #{vtp_wrapper_forward.4} parent=35 // pred_check_branch
          %273 = sbr.rel (%p271) target = $region40
        $region39: #{vtp_wrapper_forward.4} parent=35 // pred_region
          %274 = dma.done %s267, 512
        $region40: #{vtp_wrapper_forward.4} parent=35 // pred_fallthru
          _
        // Predicated region
        $region41: #{vtp_wrapper_forward.4} parent=35 // pred_check
          %p275 = pneg %p93
        $region42: #{vtp_wrapper_forward.4} parent=35 // pred_check_branch
          %277 = sbr.rel (%p275) target = $region44
        $region43: #{vtp_wrapper_forward.4} parent=35 // pred_region
          %278 = dma.done [#allocation7], 512
        $region44: #{vtp_wrapper_forward.4} parent=35 // pred_fallthru
          _
        // Predicated region
        $region45: #{vtp_wrapper_forward.4} parent=35 // pred_check
          %p279 = pneg %p119
        $region46: #{vtp_wrapper_forward.4} parent=35 // pred_check_branch
          %281 = sbr.rel (%p279) target = $region48
        $region47: #{vtp_wrapper_forward.4} parent=35 // pred_region
          %282 = dma.done [#allocation7], 16
        $region48: #{vtp_wrapper_forward.4} parent=35 // pred_fallthru
          _
        // Predicated region
        $region49: #{vtp_wrapper_forward.4} parent=35 // pred_check
          %p283 = pneg %p145
        $region50: #{vtp_wrapper_forward.4} parent=35 // pred_check_branch
          %285 = sbr.rel (%p283) target = $region52
        $region51: #{vtp_wrapper_forward.4} parent=35 // pred_region
          %286 = dma.done [#allocation10], 256
        $region52: #{vtp_wrapper_forward.4} parent=35 // pred_fallthru
          _
        %s287 = sand.u32 %s52, 1
        %s288 = scalar_lea.sflag [#allocation4], %s287
        %s289 = sand.u32 %s52, 1
        %s290 = smul.addr %s289, 32
        %s291 = scalar_lea.vmem [#allocation3], %s290
        %p292 = pneg %p65
        %p293 = pneg %p62
        %p294 = pneg %p93
        %p295 = pneg %p90
        %p296 = pneg %p119
        %p297 = pneg %p116
        %p298 = pneg %p145
        %p299 = pneg %p142
        %p300 = pneg %p173
        %p301 = pneg %p170
        %s302 = sand.u32 %s160, 1
        %s303 = scalar_lea.sflag [#allocation5], %s302
        %s304 = sand.u32 %s160, 1
        %s305 = smul.addr %s304, 32
        %s306 = scalar_lea.vmem [#allocation11], %s305
        %s307 = smul.u32 8, %s28
        %s308 = smul.u32 8, %s30
        %s309 = smul.u32 8, %s28
        %p311 = scmp.eq.s32.totalorder %s30, 0
        // Predicated region
        $region53: #{vtp_wrapper_forward.4} parent=35 // pred_check
          %p312 = pneg %p311
        $region54: #{vtp_wrapper_forward.4} parent=35 // pred_check_branch
          %314 = sbr.rel (%p312) target = $region56
        $region55: #{vtp_wrapper_forward.4} parent=35 // pred_region
          %315 = vst [vmem:[#allocation2] sm:$0xff] 0.0
          %316 = vst [vmem:[#allocation2 + $0x8] sm:$0xff] 0.0
          %317 = vst [vmem:[#allocation2 + $0x10] sm:$0xff] 0.0
          %318 = vst [vmem:[#allocation2 + $0x18] sm:$0xff] 0.0
          %319 = vst [vmem:[#allocation2 + $0x20] sm:$0xff] 0.0
          %320 = vst [vmem:[#allocation2 + $0x28] sm:$0xff] 0.0
          %321 = vst [vmem:[#allocation2 + $0x30] sm:$0xff] 0.0
          %322 = vst [vmem:[#allocation2 + $0x38] sm:$0xff] 0.0
        $region56: #{vtp_wrapper_forward.4} parent=35 // pred_fallthru
          _
        %v323 = vld [vmem:[%s270] sm:$0xf]
        %v324 = vld [vmem:[%s270 + $0x4] sm:$0xf]
        %v325 = vld [vmem:[%s270 + $0x8] sm:$0xf]
        %v326 = vld [vmem:[%s270 + $0xc] sm:$0xf]
        %v327 = vld [vmem:[%s270 + $0x10] sm:$0xf]
        %v328 = vld [vmem:[%s270 + $0x14] sm:$0xf]
        %v329 = vld [vmem:[%s270 + $0x18] sm:$0xf]
        %v330 = vld [vmem:[%s270 + $0x1c] sm:$0xf]
        %v331 = vld [vmem:[#allocation2] sm:$0xff]
        %v332 = vld [vmem:[#allocation2 + $0x8] sm:$0xff]
        %v333 = vld [vmem:[#allocation2 + $0x10] sm:$0xff]
        %v334 = vld [vmem:[#allocation2 + $0x18] sm:$0xff]
        %v335 = vld [vmem:[#allocation2 + $0x20] sm:$0xff]
        %v336 = vld [vmem:[#allocation2 + $0x28] sm:$0xff]
        %v337 = vld [vmem:[#allocation2 + $0x30] sm:$0xff]
        %v338 = vld [vmem:[#allocation2 + $0x38] sm:$0xff]
        %v339 = vld [vmem:[#allocation6] sm:$0xf]
        %v340 = vld [vmem:[#allocation6 + $0x4] sm:$0xf]
        %v341 = vld [vmem:[#allocation6 + $0x8] sm:$0xf]
        %v342 = vld [vmem:[#allocation6 + $0xc] sm:$0xf]
        %v343 = vld [vmem:[#allocation6 + $0x10] sm:$0xf]
        %v344 = vld [vmem:[#allocation6 + $0x14] sm:$0xf]
        %v345 = vld [vmem:[#allocation6 + $0x18] sm:$0xf]
        %v346 = vld [vmem:[#allocation6 + $0x1c] sm:$0xf]
        %v355 = vunpack.c.l.b16 %v323
        %v356 = vunpack.c.l.b16 %v324
        %v357 = vunpack.c.l.b16 %v325
        %v358 = vunpack.c.l.b16 %v326
        %v359 = vunpack.c.l.b16 %v327
        %v360 = vunpack.c.l.b16 %v328
        %v361 = vunpack.c.l.b16 %v329
        %v362 = vunpack.c.l.b16 %v330
        %v363 = vpack.c.b16 %v356, %v355
        %v364 = vpack.c.b16 %v358, %v357
        %v365 = vpack.c.b16 %v360, %v359
        %v366 = vpack.c.b16 %v362, %v361
        %v375 = vunpack.c.l.b16 %v339
        %v376 = vunpack.c.l.b16 %v340
        %v377 = vunpack.c.l.b16 %v341
        %v378 = vunpack.c.l.b16 %v342
        %v379 = vunpack.c.l.b16 %v343
        %v380 = vunpack.c.l.b16 %v344
        %v381 = vunpack.c.l.b16 %v345
        %v382 = vunpack.c.l.b16 %v346
        %v383 = vpack.c.b16 %v376, %v375
        %v384 = vpack.c.b16 %v378, %v377
        %v385 = vpack.c.b16 %v380, %v379
        %v386 = vpack.c.b16 %v382, %v381
        %vm391 = vcmask 523264
        %v393 = vsel %vm391, %v363, 0
        %v396 = vsel %vm391, %v364, 0
        %v399 = vsel %vm391, %v365, 0
        %v402 = vsel %vm391, %v366, 0
        %404 = vmatprep.subr.bf16.mxu0 0
        %405 = vmatpush1.bf16.msra.mxu0 %v383
        %406 = vmatprep.subr.bf16.mxu0 0
        %407 = vmatpush1.bf16.msra.mxu0 %v384
        %408 = vmatprep.subr.bf16.mxu0 0
        %409 = vmatpush1.bf16.msra.mxu0 %v385
        %410 = vmatprep.subr.bf16.mxu0 0
        %411 = vmatpush1.bf16.msra.mxu0 %v386
        %412 = vmatprep.subr.bf16.mxu0 0
        %413 = vmatpush1.bf16.msra.mxu0 0
        %414 = vmatprep.subr.bf16.mxu0 0
        %415 = vmatpush1.bf16.msra.mxu0 0
        %416 = vmatprep.subr.bf16.mxu0 0
        %417 = vmatpush1.bf16.msra.mxu0 0
        %418 = vmatprep.subr.bf16.mxu0 0
        %419 = vmatpush1.bf16.msra.mxu0 0
        %420 = vmatprep.subr.bf16.mxu0 0
        %421 = vmatpush1.bf16.msra.mxu0 0
        %422 = vmatprep.subr.bf16.mxu0 0
        %423 = vmatpush1.bf16.msra.mxu0 0
        %424 = vmatprep.subr.bf16.mxu0 0
        %425 = vmatpush1.bf16.msra.mxu0 0
        %426 = vmatprep.subr.bf16.mxu0 0
        %427 = vmatpush1.bf16.msra.mxu0 0
        %428 = vmatprep.subr.bf16.mxu0 0
        %429 = vmatpush1.bf16.msra.mxu0 0
        %430 = vmatprep.subr.bf16.mxu0 0
        %431 = vmatpush1.bf16.msra.mxu0 0
        %432 = vmatprep.subr.bf16.mxu0 0
        %433 = vmatpush1.bf16.msra.mxu0 0
        %434 = vmatprep.subr.bf16.mxu0 0
        %435 = vmatpush1.bf16.msra.mxu0 0
        %436 = vmatprep.mubr.bf16.mxu0 0
        %437 = vmatmul.mubr.bf16.gmra.mrb[0].mxu0 %v393
        %v438 = vpop.f32.mrb[0].mxu0
        %v439 = vadd.f32 0.0, %v438
        %v440 = vpop.f32.mrb[0].mxu0
        %v441 = vpop.f32.mrb[0].mxu0
        %v442 = vadd.f32 0.0, %v441
        %v443 = vpop.f32.mrb[0].mxu0
        %444 = vmatprep.mubr.bf16.mxu0 0
        %445 = vmatmul.mubr.bf16.gmra.mrb[0].mxu0 %v396
        %v446 = vpop.f32.mrb[0].mxu0
        %v447 = vadd.f32 0.0, %v446
        %v448 = vpop.f32.mrb[0].mxu0
        %v449 = vpop.f32.mrb[0].mxu0
        %v450 = vadd.f32 0.0, %v449
        %v451 = vpop.f32.mrb[0].mxu0
        %452 = vmatprep.mubr.bf16.mxu0 0
        %453 = vmatmul.mubr.bf16.gmra.mrb[0].mxu0 %v399
        %v454 = vpop.f32.mrb[0].mxu0
        %v455 = vadd.f32 0.0, %v454
        %v456 = vpop.f32.mrb[0].mxu0
        %v457 = vpop.f32.mrb[0].mxu0
        %v458 = vadd.f32 0.0, %v457
        %v459 = vpop.f32.mrb[0].mxu0
        %460 = vmatprep.mubr.bf16.mxu0 0
        %461 = vmatmul.mubr.bf16.gmra.mrb[0].mxu0 %v402
        %v462 = vpop.f32.mrb[0].mxu0
        %v463 = vadd.f32 0.0, %v462
        %v464 = vpop.f32.mrb[0].mxu0
        %v465 = vpop.f32.mrb[0].mxu0
        %v466 = vadd.f32 0.0, %v465
        %v467 = vpop.f32.mrb[0].mxu0
        %468 = vdwg.mxu0
        %v469 = vadd.f32 %v331, %v439
        %v470 = vadd.f32 %v332, %v442
        %v471 = vadd.f32 %v333, %v447
        %v472 = vadd.f32 %v334, %v450
        %v473 = vadd.f32 %v335, %v455
        %v474 = vadd.f32 %v336, %v458
        %v475 = vadd.f32 %v337, %v463
        %v476 = vadd.f32 %v338, %v466
        %477 = vst [vmem:[#allocation2] sm:$0xff] %v469
        %478 = vst [vmem:[#allocation2 + $0x8] sm:$0xff] %v470
        %479 = vst [vmem:[#allocation2 + $0x10] sm:$0xff] %v471
        %480 = vst [vmem:[#allocation2 + $0x18] sm:$0xff] %v472
        %481 = vst [vmem:[#allocation2 + $0x20] sm:$0xff] %v473
        %482 = vst [vmem:[#allocation2 + $0x28] sm:$0xff] %v474
        %483 = vst [vmem:[#allocation2 + $0x30] sm:$0xff] %v475
        %484 = vst [vmem:[#allocation2 + $0x38] sm:$0xff] %v476
        // Predicated region
        $region57: #{vtp_wrapper_forward.4} parent=35 // pred_check
          %p485 = pneg %p311
        $region58: #{vtp_wrapper_forward.4} parent=35 // pred_check_branch
          %487 = sbr.rel (%p485) target = $region60
        $region59: #{vtp_wrapper_forward.4} parent=35 // pred_region
          %v488 = vld [vmem:[#allocation9] sm:$0xff]
          %v489 = vld [vmem:[#allocation9 + $0x8] sm:$0xff]
          %v490 = vld [vmem:[#allocation2] sm:$0xff]
          %v491 = vld [vmem:[#allocation2 + $0x8] sm:$0xff]
          %v492 = vld [vmem:[#allocation2 + $0x10] sm:$0xff]
          %v493 = vld [vmem:[#allocation2 + $0x18] sm:$0xff]
          %v494 = vld [vmem:[#allocation2 + $0x20] sm:$0xff]
          %v495 = vld [vmem:[#allocation2 + $0x28] sm:$0xff]
          %v496 = vld [vmem:[#allocation2 + $0x30] sm:$0xff]
          %v497 = vld [vmem:[#allocation2 + $0x38] sm:$0xff]
          %v498 = vld [vmem:[#allocation8] sm:$0x1]
          %v500 = vlaneseq
          %v501 = vshrl.u32 %v500, 7
          %v502 = vsub.s32 0, %v501
          %v503 = vrot.slane %v498, %v502
          %v505 = vadd.f32 %v490, %v503
          %v506 = vadd.f32 %v491, %v503
          %v507 = vadd.f32 %v492, %v503
          %v508 = vadd.f32 %v493, %v503
          %v509 = vadd.f32 %v494, %v503
          %v510 = vadd.f32 %v495, %v503
          %v511 = vadd.f32 %v496, %v503
          %v512 = vadd.f32 %v497, %v503
          %v513 = vadd.f32 %v505, %v488
          %v514 = vadd.f32 %v506, %v489
          %v515 = vadd.f32 %v507, %v488
          %v516 = vadd.f32 %v508, %v489
          %v517 = vadd.f32 %v509, %v488
          %v518 = vadd.f32 %v510, %v489
          %v519 = vadd.f32 %v511, %v488
          %v520 = vadd.f32 %v512, %v489
          %v521 = vpack.c.bf16 %v514, %v513
          %v522 = vpack.c.bf16 %v516, %v515
          %v523 = vpack.c.bf16 %v518, %v517
          %v524 = vpack.c.bf16 %v520, %v519
          %v529 = vunpack.c.l.b16 %v521
          %v530 = vunpack.c.h.b16 %v521
          %v531 = vunpack.c.l.b16 %v522
          %v532 = vunpack.c.h.b16 %v522
          %v533 = vunpack.c.l.b16 %v523
          %v534 = vunpack.c.h.b16 %v523
          %v535 = vunpack.c.l.b16 %v524
          %v536 = vunpack.c.h.b16 %v524
          %v537 = vpack.c.b16 %v529, %v529
          %v538 = vpack.c.b16 %v530, %v530
          %v539 = vpack.c.b16 %v531, %v531
          %v540 = vpack.c.b16 %v532, %v532
          %v541 = vpack.c.b16 %v533, %v533
          %v542 = vpack.c.b16 %v534, %v534
          %v543 = vpack.c.b16 %v535, %v535
          %v544 = vpack.c.b16 %v536, %v536
          %553 = vst [vmem:[%s306] sm:$0xf] %v537
          %554 = vst [vmem:[%s306 + $0x4] sm:$0xf] %v538
          %555 = vst [vmem:[%s306 + $0x8] sm:$0xf] %v539
          %556 = vst [vmem:[%s306 + $0xc] sm:$0xf] %v540
          %557 = vst [vmem:[%s306 + $0x10] sm:$0xf] %v541
          %558 = vst [vmem:[%s306 + $0x14] sm:$0xf] %v542
          %559 = vst [vmem:[%s306 + $0x18] sm:$0xf] %v543
          %560 = vst [vmem:[%s306 + $0x1c] sm:$0xf] %v544
        $region60: #{vtp_wrapper_forward.4} parent=35 // pred_fallthru
          _
        %s561 = sand.u32 %s160, 1
        %s562 = scalar_lea.sflag [#allocation5], %s561
        %s563 = sand.u32 %s160, 1
        %s564 = smul.addr %s563, 32
        %s565 = scalar_lea.vmem [#allocation11], %s564
        // Predicated region
        $region61: #{vtp_wrapper_forward.4} parent=35 // pred_check
          %p566 = pneg %p170
        $region62: #{vtp_wrapper_forward.4} parent=35 // pred_check_branch
          %568 = sbr.rel (%p566) target = $region64
        $region63: #{vtp_wrapper_forward.4} parent=35 // pred_region
          %s569 = smul.u32 8, %s28
          %s571 = ssub.s32 512, 512
          %572 = vsyncadd %s562, %s571
          %s573 = sadd.s32 %s29, %s569
          %s574 = smul.addr %s573, 64
          %s575 = scalar_lea.hbm %s4, %s574
          %s576 = sshll.u32 %s565, 4
          %s577 = int_to_ptr.vmem [resolvable:$true] %s576
          %582 = dma.vmem_to_hbm [thread:$0]  %s577, 512, %s575, %s562, 64, 64, 4
        $region64: #{vtp_wrapper_forward.4} parent=35 // pred_fallthru
          _
      $region36: #{vtp_wrapper_forward.4} parent=5 // pred_fallthru
        _
      %p583 = scmp.le.s32.totalorder 2, %s18
      // Predicated region
      $region65: #{vtp_wrapper_forward.4} parent=5 // pred_check
        %p584 = pneg %p583
      $region66: #{vtp_wrapper_forward.4} parent=5 // pred_check_branch
        %586 = sbr.rel (%p584) target = $region68
      $region67: #{vtp_wrapper_forward.4} parent=5 // pred_region
        %s587 = ssub.s32 %s18, 2
        // Predicated region
        $region69: #{vtp_wrapper_forward.4} parent=67 // pred_check
          %p588 = pneg %p176
        $region70: #{vtp_wrapper_forward.4} parent=67 // pred_check_branch
          %590 = sbr.rel (%p588) target = $region72
        $region71: #{vtp_wrapper_forward.4} parent=67 // pred_region
          %s591 = sand.u32 %s161, 1
          %s592 = scalar_lea.sflag [#allocation5], %s591
          %s593 = sand.u32 %s161, 1
          %s594 = smul.addr %s593, 32
          %s595 = scalar_lea.vmem [#allocation11], %s594
          %596 = dma.done %s592, 512
        $region72: #{vtp_wrapper_forward.4} parent=67 // pred_fallthru
          _
      $region68: #{vtp_wrapper_forward.4} parent=5 // pred_fallthru
        _
    $region6: #{vtp_wrapper_forward.4} parent=1 // loop_footer
      %s22 = sadd.s32 1, %s18
    $region7: #{vtp_wrapper_forward.4} parent=1 // loop_footer_branch
      %17 = sbr.rel target = $region3
    $region8: #{vtp_wrapper_forward.4} parent=1 // loop_exit
      _
    %597 = vsyncpa [#allocation4], 1
    %s598 = scalar_lea.sflag [#allocation4], 1
    %599 = vsyncpa %s598, 1
    %600 = vsyncpa [#allocation7], 1
    %601 = vsyncpa [#allocation10], 1
    %602 = vsyncpa [#allocation5], 1
    %s603 = scalar_lea.sflag [#allocation5], 1
    %604 = vsyncpa %s603, 1

// kernel: vtp_wrapper_forward.7
$region0: #{vtp_wrapper_forward.7}
  #allocation0 [shape = 'u32[]', space=smem, size = 0x4, offset = 0x4, fixed_abs, tag = 'smem constant byte address 0x4 - core index']
  #allocation1 [shape = 'u32[144,128]{1,0:T(1,128)}', space=vmem, size = 0x12000, scoped, tag = 'internal scratch']
  #allocation2 [shape = 's32[1]{0}', space=sflag, size = 0x4, scoped, tag = 'scoped memory for vtp_wrapper_forward.7']
  #allocation3 [shape = 'u8[512]{0}', space=smem, size = 0x200, scoped, tag = 'prefetched SMEM operand 0']
  %s0 = inlined_call_operand.hbm [shape: s32[8], index: 0, kind: input, shape index: {}]
  %s1 = inlined_call_operand.hbm [shape: bf16[8,16,128], index: 1, kind: input, shape index: {}]
  %s2 = inlined_call_operand.hbm [shape: bf16[128,128], index: 2, kind: input, shape index: {}]
  %s3 = inlined_call_operand.hbm [shape: f32[1,128], index: 3, kind: input, shape index: {}]
  %s4 = inlined_call_operand.hbm [shape: bf16[8,16,128], index: 4, kind: input, shape index: {}]
  %s5 = inlined_call_operand.hbm [shape: f32[1,128], index: 5, kind: input, shape index: {}]
  %s6 = inlined_call_operand.hbm [shape: f32[8,1,128], index: 6, kind: output, shape index: {}]
  %s7 = sld [smem:[#allocation0]]
  $region81: #{vtp_wrapper_forward.7} parent=0
    _
  %s9 = ssub.s32 1, %s7
  %s10 = scalar_select 0, %s9, %s7
  %12 = dma.hbm_to_smem %s0, 16, [#allocation3], [#allocation2]
  %13 = dma.done [#allocation2], 16
  %14 = sfence
  $region1: #{vtp_wrapper_forward.7} parent=0
    #allocation4 [shape = 'u8[8192]{0}', space=vmem, size = 0x2000, scoped, tag = 'input window, operand 1']
    #allocation5 [shape = 's32[2]{0}', space=sflag, size = 0x8, scoped, tag = 'scoped memory for vtp_wrapper_forward.7']
    #allocation6 [shape = 's32[2]{0}', space=sflag, size = 0x8, scoped, tag = 'scoped memory for vtp_wrapper_forward.7']
    #allocation7 [shape = 'u8[32768]{0}', space=vmem, size = 0x8000, scoped, tag = 'input window, operand 2, single buffered']
    #allocation8 [shape = 's32[1]{0}', space=sflag, size = 0x4, scoped, tag = 'scoped memory for vtp_wrapper_forward.7']
    #allocation9 [shape = 'u8[512]{0}', space=vmem, size = 0x400, scoped, tag = 'input window, operand 3, single buffered']
    #allocation10 [shape = 'u8[8192]{0}', space=vmem, size = 0x2000, scoped, tag = 'input window, operand 4']
    #allocation11 [shape = 's32[2]{0}', space=sflag, size = 0x8, scoped, tag = 'scoped memory for vtp_wrapper_forward.7']
    #allocation12 [shape = 'u8[512]{0}', space=vmem, size = 0x400, scoped, tag = 'input window, operand 5, single buffered']
    #allocation13 [shape = 'u8[1024]{0}', space=vmem, size = 0x400, scoped, tag = 'output window, operand 0']
    %15 = vsyncpa [#allocation5], 0
    %s16 = scalar_lea.sflag [#allocation5], 1
    %17 = vsyncpa %s16, 0
    %18 = vsyncpa [#allocation8], 0
    %19 = vsyncpa [#allocation11], 0
    %s20 = scalar_lea.sflag [#allocation11], 1
    %21 = vsyncpa %s20, 0
    %22 = vsyncpa [#allocation6], 0
    %s23 = scalar_lea.sflag [#allocation6], 1
    %24 = vsyncpa %s23, 0
    loop: start=0, step=1, limit=10
    $region2: #{vtp_wrapper_forward.7} parent=1 // loop_pre_header
      _
    $region3: #{vtp_wrapper_forward.7} parent=1 // loop_header
      %s26 = sphi 0, %s30
      %p27 = scmp.ge.s32.totalorder %s26, 10
      %s36 = sphi 0, %s38
      %s39 = sphi 0, %s36
      %s40 = sphi 0, %s39
      %s56 = sphi 0, %s40
      %s60 = sphi 0, %s60
      %s62 = sphi 0, %s60
      %s63 = sphi 0, %s62
      %s77 = sphi 0, %s63
      %s81 = sphi 0, %s81
      %s83 = sphi 0, %s81
      %s84 = sphi 0, %s83
      %s98 = sphi 0, %s84
      %s104 = sphi 0, %s106
      %s107 = sphi 0, %s104
      %s108 = sphi 0, %s107
      %s124 = sphi 0, %s108
      %s128 = sphi 0, %s128
      %s130 = sphi 0, %s128
      %s131 = sphi 0, %s130
      %s145 = sphi 0, %s131
      %s151 = sphi 0, %s153
      %s154 = sphi 0, %s151
      %s155 = sphi 0, %s154
      %s171 = sphi 0, %s155
    $region4: #{vtp_wrapper_forward.7} parent=1 // loop_header_branch
      %29 = sbr.rel (%p27) target = $region8
    $region5: #{vtp_wrapper_forward.7} parent=1 // loop_body
      %s31 = ssub.s32 %s26, 1
      %s32 = ssub.s32 %s26, 2
      %s33 = sadd.s32 %s26, 1
      %s34 = ssub.s32 %s26, %s33
      %p35 = scmp.eq.s32.totalorder %s34, 0
      %s37 = sadd.s32 %s36, 1
      %s38 = scalar_select %p35, %s36, %s37
      %p41 = pneg %p35
      %p42 = scmp.eq.s32.totalorder %s26, 7
      %p43 = por %p41, %p42
      %p44 = scmp.ne.s32.totalorder %s36, %s39
      %p45 = scmp.eq.s32.totalorder %s26, 0
      %p46 = por %p44, %p45
      %p47 = scmp.ne.s32.totalorder %s36, %s39
      %p48 = scmp.eq.s32.totalorder %s31, 7
      %p49 = por %p47, %p48
      %p50 = scmp.ne.s32.totalorder %s39, %s40
      %p51 = scmp.eq.s32.totalorder %s31, 0
      %p52 = por %p50, %p51
      %p53 = scmp.ne.s32.totalorder %s39, %s40
      %p54 = scmp.eq.s32.totalorder %s32, 7
      %p55 = por %p53, %p54
      %p57 = scmp.ne.s32.totalorder %s40, %s56
      %p58 = scmp.eq.s32.totalorder %s32, 0
      %p59 = por %p57, %p58
      %s61 = sadd.s32 %s60, 1
      %p64 = scmp.eq.s32.totalorder %s26, 7
      %p65 = scmp.ne.s32.totalorder %s60, %s62
      %p66 = scmp.eq.s32.totalorder %s26, 0
      %p67 = por %p65, %p66
      %p68 = scmp.ne.s32.totalorder %s60, %s62
      %p69 = scmp.eq.s32.totalorder %s31, 7
      %p70 = por %p68, %p69
      %p71 = scmp.ne.s32.totalorder %s62, %s63
      %p72 = scmp.eq.s32.totalorder %s31, 0
      %p73 = por %p71, %p72
      %p74 = scmp.ne.s32.totalorder %s62, %s63
      %p75 = scmp.eq.s32.totalorder %s32, 7
      %p76 = por %p74, %p75
      %p78 = scmp.ne.s32.totalorder %s63, %s77
      %p79 = scmp.eq.s32.totalorder %s32, 0
      %p80 = por %p78, %p79
      %s82 = sadd.s32 %s81, 1
      %p85 = scmp.eq.s32.totalorder %s26, 7
      %p86 = scmp.ne.s32.totalorder %s81, %s83
      %p87 = scmp.eq.s32.totalorder %s26, 0
      %p88 = por %p86, %p87
      %p89 = scmp.ne.s32.totalorder %s81, %s83
      %p90 = scmp.eq.s32.totalorder %s31, 7
      %p91 = por %p89, %p90
      %p92 = scmp.ne.s32.totalorder %s83, %s84
      %p93 = scmp.eq.s32.totalorder %s31, 0
      %p94 = por %p92, %p93
      %p95 = scmp.ne.s32.totalorder %s83, %s84
      %p96 = scmp.eq.s32.totalorder %s32, 7
      %p97 = por %p95, %p96
      %p99 = scmp.ne.s32.totalorder %s84, %s98
      %p100 = scmp.eq.s32.totalorder %s32, 0
      %p101 = por %p99, %p100
      %s102 = ssub.s32 %s26, %s33
      %p103 = scmp.eq.s32.totalorder %s102, 0
      %s105 = sadd.s32 %s104, 1
      %s106 = scalar_select %p103, %s104, %s105
      %p109 = pneg %p103
      %p110 = scmp.eq.s32.totalorder %s26, 7
      %p111 = por %p109, %p110
      %p112 = scmp.ne.s32.totalorder %s104, %s107
      %p113 = scmp.eq.s32.totalorder %s26, 0
      %p114 = por %p112, %p113
      %p115 = scmp.ne.s32.totalorder %s104, %s107
      %p116 = scmp.eq.s32.totalorder %s31, 7
      %p117 = por %p115, %p116
      %p118 = scmp.ne.s32.totalorder %s107, %s108
      %p119 = scmp.eq.s32.totalorder %s31, 0
      %p120 = por %p118, %p119
      %p121 = scmp.ne.s32.totalorder %s107, %s108
      %p122 = scmp.eq.s32.totalorder %s32, 7
      %p123 = por %p121, %p122
      %p125 = scmp.ne.s32.totalorder %s108, %s124
      %p126 = scmp.eq.s32.totalorder %s32, 0
      %p127 = por %p125, %p126
      %s129 = sadd.s32 %s128, 1
      %p132 = scmp.eq.s32.totalorder %s26, 7
      %p133 = scmp.ne.s32.totalorder %s128, %s130
      %p134 = scmp.eq.s32.totalorder %s26, 0
      %p135 = por %p133, %p134
      %p136 = scmp.ne.s32.totalorder %s128, %s130
      %p137 = scmp.eq.s32.totalorder %s31, 7
      %p138 = por %p136, %p137
      %p139 = scmp.ne.s32.totalorder %s130, %s131
      %p140 = scmp.eq.s32.totalorder %s31, 0
      %p141 = por %p139, %p140
      %p142 = scmp.ne.s32.totalorder %s130, %s131
      %p143 = scmp.eq.s32.totalorder %s32, 7
      %p144 = por %p142, %p143
      %p146 = scmp.ne.s32.totalorder %s131, %s145
      %p147 = scmp.eq.s32.totalorder %s32, 0
      %p148 = por %p146, %p147
      %s149 = ssub.s32 %s26, %s33
      %p150 = scmp.eq.s32.totalorder %s149, 0
      %s152 = sadd.s32 %s151, 1
      %s153 = scalar_select %p150, %s151, %s152
      %p156 = pneg %p150
      %p157 = scmp.eq.s32.totalorder %s26, 7
      %p158 = por %p156, %p157
      %p159 = scmp.ne.s32.totalorder %s151, %s154
      %p160 = scmp.eq.s32.totalorder %s26, 0
      %p161 = por %p159, %p160
      %p162 = scmp.ne.s32.totalorder %s151, %s154
      %p163 = scmp.eq.s32.totalorder %s31, 7
      %p164 = por %p162, %p163
      %p165 = scmp.ne.s32.totalorder %s154, %s155
      %p166 = scmp.eq.s32.totalorder %s31, 0
      %p167 = por %p165, %p166
      %p168 = scmp.ne.s32.totalorder %s154, %s155
      %p169 = scmp.eq.s32.totalorder %s32, 7
      %p170 = por %p168, %p169
      %p172 = scmp.ne.s32.totalorder %s155, %s171
      %p173 = scmp.eq.s32.totalorder %s32, 0
      %p174 = por %p172, %p173
      %p175 = scmp.le.s32.totalorder 1, %s26
      %p176 = scmp.lt.s32.totalorder %s26, 9
      %p177 = pnand %p175, %p176
      %p178 = pneg %p177
      // Predicated region
      $region9: #{vtp_wrapper_forward.7} parent=5 // pred_check
        _
      $region10: #{vtp_wrapper_forward.7} parent=5 // pred_check_branch
        %180 = sbr.rel (%p177) target = $region12
      $region11: #{vtp_wrapper_forward.7} parent=5 // pred_region
        %s181 = ssub.s32 %s26, 1
        // Predicated region
        $region13: #{vtp_wrapper_forward.7} parent=11 // pred_check
          %p182 = pneg %p73
        $region14: #{vtp_wrapper_forward.7} parent=11 // pred_check_branch
          %184 = sbr.rel (%p182) target = $region16
        $region15: #{vtp_wrapper_forward.7} parent=11 // pred_region
          %s186 = ssub.s32 1024, 1024
          %187 = vsyncadd [#allocation8], %s186
          %s188 = sshll.u32 [#allocation7], 4
          %s189 = int_to_ptr.vmem [resolvable:$true] %s188
          %194 = dma.hbm_to_vmem [thread:$0]  %s2, 1024, %s189, [#allocation8], 64, 64, 4
        $region16: #{vtp_wrapper_forward.7} parent=11 // pred_fallthru
          _
        // Predicated region
        $region17: #{vtp_wrapper_forward.7} parent=11 // pred_check
          %p195 = pneg %p94
        $region18: #{vtp_wrapper_forward.7} parent=11 // pred_check_branch
          %197 = sbr.rel (%p195) target = $region20
        $region19: #{vtp_wrapper_forward.7} parent=11 // pred_region
          %s199 = ssub.s32 16, 16
          %200 = vsyncadd [#allocation8], %s199
          %s202 = sshll.u32 [#allocation9], 4
          %s203 = int_to_ptr.vmem [resolvable:$true] %s202
          %205 = dma.hbm_to_vmem [thread:$0]  %s3, 16, %s203, [#allocation8]
        $region20: #{vtp_wrapper_forward.7} parent=11 // pred_fallthru
          _
        // Predicated region
        $region21: #{vtp_wrapper_forward.7} parent=11 // pred_check
          %p206 = pneg %p141
        $region22: #{vtp_wrapper_forward.7} parent=11 // pred_check_branch
          %208 = sbr.rel (%p206) target = $region24
        $region23: #{vtp_wrapper_forward.7} parent=11 // pred_region
          %s210 = ssub.s32 16, 16
          %211 = vsyncadd [#allocation11], %s210
          %s213 = sshll.u32 [#allocation12], 4
          %s214 = int_to_ptr.vmem [resolvable:$true] %s213
          %216 = dma.hbm_to_vmem [thread:$0]  %s5, 16, %s214, [#allocation11]
        $region24: #{vtp_wrapper_forward.7} parent=11 // pred_fallthru
          _
      $region12: #{vtp_wrapper_forward.7} parent=5 // pred_fallthru
        _
      %p217 = scmp.lt.s32.totalorder %s26, 8
      // Predicated region
      $region25: #{vtp_wrapper_forward.7} parent=5 // pred_check
        %p218 = pneg %p217
      $region26: #{vtp_wrapper_forward.7} parent=5 // pred_check_branch
        %220 = sbr.rel (%p218) target = $region28
      $region27: #{vtp_wrapper_forward.7} parent=5 // pred_region
        // Predicated region
        $region29: #{vtp_wrapper_forward.7} parent=27 // pred_check
          %p221 = pneg %p46
        $region30: #{vtp_wrapper_forward.7} parent=27 // pred_check_branch
          %223 = sbr.rel (%p221) target = $region32
        $region31: #{vtp_wrapper_forward.7} parent=27 // pred_region
          %s224 = sand.u32 %s36, 1
          %s225 = scalar_lea.sflag [#allocation5], %s224
          %s226 = sand.u32 %s36, 1
          %s227 = smul.addr %s226, 8
          %s228 = scalar_lea.vmem [#allocation4], %s227
          %s230 = ssub.s32 128, 128
          %231 = vsyncadd %s225, %s230
          %s232 = smul.addr %s26, 2
          %s233 = smul.addr %s232, 64
          %s234 = scalar_lea.hbm %s1, %s233
          %s235 = sshll.u32 %s228, 4
          %s236 = int_to_ptr.vmem [resolvable:$true] %s235
          %241 = dma.hbm_to_vmem [thread:$0]  %s234, 128, %s236, %s225, 64, 64, 4
        $region32: #{vtp_wrapper_forward.7} parent=27 // pred_fallthru
          _
        // Predicated region
        $region33: #{vtp_wrapper_forward.7} parent=27 // pred_check
          %p242 = pneg %p114
        $region34: #{vtp_wrapper_forward.7} parent=27 // pred_check_branch
          %244 = sbr.rel (%p242) target = $region36
        $region35: #{vtp_wrapper_forward.7} parent=27 // pred_region
          %s245 = sand.u32 %s26, 1
          %s246 = scalar_lea.sflag [#allocation11], %s245
          %s247 = sand.u32 %s104, 1
          %s248 = smul.addr %s247, 8
          %s249 = scalar_lea.vmem [#allocation10], %s248
          %s251 = ssub.s32 128, 128
          %252 = vsyncadd %s246, %s251
          %s253 = smul.addr %s26, 2
          %s254 = smul.addr %s253, 64
          %s255 = scalar_lea.hbm %s4, %s254
          %s256 = sshll.u32 %s249, 4
          %s257 = int_to_ptr.vmem [resolvable:$true] %s256
          %262 = dma.hbm_to_vmem [thread:$0]  %s255, 128, %s257, %s246, 64, 64, 4
        $region36: #{vtp_wrapper_forward.7} parent=27 // pred_fallthru
          _
      $region28: #{vtp_wrapper_forward.7} parent=5 // pred_fallthru
        _
      %p263 = scmp.le.s32.totalorder 1, %s26
      %p264 = scmp.lt.s32.totalorder %s26, 9
      %p265 = pnand %p263, %p264
      %p266 = pneg %p265
      // Predicated region
      $region37: #{vtp_wrapper_forward.7} parent=5 // pred_check
        _
      $region38: #{vtp_wrapper_forward.7} parent=5 // pred_check_branch
        %268 = sbr.rel (%p265) target = $region40
      $region39: #{vtp_wrapper_forward.7} parent=5 // pred_region
        %s269 = ssub.s32 %s26, 1
        %s270 = sand.u32 %s39, 1
        %s271 = scalar_lea.sflag [#allocation5], %s270
        %s272 = sand.u32 %s39, 1
        %s273 = smul.addr %s272, 8
        %s274 = scalar_lea.vmem [#allocation4], %s273
        // Predicated region
        $region41: #{vtp_wrapper_forward.7} parent=39 // pred_check
          %p275 = pneg %p52
        $region42: #{vtp_wrapper_forward.7} parent=39 // pred_check_branch
          %277 = sbr.rel (%p275) target = $region44
        $region43: #{vtp_wrapper_forward.7} parent=39 // pred_region
          %278 = dma.done %s271, 128
        $region44: #{vtp_wrapper_forward.7} parent=39 // pred_fallthru
          _
        // Predicated region
        $region45: #{vtp_wrapper_forward.7} parent=39 // pred_check
          %p279 = pneg %p73
        $region46: #{vtp_wrapper_forward.7} parent=39 // pred_check_branch
          %281 = sbr.rel (%p279) target = $region48
        $region47: #{vtp_wrapper_forward.7} parent=39 // pred_region
          %282 = dma.done [#allocation8], 1024
        $region48: #{vtp_wrapper_forward.7} parent=39 // pred_fallthru
          _
        // Predicated region
        $region49: #{vtp_wrapper_forward.7} parent=39 // pred_check
          %p283 = pneg %p94
        $region50: #{vtp_wrapper_forward.7} parent=39 // pred_check_branch
          %285 = sbr.rel (%p283) target = $region52
        $region51: #{vtp_wrapper_forward.7} parent=39 // pred_region
          %286 = dma.done [#allocation8], 16
        $region52: #{vtp_wrapper_forward.7} parent=39 // pred_fallthru
          _
        %s287 = sand.u32 %s31, 1
        %s288 = scalar_lea.sflag [#allocation11], %s287
        %s289 = sand.u32 %s107, 1
        %s290 = smul.addr %s289, 8
        %s291 = scalar_lea.vmem [#allocation10], %s290
        // Predicated region
        $region53: #{vtp_wrapper_forward.7} parent=39 // pred_check
          %p292 = pneg %p120
        $region54: #{vtp_wrapper_forward.7} parent=39 // pred_check_branch
          %294 = sbr.rel (%p292) target = $region56
        $region55: #{vtp_wrapper_forward.7} parent=39 // pred_region
          %295 = dma.done %s288, 128
        $region56: #{vtp_wrapper_forward.7} parent=39 // pred_fallthru
          _
        // Predicated region
        $region57: #{vtp_wrapper_forward.7} parent=39 // pred_check
          %p296 = pneg %p141
        $region58: #{vtp_wrapper_forward.7} parent=39 // pred_check_branch
          %298 = sbr.rel (%p296) target = $region60
        $region59: #{vtp_wrapper_forward.7} parent=39 // pred_region
          %299 = dma.done [#allocation11], 16
        $region60: #{vtp_wrapper_forward.7} parent=39 // pred_fallthru
          _
        %s300 = sand.u32 %s39, 1
        %s301 = scalar_lea.sflag [#allocation5], %s300
        %s302 = sand.u32 %s39, 1
        %s303 = smul.addr %s302, 8
        %s304 = scalar_lea.vmem [#allocation4], %s303
        %p305 = pneg %p52
        %p306 = pneg %p49
        %p307 = pneg %p73
        %p308 = pneg %p70
        %p309 = pneg %p94
        %p310 = pneg %p91
        %s311 = sand.u32 %s31, 1
        %s312 = scalar_lea.sflag [#allocation11], %s311
        %s313 = sand.u32 %s107, 1
        %s314 = smul.addr %s313, 8
        %s315 = scalar_lea.vmem [#allocation10], %s314
        %p316 = pneg %p120
        %p317 = pneg %p117
        %p318 = pneg %p141
        %p319 = pneg %p138
        %p320 = pneg %p167
        %p321 = pneg %p164
        %s322 = sand.u32 %s154, 1
        %s323 = scalar_lea.sflag [#allocation6], %s322
        %s324 = sand.u32 %s154, 1
        %s325 = scalar_lea.vmem [#allocation13], %s324
        %s327 = sld [smem:[#allocation3 + %s31]]
        %p328 = scmp.gt.s32.totalorder %s327, 0
        // Predicated region
        $region61: #{vtp_wrapper_forward.7} parent=39 // pred_check
          %p329 = pneg %p328
        $region62: #{vtp_wrapper_forward.7} parent=39 // pred_check_branch
          %331 = sbr.rel (%p329) target = $region64
        $region63: #{vtp_wrapper_forward.7} parent=39 // pred_region
          %v332 = vld [vmem:[%s274] sm:$0xf]
          %v333 = vld [vmem:[%s274 + $0x4] sm:$0xf]
          %v334 = vld [vmem:[#allocation7] sm:$0xf]
          %v335 = vld [vmem:[#allocation7 + $0x4] sm:$0xf]
          %v336 = vld [vmem:[#allocation7 + $0x8] sm:$0xf]
          %v337 = vld [vmem:[#allocation7 + $0xc] sm:$0xf]
          %v338 = vld [vmem:[#allocation7 + $0x10] sm:$0xf]
          %v339 = vld [vmem:[#allocation7 + $0x14] sm:$0xf]
          %v340 = vld [vmem:[#allocation7 + $0x18] sm:$0xf]
          %v341 = vld [vmem:[#allocation7 + $0x1c] sm:$0xf]
          %v342 = vld [vmem:[#allocation7 + $0x20] sm:$0xf]
          %v343 = vld [vmem:[#allocation7 + $0x24] sm:$0xf]
          %v344 = vld [vmem:[#allocation7 + $0x28] sm:$0xf]
          %v345 = vld [vmem:[#allocation7 + $0x2c] sm:$0xf]
          %v346 = vld [vmem:[#allocation7 + $0x30] sm:$0xf]
          %v347 = vld [vmem:[#allocation7 + $0x34] sm:$0xf]
          %v348 = vld [vmem:[#allocation7 + $0x38] sm:$0xf]
          %v349 = vld [vmem:[#allocation7 + $0x3c] sm:$0xf]
          %v350 = vld [vmem:[#allocation9] sm:$0x1]
          %v352 = vlaneseq
          %v353 = vshrl.u32 %v352, 7
          %v354 = vsub.s32 0, %v353
          %v355 = vrot.slane %v350, %v354
          %v359 = vunpack.c.l.b16 %v332
          %v360 = vunpack.c.l.b16 %v333
          %v361 = vpack.c.b16 %v360, %v359
          %v379 = vunpack.c.l.b16 %v334
          %v380 = vunpack.c.l.b16 %v335
          %v381 = vunpack.c.l.b16 %v336
          %v382 = vunpack.c.l.b16 %v337
          %v383 = vunpack.c.l.b16 %v338
          %v384 = vunpack.c.l.b16 %v339
          %v385 = vunpack.c.l.b16 %v340
          %v386 = vunpack.c.l.b16 %v341
          %v387 = vunpack.c.l.b16 %v342
          %v388 = vunpack.c.l.b16 %v343
          %v389 = vunpack.c.l.b16 %v344
          %v390 = vunpack.c.l.b16 %v345
          %v391 = vunpack.c.l.b16 %v346
          %v392 = vunpack.c.l.b16 %v347
          %v393 = vunpack.c.l.b16 %v348
          %v394 = vunpack.c.l.b16 %v349
          %v395 = vpack.c.b16 %v380, %v379
          %v396 = vpack.c.b16 %v382, %v381
          %v397 = vpack.c.b16 %v384, %v383
          %v398 = vpack.c.b16 %v386, %v385
          %v399 = vpack.c.b16 %v388, %v387
          %v400 = vpack.c.b16 %v390, %v389
          %v401 = vpack.c.b16 %v392, %v391
          %v402 = vpack.c.b16 %v394, %v393
          %411 = vmatprep.subr.bf16.mxu0 0
          %412 = vmatpush1.bf16.msra.mxu0 %v395
          %413 = vmatprep.subr.bf16.mxu0 0
          %414 = vmatpush1.bf16.msra.mxu0 %v396
          %415 = vmatprep.subr.bf16.mxu0 0
          %416 = vmatpush1.bf16.msra.mxu0 %v397
          %417 = vmatprep.subr.bf16.mxu0 0
          %418 = vmatpush1.bf16.msra.mxu0 %v398
          %419 = vmatprep.subr.bf16.mxu0 0
          %420 = vmatpush1.bf16.msra.mxu0 %v399
          %421 = vmatprep.subr.bf16.mxu0 0
          %422 = vmatpush1.bf16.msra.mxu0 %v400
          %423 = vmatprep.subr.bf16.mxu0 0
          %424 = vmatpush1.bf16.msra.mxu0 %v401
          %425 = vmatprep.subr.bf16.mxu0 0
          %426 = vmatpush1.bf16.msra.mxu0 %v402
          %427 = vmatprep.subr.bf16.mxu0 0
          %428 = vmatpush1.bf16.msra.mxu0 0
          %429 = vmatprep.subr.bf16.mxu0 0
          %430 = vmatpush1.bf16.msra.mxu0 0
          %431 = vmatprep.subr.bf16.mxu0 0
          %432 = vmatpush1.bf16.msra.mxu0 0
          %433 = vmatprep.subr.bf16.mxu0 0
          %434 = vmatpush1.bf16.msra.mxu0 0
          %435 = vmatprep.subr.bf16.mxu0 0
          %436 = vmatpush1.bf16.msra.mxu0 0
          %437 = vmatprep.subr.bf16.mxu0 0
          %438 = vmatpush1.bf16.msra.mxu0 0
          %439 = vmatprep.subr.bf16.mxu0 0
          %440 = vmatpush1.bf16.msra.mxu0 0
          %441 = vmatprep.subr.bf16.mxu0 0
          %442 = vmatpush1.bf16.msra.mxu0 0
          %443 = vmatprep.mubr.bf16.mxu0 0
          %444 = vmatmul.mubr.bf16.gmra.mrb[0].mxu0 %v361
          %v445 = vpop.f32.mrb[0].mxu0
          %v446 = vadd.f32 %v355, %v445
          %v447 = vpop.f32.mrb[0].mxu0
          %v448 = vpop.f32.mrb[0].mxu0
          %v449 = vadd.f32 %v355, %v448
          %v450 = vpop.f32.mrb[0].mxu0
          %451 = vdwg.mxu0
          %v452 = vld [vmem:[%s291] sm:$0xf]
          %v453 = vld [vmem:[%s291 + $0x4] sm:$0xf]
          %v454 = vunpack.c.l.bf16 %v452
          %v455 = vunpack.c.l.bf16 %v453
          %v456 = vadd.f32 %v446, %v454
          %v457 = vadd.f32 %v449, %v455
          %v458 = vld [vmem:[#allocation12] sm:$0x1]
          %v460 = vlaneseq
          %v461 = vshrl.u32 %v460, 7
          %v462 = vsub.s32 0, %v461
          %v463 = vrot.slane %v458, %v462
          %v465 = vmul.f32 %v456, %v463
          %v466 = vmul.f32 %v457, %v463
          %467 = vadd.xlane.f32.xlu0 %v465
          %v468 = vpop.xlane.xlu0 %467
          %469 = vadd.xlane.f32.xlu0 %v466
          %v470 = vpop.xlane.xlu0 %469
          %v471 = vmax.f32 %v468, %v470
          %v472 = vrot.slane %v471, 4
          %v473 = vmax.f32 %v471, %v472
          %v474 = vrot.slane %v473, 2
          %v475 = vmax.f32 %v473, %v474
          %v476 = vrot.slane %v475, 1
          %v477 = vmax.f32 %v475, %v476
          %v478 = vsub.f32 %v468, %v477
          %v479 = vsub.f32 %v470, %v477
          %v480 = vmul.f32 %v478, 1.442695
          %v481 = vpow.pop %v480
          %v482 = vmul.f32 %v479, 1.442695
          %v483 = vpow.pop %v482
          %v484 = vadd.f32 %v481, %v483
          %v485 = vrot.slane %v484, 4
          %v486 = vadd.f32 %v484, %v485
          %v487 = vrot.slane %v486, 2
          %v488 = vadd.f32 %v486, %v487
          %v489 = vrot.slane %v488, 1
          %v490 = vadd.f32 %v488, %v489
          %v491 = vrcp.pop %v490
          %v492 = vmul.f32 %v481, %v491
          %v493 = vmul.f32 %v483, %v491
          %494 = vxpose.xlu0.b32.start [1/16] %v492, 128
          %495 = vxpose.xlu0.b32.cont [2/16] %v493, 128
          %496 = vxpose.xlu0.b32.cont [3/16] 0.0, 128
          %497 = vxpose.xlu0.b32.cont [4/16] 0.0, 128
          %498 = vxpose.xlu0.b32.cont [5/16] 0.0, 128
          %499 = vxpose.xlu0.b32.cont [6/16] 0.0, 128
          %500 = vxpose.xlu0.b32.cont [7/16] 0.0, 128
          %501 = vxpose.xlu0.b32.cont [8/16] 0.0, 128
          %502 = vxpose.xlu0.b32.cont [9/16] 0.0, 128
          %503 = vxpose.xlu0.b32.cont [10/16] 0.0, 128
          %504 = vxpose.xlu0.b32.cont [11/16] 0.0, 128
          %505 = vxpose.xlu0.b32.cont [12/16] 0.0, 128
          %506 = vxpose.xlu0.b32.cont [13/16] 0.0, 128
          %507 = vxpose.xlu0.b32.cont [14/16] 0.0, 128
          %508 = vxpose.xlu0.b32.cont [15/16] 0.0, 128
          %509 = vxpose.xlu0.b32.end [16/16] 0.0, 128
          %v510 = vpop.trf.xlu0
          %v511 = vpop.trf.xlu0
          %v512 = vpop.trf.xlu0
          %v513 = vpop.trf.xlu0
          %v514 = vpop.trf.xlu0
          %v515 = vpop.trf.xlu0
          %v516 = vpop.trf.xlu0
          %v517 = vpop.trf.xlu0
          %v518 = vpop.trf.xlu0
          %v519 = vpop.trf.xlu0
          %v520 = vpop.trf.xlu0
          %v521 = vpop.trf.xlu0
          %v522 = vpop.trf.xlu0
          %v523 = vpop.trf.xlu0
          %v524 = vpop.trf.xlu0
          %v525 = vpop.trf.xlu0
          %vm526 = vcmask 130048
          %v528 = vsel %vm526, %v510, 0
          %530 = vmatprep.subr.mxu0 0.0
          %531 = vmatpush1.msra.mxu0 %v456
          %532 = vmatprep.subr.mxu0 0.0
          %533 = vmatpush1.msra.mxu0 %v457
          %534 = vmatprep.subr.mxu0 0.0
          %535 = vmatpush1.msra.mxu0 0.0
          %536 = vmatprep.subr.mxu0 0.0
          %537 = vmatpush1.msra.mxu0 0.0
          %538 = vmatprep.subr.mxu0 0.0
          %539 = vmatpush1.msra.mxu0 0.0
          %540 = vmatprep.subr.mxu0 0.0
          %541 = vmatpush1.msra.mxu0 0.0
          %542 = vmatprep.subr.mxu0 0.0
          %543 = vmatpush1.msra.mxu0 0.0
          %544 = vmatprep.subr.mxu0 0.0
          %545 = vmatpush1.msra.mxu0 0.0
          %546 = vmatprep.subr.mxu0 0.0
          %547 = vmatpush1.msra.mxu0 0.0
          %548 = vmatprep.subr.mxu0 0.0
          %549 = vmatpush1.msra.mxu0 0.0
          %550 = vmatprep.subr.mxu0 0.0
          %551 = vmatpush1.msra.mxu0 0.0
          %552 = vmatprep.subr.mxu0 0.0
          %553 = vmatpush1.msra.mxu0 0.0
          %554 = vmatprep.subr.mxu0 0.0
          %555 = vmatpush1.msra.mxu0 0.0
          %556 = vmatprep.subr.mxu0 0.0
          %557 = vmatpush1.msra.mxu0 0.0
          %558 = vmatprep.subr.mxu0 0.0
          %559 = vmatpush1.msra.mxu0 0.0
          %560 = vmatprep.subr.mxu0 0.0
          %561 = vmatpush1.msra.mxu0 0.0
          %562 = vmatprep.subr.mxu0 0.0
          %563 = vmatpush1.msra.mxu0 0.0
          %564 = vmatprep.subr.mxu0 0.0
          %565 = vmatpush1.msra.mxu0 0.0
          %566 = vmatprep.subr.mxu0 0.0
          %567 = vmatpush1.msra.mxu0 0.0
          %568 = vmatprep.subr.mxu0 0.0
          %569 = vmatpush1.msra.mxu0 0.0
          %570 = vmatprep.subr.mxu0 0.0
          %571 = vmatpush1.msra.mxu0 0.0
          %572 = vmatprep.subr.mxu0 0.0
          %573 = vmatpush1.msra.mxu0 0.0
          %574 = vmatprep.subr.mxu0 0.0
          %575 = vmatpush1.msra.mxu0 0.0
          %576 = vmatprep.subr.mxu0 0.0
          %577 = vmatpush1.msra.mxu0 0.0
          %578 = vmatprep.subr.mxu0 0.0
          %579 = vmatpush1.msra.mxu0 0.0
          %580 = vmatprep.subr.mxu0 0.0
          %581 = vmatpush1.msra.mxu0 0.0
          %582 = vmatprep.subr.mxu0 0.0
          %583 = vmatpush1.msra.mxu0 0.0
          %584 = vmatprep.subr.mxu0 0.0
          %585 = vmatpush1.msra.mxu0 0.0
          %586 = vmatprep.subr.mxu0 0.0
          %587 = vmatpush1.msra.mxu0 0.0
          %588 = vmatprep.subr.mxu0 0.0
          %589 = vmatpush1.msra.mxu0 0.0
          %590 = vmatprep.subr.mxu0 0.0
          %591 = vmatpush1.msra.mxu0 0.0
          %592 = vmatprep.subr.mxu0 0.0
          %593 = vmatpush1.msra.mxu0 0.0
          %594 = vmatprep.mubr.f32.mxu0 0.0
          %595 = vmatmul.mubr.f32.gmra.mrb[0].mxu0 %v528
          %v596 = vpop.f32.mrb[0].mxu0
          %v597 = vadd.f32 0.0, %v596
          %v598 = vpop.f32.mrb[0].mxu0
          %599 = vdwg.mxu0
          %600 = vst [vmem:[%s325] sm:$0x1] %v597
        $region64: #{vtp_wrapper_forward.7} parent=39 // pred_fallthru
          _
        %p601 = scmp.le.s32.totalorder %s327, 0
        // Predicated region
        $region65: #{vtp_wrapper_forward.7} parent=39 // pred_check
          %p602 = pneg %p601
        $region66: #{vtp_wrapper_forward.7} parent=39 // pred_check_branch
          %604 = sbr.rel (%p602) target = $region68
        $region67: #{vtp_wrapper_forward.7} parent=39 // pred_region
          %605 = vst [vmem:[%s325] sm:$0x1] 0.0
        $region68: #{vtp_wrapper_forward.7} parent=39 // pred_fallthru
          _
        %s606 = sand.u32 %s154, 1
        %s607 = scalar_lea.sflag [#allocation6], %s606
        %s608 = sand.u32 %s154, 1
        %s609 = scalar_lea.vmem [#allocation13], %s608
        // Predicated region
        $region69: #{vtp_wrapper_forward.7} parent=39 // pred_check
          %p610 = pneg %p164
        $region70: #{vtp_wrapper_forward.7} parent=39 // pred_check_branch
          %612 = sbr.rel (%p610) target = $region72
        $region71: #{vtp_wrapper_forward.7} parent=39 // pred_region
          %s614 = ssub.s32 16, 16
          %615 = vsyncadd %s607, %s614
          %s616 = smul.addr %s31, 16
          %s617 = scalar_lea.hbm %s6, %s616
          %s619 = sshll.u32 %s609, 4
          %s620 = int_to_ptr.vmem [resolvable:$true] %s619
          %622 = dma.vmem_to_hbm [thread:$0]  %s620, 16, %s617, %s607
        $region72: #{vtp_wrapper_forward.7} parent=39 // pred_fallthru
          _
      $region40: #{vtp_wrapper_forward.7} parent=5 // pred_fallthru
        _
      %p623 = scmp.le.s32.totalorder 2, %s26
      // Predicated region
      $region73: #{vtp_wrapper_forward.7} parent=5 // pred_check
        %p624 = pneg %p623
      $region74: #{vtp_wrapper_forward.7} parent=5 // pred_check_branch
        %626 = sbr.rel (%p624) target = $region76
      $region75: #{vtp_wrapper_forward.7} parent=5 // pred_region
        %s627 = ssub.s32 %s26, 2
        // Predicated region
        $region77: #{vtp_wrapper_forward.7} parent=75 // pred_check
          %p628 = pneg %p170
        $region78: #{vtp_wrapper_forward.7} parent=75 // pred_check_branch
          %630 = sbr.rel (%p628) target = $region80
        $region79: #{vtp_wrapper_forward.7} parent=75 // pred_region
          %s631 = sand.u32 %s155, 1
          %s632 = scalar_lea.sflag [#allocation6], %s631
          %s633 = sand.u32 %s155, 1
          %s634 = scalar_lea.vmem [#allocation13], %s633
          %635 = dma.done %s632, 16
        $region80: #{vtp_wrapper_forward.7} parent=75 // pred_fallthru
          _
      $region76: #{vtp_wrapper_forward.7} parent=5 // pred_fallthru
        _
    $region6: #{vtp_wrapper_forward.7} parent=1 // loop_footer
      %s30 = sadd.s32 1, %s26
    $region7: #{vtp_wrapper_forward.7} parent=1 // loop_footer_branch
      %25 = sbr.rel target = $region3
    $region8: #{vtp_wrapper_forward.7} parent=1 // loop_exit
      _
    %636 = vsyncpa [#allocation5], 1
    %s637 = scalar_lea.sflag [#allocation5], 1
    %638 = vsyncpa %s637, 1
    %639 = vsyncpa [#allocation8], 1
    %640 = vsyncpa [#allocation11], 1
    %s641 = scalar_lea.sflag [#allocation11], 1
    %642 = vsyncpa %s641, 1
    %643 = vsyncpa [#allocation6], 1
    %s644 = scalar_lea.sflag [#allocation6], 1
    %645 = vsyncpa %s644, 1

// kernel: vtp_wrapper_forward.6
$region0: #{vtp_wrapper_forward.6}
  #allocation0 [shape = 'u32[]', space=smem, size = 0x4, offset = 0x4, fixed_abs, tag = 'smem constant byte address 0x4 - core index']
  #allocation1 [shape = 'u32[144,128]{1,0:T(1,128)}', space=vmem, size = 0x12000, scoped, tag = 'internal scratch']
  #allocation2 [shape = 's32[1]{0}', space=sflag, size = 0x4, scoped, tag = 'scoped memory for vtp_wrapper_forward.6']
  #allocation3 [shape = 'u8[512]{0}', space=smem, size = 0x200, scoped, tag = 'prefetched SMEM operand 0']
  %s0 = inlined_call_operand.hbm [shape: s32[8], index: 0, kind: input, shape index: {}]
  %s1 = inlined_call_operand.hbm [shape: bf16[8,16,128], index: 1, kind: input, shape index: {}]
  %s2 = inlined_call_operand.hbm [shape: bf16[8,16,128], index: 2, kind: input, shape index: {}]
  %s3 = inlined_call_operand.hbm [shape: bf16[8,16,128], index: 3, kind: input, shape index: {}]
  %s4 = inlined_call_operand.hbm [shape: bf16[8,16,128], index: 4, kind: output, shape index: {}]
  %s5 = sld [smem:[#allocation0]]
  $region61: #{vtp_wrapper_forward.6} parent=0
    _
  %s7 = ssub.s32 1, %s5
  %s8 = scalar_select 0, %s7, %s5
  %10 = dma.hbm_to_smem %s0, 16, [#allocation3], [#allocation2]
  %11 = dma.done [#allocation2], 16
  %12 = sfence
  $region1: #{vtp_wrapper_forward.6} parent=0
    #allocation4 [shape = 'u8[8192]{0}', space=vmem, size = 0x2000, scoped, tag = 'input window, operand 1']
    #allocation5 [shape = 's32[2]{0}', space=sflag, size = 0x8, scoped, tag = 'scoped memory for vtp_wrapper_forward.6']
    #allocation6 [shape = 's32[2]{0}', space=sflag, size = 0x8, scoped, tag = 'scoped memory for vtp_wrapper_forward.6']
    #allocation7 [shape = 'u8[8192]{0}', space=vmem, size = 0x2000, scoped, tag = 'input window, operand 2']
    #allocation8 [shape = 's32[2]{0}', space=sflag, size = 0x8, scoped, tag = 'scoped memory for vtp_wrapper_forward.6']
    #allocation9 [shape = 'u8[8192]{0}', space=vmem, size = 0x2000, scoped, tag = 'input window, operand 3']
    #allocation10 [shape = 'u8[8192]{0}', space=vmem, size = 0x2000, scoped, tag = 'output window, operand 0']
    %13 = vsyncpa [#allocation5], 0
    %s14 = scalar_lea.sflag [#allocation5], 1
    %15 = vsyncpa %s14, 0
    %16 = vsyncpa [#allocation8], 0
    %s17 = scalar_lea.sflag [#allocation8], 1
    %18 = vsyncpa %s17, 0
    %19 = vsyncpa [#allocation6], 0
    %s20 = scalar_lea.sflag [#allocation6], 1
    %21 = vsyncpa %s20, 0
    loop: start=0, step=1, limit=10
    $region2: #{vtp_wrapper_forward.6} parent=1 // loop_pre_header
      _
    $region3: #{vtp_wrapper_forward.6} parent=1 // loop_header
      %s23 = sphi 0, %s27
      %p24 = scmp.ge.s32.totalorder %s23, 10
      %s30 = sphi 0, %s42
      %s31 = sphi 0, %s38
      %s32 = sphi 0, %s30
      %s33 = sphi 0, %s31
      %s34 = sphi 0, %s32
      %s35 = sphi 0, %s33
      %s47 = sphi 0, %s49
      %s50 = sphi 0, %s47
      %s51 = sphi 0, %s50
      %s67 = sphi 0, %s51
      %s73 = sphi 0, %s75
      %s76 = sphi 0, %s73
      %s77 = sphi 0, %s76
      %s93 = sphi 0, %s77
      %s99 = sphi 0, %s101
      %s102 = sphi 0, %s99
      %s103 = sphi 0, %s102
      %s119 = sphi 0, %s103
      %s127 = sphi 0, %s129
      %s130 = sphi 0, %s127
      %s131 = sphi 0, %s130
      %s147 = sphi 0, %s131
    $region4: #{vtp_wrapper_forward.6} parent=1 // loop_header_branch
      %26 = sbr.rel (%p24) target = $region8
    $region5: #{vtp_wrapper_forward.6} parent=1 // loop_body
      %s28 = ssub.s32 %s23, 1
      %s29 = ssub.s32 %s23, 2
      %s36 = sadd.s32 1, %s31
      %p37 = scmp.ge.s32.totalorder %s36, 1
      %s38 = scalar_select %p37, 0, %s36
      %s39 = sadd.s32 1, %s30
      %s40 = scalar_select %p37, %s39, %s30
      %p41 = scmp.ge.s32.totalorder %s40, 8
      %s42 = scalar_select %p41, 0, %s40
      %s43 = ssub.s32 %s30, %s42
      %s44 = ssub.s32 %s31, %s38
      %s45 = sor.u32 %s43, %s44
      %p46 = scmp.eq.s32.totalorder %s45, 0
      %s48 = sadd.s32 %s47, 1
      %s49 = scalar_select %p46, %s47, %s48
      %p52 = pneg %p46
      %p53 = scmp.eq.s32.totalorder %s23, 7
      %p54 = por %p52, %p53
      %p55 = scmp.ne.s32.totalorder %s47, %s50
      %p56 = scmp.eq.s32.totalorder %s23, 0
      %p57 = por %p55, %p56
      %p58 = scmp.ne.s32.totalorder %s47, %s50
      %p59 = scmp.eq.s32.totalorder %s28, 7
      %p60 = por %p58, %p59
      %p61 = scmp.ne.s32.totalorder %s50, %s51
      %p62 = scmp.eq.s32.totalorder %s28, 0
      %p63 = por %p61, %p62
      %p64 = scmp.ne.s32.totalorder %s50, %s51
      %p65 = scmp.eq.s32.totalorder %s29, 7
      %p66 = por %p64, %p65
      %p68 = scmp.ne.s32.totalorder %s51, %s67
      %p69 = scmp.eq.s32.totalorder %s29, 0
      %p70 = por %p68, %p69
      %s71 = ssub.s32 %s30, %s42
      %p72 = scmp.eq.s32.totalorder %s71, 0
      %s74 = sadd.s32 %s73, 1
      %s75 = scalar_select %p72, %s73, %s74
      %p78 = pneg %p72
      %p79 = scmp.eq.s32.totalorder %s23, 7
      %p80 = por %p78, %p79
      %p81 = scmp.ne.s32.totalorder %s73, %s76
      %p82 = scmp.eq.s32.totalorder %s23, 0
      %p83 = por %p81, %p82
      %p84 = scmp.ne.s32.totalorder %s73, %s76
      %p85 = scmp.eq.s32.totalorder %s28, 7
      %p86 = por %p84, %p85
      %p87 = scmp.ne.s32.totalorder %s76, %s77
      %p88 = scmp.eq.s32.totalorder %s28, 0
      %p89 = por %p87, %p88
      %p90 = scmp.ne.s32.totalorder %s76, %s77
      %p91 = scmp.eq.s32.totalorder %s29, 7
      %p92 = por %p90, %p91
      %p94 = scmp.ne.s32.totalorder %s77, %s93
      %p95 = scmp.eq.s32.totalorder %s29, 0
      %p96 = por %p94, %p95
      %s97 = ssub.s32 %s30, %s42
      %p98 = scmp.eq.s32.totalorder %s97, 0
      %s100 = sadd.s32 %s99, 1
      %s101 = scalar_select %p98, %s99, %s100
      %p104 = pneg %p98
      %p105 = scmp.eq.s32.totalorder %s23, 7
      %p106 = por %p104, %p105
      %p107 = scmp.ne.s32.totalorder %s99, %s102
      %p108 = scmp.eq.s32.totalorder %s23, 0
      %p109 = por %p107, %p108
      %p110 = scmp.ne.s32.totalorder %s99, %s102
      %p111 = scmp.eq.s32.totalorder %s28, 7
      %p112 = por %p110, %p111
      %p113 = scmp.ne.s32.totalorder %s102, %s103
      %p114 = scmp.eq.s32.totalorder %s28, 0
      %p115 = por %p113, %p114
      %p116 = scmp.ne.s32.totalorder %s102, %s103
      %p117 = scmp.eq.s32.totalorder %s29, 7
      %p118 = por %p116, %p117
      %p120 = scmp.ne.s32.totalorder %s103, %s119
      %p121 = scmp.eq.s32.totalorder %s29, 0
      %p122 = por %p120, %p121
      %s123 = ssub.s32 %s30, %s42
      %s124 = ssub.s32 %s31, %s38
      %s125 = sor.u32 %s123, %s124
      %p126 = scmp.eq.s32.totalorder %s125, 0
      %s128 = sadd.s32 %s127, 1
      %s129 = scalar_select %p126, %s127, %s128
      %p132 = pneg %p126
      %p133 = scmp.eq.s32.totalorder %s23, 7
      %p134 = por %p132, %p133
      %p135 = scmp.ne.s32.totalorder %s127, %s130
      %p136 = scmp.eq.s32.totalorder %s23, 0
      %p137 = por %p135, %p136
      %p138 = scmp.ne.s32.totalorder %s127, %s130
      %p139 = scmp.eq.s32.totalorder %s28, 7
      %p140 = por %p138, %p139
      %p141 = scmp.ne.s32.totalorder %s130, %s131
      %p142 = scmp.eq.s32.totalorder %s28, 0
      %p143 = por %p141, %p142
      %p144 = scmp.ne.s32.totalorder %s130, %s131
      %p145 = scmp.eq.s32.totalorder %s29, 7
      %p146 = por %p144, %p145
      %p148 = scmp.ne.s32.totalorder %s131, %s147
      %p149 = scmp.eq.s32.totalorder %s29, 0
      %p150 = por %p148, %p149
      %p151 = scmp.le.s32.totalorder 1, %s23
      %p152 = scmp.lt.s32.totalorder %s23, 9
      %p153 = pnand %p151, %p152
      %p154 = pneg %p153
      // Predicated region
      $region9: #{vtp_wrapper_forward.6} parent=5 // pred_check
        _
      $region10: #{vtp_wrapper_forward.6} parent=5 // pred_check_branch
        %156 = sbr.rel (%p153) target = $region12
      $region11: #{vtp_wrapper_forward.6} parent=5 // pred_region
        %s157 = ssub.s32 %s23, 1
      $region12: #{vtp_wrapper_forward.6} parent=5 // pred_fallthru
        _
      %p158 = scmp.lt.s32.totalorder %s23, 8
      // Predicated region
      $region13: #{vtp_wrapper_forward.6} parent=5 // pred_check
        %p159 = pneg %p158
      $region14: #{vtp_wrapper_forward.6} parent=5 // pred_check_branch
        %161 = sbr.rel (%p159) target = $region16
      $region15: #{vtp_wrapper_forward.6} parent=5 // pred_region
        // Predicated region
        $region17: #{vtp_wrapper_forward.6} parent=15 // pred_check
          %p162 = pneg %p57
        $region18: #{vtp_wrapper_forward.6} parent=15 // pred_check_branch
          %164 = sbr.rel (%p162) target = $region20
        $region19: #{vtp_wrapper_forward.6} parent=15 // pred_region
          %s165 = sand.u32 %s47, 1
          %s166 = scalar_lea.sflag [#allocation5], %s165
          %s167 = sand.u32 %s47, 1
          %s168 = smul.addr %s167, 8
          %s169 = scalar_lea.vmem [#allocation4], %s168
          %s170 = smul.u32 2, %s31
          %s172 = ssub.s32 128, 128
          %173 = vsyncadd %s166, %s172
          %s174 = smul.addr %s30, 2
          %s175 = sadd.s32 %s170, %s174
          %s176 = smul.addr %s175, 64
          %s177 = scalar_lea.hbm %s1, %s176
          %s178 = sshll.u32 %s169, 4
          %s179 = int_to_ptr.vmem [resolvable:$true] %s178
          %184 = dma.hbm_to_vmem [thread:$0]  %s177, 128, %s179, %s166, 64, 64, 4
        $region20: #{vtp_wrapper_forward.6} parent=15 // pred_fallthru
          _
        // Predicated region
        $region21: #{vtp_wrapper_forward.6} parent=15 // pred_check
          %p185 = pneg %p83
        $region22: #{vtp_wrapper_forward.6} parent=15 // pred_check_branch
          %187 = sbr.rel (%p185) target = $region24
        $region23: #{vtp_wrapper_forward.6} parent=15 // pred_region
          %s188 = sand.u32 %s23, 1
          %s189 = scalar_lea.sflag [#allocation8], %s188
          %s190 = sand.u32 %s73, 1
          %s191 = smul.addr %s190, 8
          %s192 = scalar_lea.vmem [#allocation7], %s191
          %s194 = ssub.s32 128, 128
          %195 = vsyncadd %s189, %s194
          %s196 = smul.addr %s30, 2
          %s197 = smul.addr %s196, 64
          %s198 = scalar_lea.hbm %s2, %s197
          %s199 = sshll.u32 %s192, 4
          %s200 = int_to_ptr.vmem [resolvable:$true] %s199
          %205 = dma.hbm_to_vmem [thread:$0]  %s198, 128, %s200, %s189, 64, 64, 4
        $region24: #{vtp_wrapper_forward.6} parent=15 // pred_fallthru
          _
        // Predicated region
        $region25: #{vtp_wrapper_forward.6} parent=15 // pred_check
          %p206 = pneg %p109
        $region26: #{vtp_wrapper_forward.6} parent=15 // pred_check_branch
          %208 = sbr.rel (%p206) target = $region28
        $region27: #{vtp_wrapper_forward.6} parent=15 // pred_region
          %s209 = sand.u32 %s23, 1
          %s210 = scalar_lea.sflag [#allocation8], %s209
          %s211 = sand.u32 %s99, 1
          %s212 = smul.addr %s211, 8
          %s213 = scalar_lea.vmem [#allocation9], %s212
          %s215 = ssub.s32 128, 128
          %216 = vsyncadd %s210, %s215
          %s217 = smul.addr %s30, 2
          %s218 = smul.addr %s217, 64
          %s219 = scalar_lea.hbm %s3, %s218
          %s220 = sshll.u32 %s213, 4
          %s221 = int_to_ptr.vmem [resolvable:$true] %s220
          %226 = dma.hbm_to_vmem [thread:$0]  %s219, 128, %s221, %s210, 64, 64, 4
        $region28: #{vtp_wrapper_forward.6} parent=15 // pred_fallthru
          _
      $region16: #{vtp_wrapper_forward.6} parent=5 // pred_fallthru
        _
      %p227 = scmp.le.s32.totalorder 1, %s23
      %p228 = scmp.lt.s32.totalorder %s23, 9
      %p229 = pnand %p227, %p228
      %p230 = pneg %p229
      // Predicated region
      $region29: #{vtp_wrapper_forward.6} parent=5 // pred_check
        _
      $region30: #{vtp_wrapper_forward.6} parent=5 // pred_check_branch
        %232 = sbr.rel (%p229) target = $region32
      $region31: #{vtp_wrapper_forward.6} parent=5 // pred_region
        %s233 = ssub.s32 %s23, 1
        %s234 = sand.u32 %s50, 1
        %s235 = scalar_lea.sflag [#allocation5], %s234
        %s236 = sand.u32 %s50, 1
        %s237 = smul.addr %s236, 8
        %s238 = scalar_lea.vmem [#allocation4], %s237
        // Predicated region
        $region33: #{vtp_wrapper_forward.6} parent=31 // pred_check
          %p239 = pneg %p63
        $region34: #{vtp_wrapper_forward.6} parent=31 // pred_check_branch
          %241 = sbr.rel (%p239) target = $region36
        $region35: #{vtp_wrapper_forward.6} parent=31 // pred_region
          %242 = dma.done %s235, 128
        $region36: #{vtp_wrapper_forward.6} parent=31 // pred_fallthru
          _
        %s243 = sand.u32 %s28, 1
        %s244 = scalar_lea.sflag [#allocation8], %s243
        %s245 = sand.u32 %s76, 1
        %s246 = smul.addr %s245, 8
        %s247 = scalar_lea.vmem [#allocation7], %s246
        // Predicated region
        $region37: #{vtp_wrapper_forward.6} parent=31 // pred_check
          %p248 = pneg %p89
        $region38: #{vtp_wrapper_forward.6} parent=31 // pred_check_branch
          %250 = sbr.rel (%p248) target = $region40
        $region39: #{vtp_wrapper_forward.6} parent=31 // pred_region
          %251 = dma.done %s244, 128
        $region40: #{vtp_wrapper_forward.6} parent=31 // pred_fallthru
          _
        %s252 = sand.u32 %s28, 1
        %s253 = scalar_lea.sflag [#allocation8], %s252
        %s254 = sand.u32 %s102, 1
        %s255 = smul.addr %s254, 8
        %s256 = scalar_lea.vmem [#allocation9], %s255
        // Predicated region
        $region41: #{vtp_wrapper_forward.6} parent=31 // pred_check
          %p257 = pneg %p115
        $region42: #{vtp_wrapper_forward.6} parent=31 // pred_check_branch
          %259 = sbr.rel (%p257) target = $region44
        $region43: #{vtp_wrapper_forward.6} parent=31 // pred_region
          %260 = dma.done %s253, 128
        $region44: #{vtp_wrapper_forward.6} parent=31 // pred_fallthru
          _
        %s261 = sand.u32 %s50, 1
        %s262 = scalar_lea.sflag [#allocation5], %s261
        %s263 = sand.u32 %s50, 1
        %s264 = smul.addr %s263, 8
        %s265 = scalar_lea.vmem [#allocation4], %s264
        %p266 = pneg %p63
        %p267 = pneg %p60
        %s268 = sand.u32 %s28, 1
        %s269 = scalar_lea.sflag [#allocation8], %s268
        %s270 = sand.u32 %s76, 1
        %s271 = smul.addr %s270, 8
        %s272 = scalar_lea.vmem [#allocation7], %s271
        %p273 = pneg %p89
        %p274 = pneg %p86
        %s275 = sand.u32 %s28, 1
        %s276 = scalar_lea.sflag [#allocation8], %s275
        %s277 = sand.u32 %s102, 1
        %s278 = smul.addr %s277, 8
        %s279 = scalar_lea.vmem [#allocation9], %s278
        %p280 = pneg %p115
        %p281 = pneg %p112
        %p282 = pneg %p143
        %p283 = pneg %p140
        %s284 = sand.u32 %s130, 1
        %s285 = scalar_lea.sflag [#allocation6], %s284
        %s286 = sand.u32 %s130, 1
        %s287 = smul.addr %s286, 8
        %s288 = scalar_lea.vmem [#allocation10], %s287
        %s289 = smul.u32 2, %s33
        %s290 = smul.u32 2, %s33
        %s292 = sld [smem:[#allocation3 + %s32]]
        %p293 = scmp.gt.s32.totalorder %s292, 0
        // Predicated region
        $region45: #{vtp_wrapper_forward.6} parent=31 // pred_check
          %p294 = pneg %p293
        $region46: #{vtp_wrapper_forward.6} parent=31 // pred_check_branch
          %296 = sbr.rel (%p294) target = $region48
        $region47: #{vtp_wrapper_forward.6} parent=31 // pred_region
          %v297 = vld [vmem:[%s238] sm:$0xf]
          %v298 = vld [vmem:[%s238 + $0x4] sm:$0xf]
          %v299 = vld [vmem:[%s247] sm:$0xf]
          %v300 = vld [vmem:[%s247 + $0x4] sm:$0xf]
          %v301 = vld [vmem:[%s256] sm:$0xf]
          %v302 = vld [vmem:[%s256 + $0x4] sm:$0xf]
          %v305 = vunpack.c.l.b16 %v297
          %v306 = vunpack.c.l.b16 %v298
          %v307 = vpack.c.b16 %v306, %v305
          %v310 = vunpack.c.l.b16 %v299
          %v311 = vunpack.c.l.b16 %v300
          %v312 = vpack.c.b16 %v311, %v310
          %vm313 = vcmask 261120
          %v315 = vsel %vm313, %v307, 0
          %v318 = vsel %vm313, %v312, 0
          %320 = vmatprep.subr.bf16.mxu0 0
          %321 = vmatpush1.bf16.xpose.msra.mxu0 %v318
          %322 = vmatprep.subr.bf16.mxu0 0
          %323 = vmatpush1.bf16.xpose.msra.mxu0 0
          %324 = vmatprep.subr.bf16.mxu0 0
          %325 = vmatpush1.bf16.xpose.msra.mxu0 0
          %326 = vmatprep.subr.bf16.mxu0 0
          %327 = vmatpush1.bf16.xpose.msra.mxu0 0
          %328 = vmatprep.subr.bf16.mxu0 0
          %329 = vmatpush1.bf16.xpose.msra.mxu0 0
          %330 = vmatprep.subr.bf16.mxu0 0
          %331 = vmatpush1.bf16.xpose.msra.mxu0 0
          %332 = vmatprep.subr.bf16.mxu0 0
          %333 = vmatpush1.bf16.xpose.msra.mxu0 0
          %334 = vmatprep.subr.bf16.mxu0 0
          %335 = vmatpush1.bf16.xpose.msra.mxu0 0
          %336 = vmatprep.subr.bf16.mxu0 0
          %337 = vmatpush1.bf16.xpose.msra.mxu0 0
          %338 = vmatprep.subr.bf16.mxu0 0
          %339 = vmatpush1.bf16.xpose.msra.mxu0 0
          %340 = vmatprep.subr.bf16.mxu0 0
          %341 = vmatpush1.bf16.xpose.msra.mxu0 0
          %342 = vmatprep.subr.bf16.mxu0 0
          %343 = vmatpush1.bf16.xpose.msra.mxu0 0
          %344 = vmatprep.subr.bf16.mxu0 0
          %345 = vmatpush1.bf16.xpose.msra.mxu0 0
          %346 = vmatprep.subr.bf16.mxu0 0
          %347 = vmatpush1.bf16.xpose.msra.mxu0 0
          %348 = vmatprep.subr.bf16.mxu0 0
          %349 = vmatpush1.bf16.xpose.msra.mxu0 0
          %350 = vmatprep.subr.bf16.mxu0 0
          %351 = vmatpush1.bf16.xpose.msra.mxu0 0
          %352 = vmatprep.mubr.bf16.mxu0 0
          %353 = vmatmul.mubr.bf16.gmra.mrb[0].mxu0 %v315
          %v354 = vpop.f32.mrb[0].mxu0
          %v355 = vadd.f32 0.0, %v354
          %v356 = vpop.f32.mrb[0].mxu0
          %v357 = vpop.f32.mrb[0].mxu0
          %v358 = vadd.f32 0.0, %v357
          %v359 = vpop.f32.mrb[0].mxu0
          %360 = vdwg.mxu0
          %vm361 = vcmask 130048
          %v362 = vsel %vm361, %v355, -inf
          %363 = vmax.xlane.f32.xlu0 %v362
          %v364 = vpop.xlane.xlu0 %363
          %v365 = vsel %vm361, %v358, -inf
          %366 = vmax.xlane.f32.xlu0 %v365
          %v367 = vpop.xlane.xlu0 %366
          %v368 = vsub.f32 %v355, %v364
          %v369 = vsub.f32 %v358, %v367
          %v370 = vmul.f32 %v368, 1.442695
          %v371 = vpow.pop %v370
          %v372 = vmul.f32 %v369, 1.442695
          %v373 = vpow.pop %v372
          %v374 = vsel %vm361, %v371, 0.0
          %375 = vadd.xlane.f32.xlu0 %v374
          %v376 = vpop.xlane.xlu0 %375
          %v377 = vsel %vm361, %v373, 0.0
          %378 = vadd.xlane.f32.xlu0 %v377
          %v379 = vpop.xlane.xlu0 %378
          %v380 = vrcp.pop %v376
          %v381 = vrcp.pop %v379
          %v382 = vmul.f32 %v371, %v380
          %v383 = vmul.f32 %v373, %v381
          %v384 = vpack.c.bf16 %v383, %v382
          %v387 = vunpack.c.l.b16 %v301
          %v388 = vunpack.c.l.b16 %v302
          %v389 = vpack.c.b16 %v388, %v387
          %v392 = vsel %vm361, %v384, 0
          %394 = vmatprep.subr.bf16.mxu0 0
          %395 = vmatpush1.bf16.msra.mxu0 %v389
          %396 = vmatprep.subr.bf16.mxu0 0
          %397 = vmatpush1.bf16.msra.mxu0 0
          %398 = vmatprep.subr.bf16.mxu0 0
          %399 = vmatpush1.bf16.msra.mxu0 0
          %400 = vmatprep.subr.bf16.mxu0 0
          %401 = vmatpush1.bf16.msra.mxu0 0
          %402 = vmatprep.subr.bf16.mxu0 0
          %403 = vmatpush1.bf16.msra.mxu0 0
          %404 = vmatprep.subr.bf16.mxu0 0
          %405 = vmatpush1.bf16.msra.mxu0 0
          %406 = vmatprep.subr.bf16.mxu0 0
          %407 = vmatpush1.bf16.msra.mxu0 0
          %408 = vmatprep.subr.bf16.mxu0 0
          %409 = vmatpush1.bf16.msra.mxu0 0
          %410 = vmatprep.subr.bf16.mxu0 0
          %411 = vmatpush1.bf16.msra.mxu0 0
          %412 = vmatprep.subr.bf16.mxu0 0
          %413 = vmatpush1.bf16.msra.mxu0 0
          %414 = vmatprep.subr.bf16.mxu0 0
          %415 = vmatpush1.bf16.msra.mxu0 0
          %416 = vmatprep.subr.bf16.mxu0 0
          %417 = vmatpush1.bf16.msra.mxu0 0
          %418 = vmatprep.subr.bf16.mxu0 0
          %419 = vmatpush1.bf16.msra.mxu0 0
          %420 = vmatprep.subr.bf16.mxu0 0
          %421 = vmatpush1.bf16.msra.mxu0 0
          %422 = vmatprep.subr.bf16.mxu0 0
          %423 = vmatpush1.bf16.msra.mxu0 0
          %424 = vmatprep.subr.bf16.mxu0 0
          %425 = vmatpush1.bf16.msra.mxu0 0
          %426 = vmatprep.mubr.bf16.mxu0 0
          %427 = vmatmul.mubr.bf16.gmra.mrb[0].mxu0 %v392
          %v428 = vpop.f32.mrb[0].mxu0
          %v429 = vadd.f32 0.0, %v428
          %v430 = vpop.f32.mrb[0].mxu0
          %v431 = vpop.f32.mrb[0].mxu0
          %v432 = vadd.f32 0.0, %v431
          %v433 = vpop.f32.mrb[0].mxu0
          %434 = vdwg.mxu0
          %v435 = vpack.c.bf16 %v432, %v429
          %v437 = vunpack.c.l.b16 %v435
          %v438 = vunpack.c.h.b16 %v435
          %v439 = vpack.c.b16 %v437, %v437
          %v440 = vpack.c.b16 %v438, %v438
          %vm443 = vcmask 257024
          %444 = vst.msk [vmem:[%s288] sm:$0xf] %vm443, %v439
          %445 = vst.msk [vmem:[%s288 + $0x4] sm:$0xf] %vm443, %v440
          %446 = vrot.lane.b32.xlu0 %v307, 96
          %v447 = vpop.permute.xlu0 %446
          %448 = vrot.lane.b32.xlu0 %v312, 96
          %v449 = vpop.permute.xlu0 %448
          %v451 = vsel %vm313, %v447, 0
          %v454 = vsel %vm313, %v449, 0
          %456 = vmatprep.subr.bf16.mxu0 0
          %457 = vmatpush1.bf16.xpose.msra.mxu0 %v454
          %458 = vmatprep.subr.bf16.mxu0 0
          %459 = vmatpush1.bf16.xpose.msra.mxu0 0
          %460 = vmatprep.subr.bf16.mxu0 0
          %461 = vmatpush1.bf16.xpose.msra.mxu0 0
          %462 = vmatprep.subr.bf16.mxu0 0
          %463 = vmatpush1.bf16.xpose.msra.mxu0 0
          %464 = vmatprep.subr.bf16.mxu0 0
          %465 = vmatpush1.bf16.xpose.msra.mxu0 0
          %466 = vmatprep.subr.bf16.mxu0 0
          %467 = vmatpush1.bf16.xpose.msra.mxu0 0
          %468 = vmatprep.subr.bf16.mxu0 0
          %469 = vmatpush1.bf16.xpose.msra.mxu0 0
          %470 = vmatprep.subr.bf16.mxu0 0
          %471 = vmatpush1.bf16.xpose.msra.mxu0 0
          %472 = vmatprep.subr.bf16.mxu0 0
          %473 = vmatpush1.bf16.xpose.msra.mxu0 0
          %474 = vmatprep.subr.bf16.mxu0 0
          %475 = vmatpush1.bf16.xpose.msra.mxu0 0
          %476 = vmatprep.subr.bf16.mxu0 0
          %477 = vmatpush1.bf16.xpose.msra.mxu0 0
          %478 = vmatprep.subr.bf16.mxu0 0
          %479 = vmatpush1.bf16.xpose.msra.mxu0 0
          %480 = vmatprep.subr.bf16.mxu0 0
          %481 = vmatpush1.bf16.xpose.msra.mxu0 0
          %482 = vmatprep.subr.bf16.mxu0 0
          %483 = vmatpush1.bf16.xpose.msra.mxu0 0
          %484 = vmatprep.subr.bf16.mxu0 0
          %485 = vmatpush1.bf16.xpose.msra.mxu0 0
          %486 = vmatprep.subr.bf16.mxu0 0
          %487 = vmatpush1.bf16.xpose.msra.mxu0 0
          %488 = vmatprep.mubr.bf16.mxu0 0
          %489 = vmatmul.mubr.bf16.gmra.mrb[0].mxu0 %v451
          %v490 = vpop.f32.mrb[0].mxu0
          %v491 = vadd.f32 0.0, %v490
          %v492 = vpop.f32.mrb[0].mxu0
          %v493 = vpop.f32.mrb[0].mxu0
          %v494 = vadd.f32 0.0, %v493
          %v495 = vpop.f32.mrb[0].mxu0
          %496 = vdwg.mxu0
          %v497 = vsel %vm361, %v491, -inf
          %498 = vmax.xlane.f32.xlu0 %v497
          %v499 = vpop.xlane.xlu0 %498
          %v500 = vsel %vm361, %v494, -inf
          %501 = vmax.xlane.f32.xlu0 %v500
          %v502 = vpop.xlane.xlu0 %501
          %v503 = vsub.f32 %v491, %v499
          %v504 = vsub.f32 %v494, %v502
          %v505 = vmul.f32 %v503, 1.442695
          %v506 = vpow.pop %v505
          %v507 = vmul.f32 %v504, 1.442695
          %v508 = vpow.pop %v507
          %v509 = vsel %vm361, %v506, 0.0
          %510 = vadd.xlane.f32.xlu0 %v509
          %v511 = vpop.xlane.xlu0 %510
          %v512 = vsel %vm361, %v508, 0.0
          %513 = vadd.xlane.f32.xlu0 %v512
          %v514 = vpop.xlane.xlu0 %513
          %v515 = vrcp.pop %v511
          %v516 = vrcp.pop %v514
          %v517 = vmul.f32 %v506, %v515
          %v518 = vmul.f32 %v508, %v516
          %v519 = vpack.c.bf16 %v518, %v517
          %520 = vrot.lane.b32.xlu0 %v389, 96
          %v521 = vpop.permute.xlu0 %520
          %v524 = vsel %vm361, %v519, 0
          %526 = vmatprep.subr.bf16.mxu0 0
          %527 = vmatpush1.bf16.msra.mxu0 %v521
          %528 = vmatprep.subr.bf16.mxu0 0
          %529 = vmatpush1.bf16.msra.mxu0 0
          %530 = vmatprep.subr.bf16.mxu0 0
          %531 = vmatpush1.bf16.msra.mxu0 0
          %532 = vmatprep.subr.bf16.mxu0 0
          %533 = vmatpush1.bf16.msra.mxu0 0
          %534 = vmatprep.subr.bf16.mxu0 0
          %535 = vmatpush1.bf16.msra.mxu0 0
          %536 = vmatprep.subr.bf16.mxu0 0
          %537 = vmatpush1.bf16.msra.mxu0 0
          %538 = vmatprep.subr.bf16.mxu0 0
          %539 = vmatpush1.bf16.msra.mxu0 0
          %540 = vmatprep.subr.bf16.mxu0 0
          %541 = vmatpush1.bf16.msra.mxu0 0
          %542 = vmatprep.subr.bf16.mxu0 0
          %543 = vmatpush1.bf16.msra.mxu0 0
          %544 = vmatprep.subr.bf16.mxu0 0
          %545 = vmatpush1.bf16.msra.mxu0 0
          %546 = vmatprep.subr.bf16.mxu0 0
          %547 = vmatpush1.bf16.msra.mxu0 0
          %548 = vmatprep.subr.bf16.mxu0 0
          %549 = vmatpush1.bf16.msra.mxu0 0
          %550 = vmatprep.subr.bf16.mxu0 0
          %551 = vmatpush1.bf16.msra.mxu0 0
          %552 = vmatprep.subr.bf16.mxu0 0
          %553 = vmatpush1.bf16.msra.mxu0 0
          %554 = vmatprep.subr.bf16.mxu0 0
          %555 = vmatpush1.bf16.msra.mxu0 0
          %556 = vmatprep.subr.bf16.mxu0 0
          %557 = vmatpush1.bf16.msra.mxu0 0
          %558 = vmatprep.mubr.bf16.mxu0 0
          %559 = vmatmul.mubr.bf16.gmra.mrb[0].mxu0 %v524
          %v560 = vpop.f32.mrb[0].mxu0
          %v561 = vadd.f32 0.0, %v560
          %v562 = vpop.f32.mrb[0].mxu0
          %v563 = vpop.f32.mrb[0].mxu0
          %v564 = vadd.f32 0.0, %v563
          %v565 = vpop.f32.mrb[0].mxu0
          %566 = vdwg.mxu0
          %v567 = vpack.c.bf16 %v564, %v561
          %v569 = vunpack.c.l.b16 %v567
          %v570 = vunpack.c.h.b16 %v567
          %v571 = vpack.c.b16 %v569, %v569
          %v572 = vpack.c.b16 %v570, %v570
          %573 = vrot.lane.b32.xlu0 %v571, 32
          %v574 = vpop.permute.xlu0 %573
          %575 = vrot.lane.b32.xlu0 %v572, 32
          %v576 = vpop.permute.xlu0 %575
          %vm579 = vcmask 519424
          %580 = vst.msk [vmem:[%s288] sm:$0xf] %vm579, %v574
          %581 = vst.msk [vmem:[%s288 + $0x4] sm:$0xf] %vm579, %v576
          %582 = vrot.lane.b32.xlu0 %v307, 64
          %v583 = vpop.permute.xlu0 %582
          %584 = vrot.lane.b32.xlu0 %v312, 64
          %v585 = vpop.permute.xlu0 %584
          %v587 = vsel %vm313, %v583, 0
          %v590 = vsel %vm313, %v585, 0
          %592 = vmatprep.subr.bf16.mxu0 0
          %593 = vmatpush1.bf16.xpose.msra.mxu0 %v590
          %594 = vmatprep.subr.bf16.mxu0 0
          %595 = vmatpush1.bf16.xpose.msra.mxu0 0
          %596 = vmatprep.subr.bf16.mxu0 0
          %597 = vmatpush1.bf16.xpose.msra.mxu0 0
          %598 = vmatprep.subr.bf16.mxu0 0
          %599 = vmatpush1.bf16.xpose.msra.mxu0 0
          %600 = vmatprep.subr.bf16.mxu0 0
          %601 = vmatpush1.bf16.xpose.msra.mxu0 0
          %602 = vmatprep.subr.bf16.mxu0 0
          %603 = vmatpush1.bf16.xpose.msra.mxu0 0
          %604 = vmatprep.subr.bf16.mxu0 0
          %605 = vmatpush1.bf16.xpose.msra.mxu0 0
          %606 = vmatprep.subr.bf16.mxu0 0
          %607 = vmatpush1.bf16.xpose.msra.mxu0 0
          %608 = vmatprep.subr.bf16.mxu0 0
          %609 = vmatpush1.bf16.xpose.msra.mxu0 0
          %610 = vmatprep.subr.bf16.mxu0 0
          %611 = vmatpush1.bf16.xpose.msra.mxu0 0
          %612 = vmatprep.subr.bf16.mxu0 0
          %613 = vmatpush1.bf16.xpose.msra.mxu0 0
          %614 = vmatprep.subr.bf16.mxu0 0
          %615 = vmatpush1.bf16.xpose.msra.mxu0 0
          %616 = vmatprep.subr.bf16.mxu0 0
          %617 = vmatpush1.bf16.xpose.msra.mxu0 0
          %618 = vmatprep.subr.bf16.mxu0 0
          %619 = vmatpush1.bf16.xpose.msra.mxu0 0
          %620 = vmatprep.subr.bf16.mxu0 0
          %621 = vmatpush1.bf16.xpose.msra.mxu0 0
          %622 = vmatprep.subr.bf16.mxu0 0
          %623 = vmatpush1.bf16.xpose.msra.mxu0 0
          %624 = vmatprep.mubr.bf16.mxu0 0
          %625 = vmatmul.mubr.bf16.gmra.mrb[0].mxu0 %v587
          %v626 = vpop.f32.mrb[0].mxu0
          %v627 = vadd.f32 0.0, %v626
          %v628 = vpop.f32.mrb[0].mxu0
          %v629 = vpop.f32.mrb[0].mxu0
          %v630 = vadd.f32 0.0, %v629
          %v631 = vpop.f32.mrb[0].mxu0
          %632 = vdwg.mxu0
          %v633 = vsel %vm361, %v627, -inf
          %634 = vmax.xlane.f32.xlu0 %v633
          %v635 = vpop.xlane.xlu0 %634
          %v636 = vsel %vm361, %v630, -inf
          %637 = vmax.xlane.f32.xlu0 %v636
          %v638 = vpop.xlane.xlu0 %637
          %v639 = vsub.f32 %v627, %v635
          %v640 = vsub.f32 %v630, %v638
          %v641 = vmul.f32 %v639, 1.442695
          %v642 = vpow.pop %v641
          %v643 = vmul.f32 %v640, 1.442695
          %v644 = vpow.pop %v643
          %v645 = vsel %vm361, %v642, 0.0
          %646 = vadd.xlane.f32.xlu0 %v645
          %v647 = vpop.xlane.xlu0 %646
          %v648 = vsel %vm361, %v644, 0.0
          %649 = vadd.xlane.f32.xlu0 %v648
          %v650 = vpop.xlane.xlu0 %649
          %v651 = vrcp.pop %v647
          %v652 = vrcp.pop %v650
          %v653 = vmul.f32 %v642, %v651
          %v654 = vmul.f32 %v644, %v652
          %v655 = vpack.c.bf16 %v654, %v653
          %656 = vrot.lane.b32.xlu0 %v389, 64
          %v657 = vpop.permute.xlu0 %656
          %v660 = vsel %vm361, %v655, 0
          %662 = vmatprep.subr.bf16.mxu0 0
          %663 = vmatpush1.bf16.msra.mxu0 %v657
          %664 = vmatprep.subr.bf16.mxu0 0
          %665 = vmatpush1.bf16.msra.mxu0 0
          %666 = vmatprep.subr.bf16.mxu0 0
          %667 = vmatpush1.bf16.msra.mxu0 0
          %668 = vmatprep.subr.bf16.mxu0 0
          %669 = vmatpush1.bf16.msra.mxu0 0
          %670 = vmatprep.subr.bf16.mxu0 0
          %671 = vmatpush1.bf16.msra.mxu0 0
          %672 = vmatprep.subr.bf16.mxu0 0
          %673 = vmatpush1.bf16.msra.mxu0 0
          %674 = vmatprep.subr.bf16.mxu0 0
          %675 = vmatpush1.bf16.msra.mxu0 0
          %676 = vmatprep.subr.bf16.mxu0 0
          %677 = vmatpush1.bf16.msra.mxu0 0
          %678 = vmatprep.subr.bf16.mxu0 0
          %679 = vmatpush1.bf16.msra.mxu0 0
          %680 = vmatprep.subr.bf16.mxu0 0
          %681 = vmatpush1.bf16.msra.mxu0 0
          %682 = vmatprep.subr.bf16.mxu0 0
          %683 = vmatpush1.bf16.msra.mxu0 0
          %684 = vmatprep.subr.bf16.mxu0 0
          %685 = vmatpush1.bf16.msra.mxu0 0
          %686 = vmatprep.subr.bf16.mxu0 0
          %687 = vmatpush1.bf16.msra.mxu0 0
          %688 = vmatprep.subr.bf16.mxu0 0
          %689 = vmatpush1.bf16.msra.mxu0 0
          %690 = vmatprep.subr.bf16.mxu0 0
          %691 = vmatpush1.bf16.msra.mxu0 0
          %692 = vmatprep.subr.bf16.mxu0 0
          %693 = vmatpush1.bf16.msra.mxu0 0
          %694 = vmatprep.mubr.bf16.mxu0 0
          %695 = vmatmul.mubr.bf16.gmra.mrb[0].mxu0 %v660
          %v696 = vpop.f32.mrb[0].mxu0
          %v697 = vadd.f32 0.0, %v696
          %v698 = vpop.f32.mrb[0].mxu0
          %v699 = vpop.f32.mrb[0].mxu0
          %v700 = vadd.f32 0.0, %v699
          %v701 = vpop.f32.mrb[0].mxu0
          %702 = vdwg.mxu0
          %v703 = vpack.c.bf16 %v700, %v697
          %v705 = vunpack.c.l.b16 %v703
          %v706 = vunpack.c.h.b16 %v703
          %v707 = vpack.c.b16 %v705, %v705
          %v708 = vpack.c.b16 %v706, %v706
          %709 = vrot.lane.b32.xlu0 %v707, 64
          %v710 = vpop.permute.xlu0 %709
          %711 = vrot.lane.b32.xlu0 %v708, 64
          %v712 = vpop.permute.xlu0 %711
          %vm715 = vcmask 781824
          %716 = vst.msk [vmem:[%s288] sm:$0xf] %vm715, %v710
          %717 = vst.msk [vmem:[%s288 + $0x4] sm:$0xf] %vm715, %v712
          %718 = vrot.lane.b32.xlu0 %v307, 32
          %v719 = vpop.permute.xlu0 %718
          %720 = vrot.lane.b32.xlu0 %v312, 32
          %v721 = vpop.permute.xlu0 %720
          %v723 = vsel %vm313, %v719, 0
          %v726 = vsel %vm313, %v721, 0
          %728 = vmatprep.subr.bf16.mxu0 0
          %729 = vmatpush1.bf16.xpose.msra.mxu0 %v726
          %730 = vmatprep.subr.bf16.mxu0 0
          %731 = vmatpush1.bf16.xpose.msra.mxu0 0
          %732 = vmatprep.subr.bf16.mxu0 0
          %733 = vmatpush1.bf16.xpose.msra.mxu0 0
          %734 = vmatprep.subr.bf16.mxu0 0
          %735 = vmatpush1.bf16.xpose.msra.mxu0 0
          %736 = vmatprep.subr.bf16.mxu0 0
          %737 = vmatpush1.bf16.xpose.msra.mxu0 0
          %738 = vmatprep.subr.bf16.mxu0 0
          %739 = vmatpush1.bf16.xpose.msra.mxu0 0
          %740 = vmatprep.subr.bf16.mxu0 0
          %741 = vmatpush1.bf16.xpose.msra.mxu0 0
          %742 = vmatprep.subr.bf16.mxu0 0
          %743 = vmatpush1.bf16.xpose.msra.mxu0 0
          %744 = vmatprep.subr.bf16.mxu0 0
          %745 = vmatpush1.bf16.xpose.msra.mxu0 0
          %746 = vmatprep.subr.bf16.mxu0 0
          %747 = vmatpush1.bf16.xpose.msra.mxu0 0
          %748 = vmatprep.subr.bf16.mxu0 0
          %749 = vmatpush1.bf16.xpose.msra.mxu0 0
          %750 = vmatprep.subr.bf16.mxu0 0
          %751 = vmatpush1.bf16.xpose.msra.mxu0 0
          %752 = vmatprep.subr.bf16.mxu0 0
          %753 = vmatpush1.bf16.xpose.msra.mxu0 0
          %754 = vmatprep.subr.bf16.mxu0 0
          %755 = vmatpush1.bf16.xpose.msra.mxu0 0
          %756 = vmatprep.subr.bf16.mxu0 0
          %757 = vmatpush1.bf16.xpose.msra.mxu0 0
          %758 = vmatprep.subr.bf16.mxu0 0
          %759 = vmatpush1.bf16.xpose.msra.mxu0 0
          %760 = vmatprep.mubr.bf16.mxu0 0
          %761 = vmatmul.mubr.bf16.gmra.mrb[0].mxu0 %v723
          %v762 = vpop.f32.mrb[0].mxu0
          %v763 = vadd.f32 0.0, %v762
          %v764 = vpop.f32.mrb[0].mxu0
          %v765 = vpop.f32.mrb[0].mxu0
          %v766 = vadd.f32 0.0, %v765
          %v767 = vpop.f32.mrb[0].mxu0
          %768 = vdwg.mxu0
          %v769 = vsel %vm361, %v763, -inf
          %770 = vmax.xlane.f32.xlu0 %v769
          %v771 = vpop.xlane.xlu0 %770
          %v772 = vsel %vm361, %v766, -inf
          %773 = vmax.xlane.f32.xlu0 %v772
          %v774 = vpop.xlane.xlu0 %773
          %v775 = vsub.f32 %v763, %v771
          %v776 = vsub.f32 %v766, %v774
          %v777 = vmul.f32 %v775, 1.442695
          %v778 = vpow.pop %v777
          %v779 = vmul.f32 %v776, 1.442695
          %v780 = vpow.pop %v779
          %v781 = vsel %vm361, %v778, 0.0
          %782 = vadd.xlane.f32.xlu0 %v781
          %v783 = vpop.xlane.xlu0 %782
          %v784 = vsel %vm361, %v780, 0.0
          %785 = vadd.xlane.f32.xlu0 %v784
          %v786 = vpop.xlane.xlu0 %785
          %v787 = vrcp.pop %v783
          %v788 = vrcp.pop %v786
          %v789 = vmul.f32 %v778, %v787
          %v790 = vmul.f32 %v780, %v788
          %v791 = vpack.c.bf16 %v790, %v789
          %792 = vrot.lane.b32.xlu0 %v389, 32
          %v793 = vpop.permute.xlu0 %792
          %v796 = vsel %vm361, %v791, 0
          %798 = vmatprep.subr.bf16.mxu0 0
          %799 = vmatpush1.bf16.msra.mxu0 %v793
          %800 = vmatprep.subr.bf16.mxu0 0
          %801 = vmatpush1.bf16.msra.mxu0 0
          %802 = vmatprep.subr.bf16.mxu0 0
          %803 = vmatpush1.bf16.msra.mxu0 0
          %804 = vmatprep.subr.bf16.mxu0 0
          %805 = vmatpush1.bf16.msra.mxu0 0
          %806 = vmatprep.subr.bf16.mxu0 0
          %807 = vmatpush1.bf16.msra.mxu0 0
          %808 = vmatprep.subr.bf16.mxu0 0
          %809 = vmatpush1.bf16.msra.mxu0 0
          %810 = vmatprep.subr.bf16.mxu0 0
          %811 = vmatpush1.bf16.msra.mxu0 0
          %812 = vmatprep.subr.bf16.mxu0 0
          %813 = vmatpush1.bf16.msra.mxu0 0
          %814 = vmatprep.subr.bf16.mxu0 0
          %815 = vmatpush1.bf16.msra.mxu0 0
          %816 = vmatprep.subr.bf16.mxu0 0
          %817 = vmatpush1.bf16.msra.mxu0 0
          %818 = vmatprep.subr.bf16.mxu0 0
          %819 = vmatpush1.bf16.msra.mxu0 0
          %820 = vmatprep.subr.bf16.mxu0 0
          %821 = vmatpush1.bf16.msra.mxu0 0
          %822 = vmatprep.subr.bf16.mxu0 0
          %823 = vmatpush1.bf16.msra.mxu0 0
          %824 = vmatprep.subr.bf16.mxu0 0
          %825 = vmatpush1.bf16.msra.mxu0 0
          %826 = vmatprep.subr.bf16.mxu0 0
          %827 = vmatpush1.bf16.msra.mxu0 0
          %828 = vmatprep.subr.bf16.mxu0 0
          %829 = vmatpush1.bf16.msra.mxu0 0
          %830 = vmatprep.mubr.bf16.mxu0 0
          %831 = vmatmul.mubr.bf16.gmra.mrb[0].mxu0 %v796
          %v832 = vpop.f32.mrb[0].mxu0
          %v833 = vadd.f32 0.0, %v832
          %v834 = vpop.f32.mrb[0].mxu0
          %v835 = vpop.f32.mrb[0].mxu0
          %v836 = vadd.f32 0.0, %v835
          %v837 = vpop.f32.mrb[0].mxu0
          %838 = vdwg.mxu0
          %v839 = vpack.c.bf16 %v836, %v833
          %v841 = vunpack.c.l.b16 %v839
          %v842 = vunpack.c.h.b16 %v839
          %v843 = vpack.c.b16 %v841, %v841
          %v844 = vpack.c.b16 %v842, %v842
          %845 = vrot.lane.b32.xlu0 %v843, 96
          %v846 = vpop.permute.xlu0 %845
          %847 = vrot.lane.b32.xlu0 %v844, 96
          %v848 = vpop.permute.xlu0 %847
          %vm851 = vcmask 1044224
          %852 = vst.msk [vmem:[%s288] sm:$0xf] %vm851, %v846
          %853 = vst.msk [vmem:[%s288 + $0x4] sm:$0xf] %vm851, %v848
        $region48: #{vtp_wrapper_forward.6} parent=31 // pred_fallthru
          _
        %s854 = sand.u32 %s130, 1
        %s855 = scalar_lea.sflag [#allocation6], %s854
        %s856 = sand.u32 %s130, 1
        %s857 = smul.addr %s856, 8
        %s858 = scalar_lea.vmem [#allocation10], %s857
        // Predicated region
        $region49: #{vtp_wrapper_forward.6} parent=31 // pred_check
          %p859 = pneg %p140
        $region50: #{vtp_wrapper_forward.6} parent=31 // pred_check_branch
          %861 = sbr.rel (%p859) target = $region52
        $region51: #{vtp_wrapper_forward.6} parent=31 // pred_region
          %s862 = smul.u32 2, %s33
          %s864 = ssub.s32 128, 128
          %865 = vsyncadd %s855, %s864
          %s866 = smul.addr %s32, 2
          %s867 = sadd.s32 %s862, %s866
          %s868 = smul.addr %s867, 64
          %s869 = scalar_lea.hbm %s4, %s868
          %s870 = sshll.u32 %s858, 4
          %s871 = int_to_ptr.vmem [resolvable:$true] %s870
          %876 = dma.vmem_to_hbm [thread:$0]  %s871, 128, %s869, %s855, 64, 64, 4
        $region52: #{vtp_wrapper_forward.6} parent=31 // pred_fallthru
          _
      $region32: #{vtp_wrapper_forward.6} parent=5 // pred_fallthru
        _
      %p877 = scmp.le.s32.totalorder 2, %s23
      // Predicated region
      $region53: #{vtp_wrapper_forward.6} parent=5 // pred_check
        %p878 = pneg %p877
      $region54: #{vtp_wrapper_forward.6} parent=5 // pred_check_branch
        %880 = sbr.rel (%p878) target = $region56
      $region55: #{vtp_wrapper_forward.6} parent=5 // pred_region
        %s881 = ssub.s32 %s23, 2
        // Predicated region
        $region57: #{vtp_wrapper_forward.6} parent=55 // pred_check
          %p882 = pneg %p146
        $region58: #{vtp_wrapper_forward.6} parent=55 // pred_check_branch
          %884 = sbr.rel (%p882) target = $region60
        $region59: #{vtp_wrapper_forward.6} parent=55 // pred_region
          %s885 = sand.u32 %s131, 1
          %s886 = scalar_lea.sflag [#allocation6], %s885
          %s887 = sand.u32 %s131, 1
          %s888 = smul.addr %s887, 8
          %s889 = scalar_lea.vmem [#allocation10], %s888
          %890 = dma.done %s886, 128
        $region60: #{vtp_wrapper_forward.6} parent=55 // pred_fallthru
          _
      $region56: #{vtp_wrapper_forward.6} parent=5 // pred_fallthru
        _
    $region6: #{vtp_wrapper_forward.6} parent=1 // loop_footer
      %s27 = sadd.s32 1, %s23
    $region7: #{vtp_wrapper_forward.6} parent=1 // loop_footer_branch
      %22 = sbr.rel target = $region3
    $region8: #{vtp_wrapper_forward.6} parent=1 // loop_exit
      _
    %891 = vsyncpa [#allocation5], 1
    %s892 = scalar_lea.sflag [#allocation5], 1
    %893 = vsyncpa %s892, 1
    %894 = vsyncpa [#allocation8], 1
    %s895 = scalar_lea.sflag [#allocation8], 1
    %896 = vsyncpa %s895, 1
    %897 = vsyncpa [#allocation6], 1
    %s898 = scalar_lea.sflag [#allocation6], 1
    %899 = vsyncpa %s898, 1

// kernel: vtp_wrapper_forward.5
$region0: #{vtp_wrapper_forward.5}
  #allocation0 [shape = 'u32[]', space=smem, size = 0x4, offset = 0x4, fixed_abs, tag = 'smem constant byte address 0x4 - core index']
  #allocation1 [shape = 'u32[144,128]{1,0:T(1,128)}', space=vmem, size = 0x12000, scoped, tag = 'internal scratch']
  #allocation2 [shape = 'f32[64,128]{1,0:T(8,128)}', space=vmem, size = 0x8000, scoped, tag = 'scratch operand']
  #allocation3 [shape = 'f32[64,128]{1,0:T(8,128)}', space=vmem, size = 0x8000, scoped, tag = 'scratch operand']
  #allocation4 [shape = 'f32[64,128]{1,0:T(8,128)}', space=vmem, size = 0x8000, scoped, tag = 'scratch operand']
  %s0 = inlined_call_operand.hbm [shape: bf16[128,128], index: 0, kind: input, shape index: {}]
  %s1 = inlined_call_operand.hbm [shape: bf16[128,128], index: 1, kind: input, shape index: {}]
  %s2 = inlined_call_operand.hbm [shape: bf16[128,128], index: 2, kind: input, shape index: {}]
  %s3 = inlined_call_operand.hbm [shape: bf16[128,128], index: 3, kind: input, shape index: {}]
  %s4 = inlined_call_operand.hbm [shape: f32[1,128], index: 4, kind: input, shape index: {}]
  %s5 = inlined_call_operand.hbm [shape: f32[1,128], index: 5, kind: input, shape index: {}]
  %s6 = inlined_call_operand.hbm [shape: f32[1,128], index: 6, kind: input, shape index: {}]
  %s7 = inlined_call_operand.hbm [shape: bf16[128,128], index: 7, kind: output, shape index: {0}]
  %s8 = inlined_call_operand.hbm [shape: bf16[128,128], index: 8, kind: output, shape index: {1}]
  %s9 = inlined_call_operand.hbm [shape: bf16[128,128], index: 9, kind: output, shape index: {2}]
  %10 = xla_tuple %s7, %s8, %s9
  %s11 = sld [smem:[#allocation0]]
  $region113: #{vtp_wrapper_forward.5} parent=0
    _
  %s13 = ssub.s32 1, %s11
  %s14 = scalar_select 0, %s13, %s11
  $region1: #{vtp_wrapper_forward.5} parent=0
    #allocation5 [shape = 'u8[32768]{0}', space=vmem, size = 0x8000, scoped, tag = 'input window, operand 0']
    #allocation6 [shape = 's32[2]{0}', space=sflag, size = 0x8, scoped, tag = 'scoped memory for vtp_wrapper_forward.5']
    #allocation7 [shape = 's32[2]{0}', space=sflag, size = 0x8, scoped, tag = 'scoped memory for vtp_wrapper_forward.5']
    #allocation8 [shape = 'u8[32768]{0}', space=vmem, size = 0x8000, scoped, tag = 'input window, operand 1, single buffered']
    #allocation9 [shape = 's32[1]{0}', space=sflag, size = 0x4, scoped, tag = 'scoped memory for vtp_wrapper_forward.5']
    #allocation10 [shape = 'u8[32768]{0}', space=vmem, size = 0x8000, scoped, tag = 'input window, operand 2, single buffered']
    #allocation11 [shape = 'u8[32768]{0}', space=vmem, size = 0x8000, scoped, tag = 'input window, operand 3, single buffered']
    #allocation12 [shape = 's32[1]{0}', space=sflag, size = 0x4, scoped, tag = 'scoped memory for vtp_wrapper_forward.5']
    #allocation13 [shape = 'u8[512]{0}', space=vmem, size = 0x400, scoped, tag = 'input window, operand 4, single buffered']
    #allocation14 [shape = 'u8[512]{0}', space=vmem, size = 0x400, scoped, tag = 'input window, operand 5, single buffered']
    #allocation15 [shape = 's32[1]{0}', space=sflag, size = 0x4, scoped, tag = 'scoped memory for vtp_wrapper_forward.5']
    #allocation16 [shape = 'u8[512]{0}', space=vmem, size = 0x400, scoped, tag = 'input window, operand 6, single buffered']
    #allocation17 [shape = 'u8[32768]{0}', space=vmem, size = 0x8000, scoped, tag = 'output window, operand 0']
    #allocation18 [shape = 'u8[32768]{0}', space=vmem, size = 0x8000, scoped, tag = 'output window, operand 1']
    #allocation19 [shape = 's32[2]{0}', space=sflag, size = 0x8, scoped, tag = 'scoped memory for vtp_wrapper_forward.5']
    #allocation20 [shape = 'u8[32768]{0}', space=vmem, size = 0x8000, scoped, tag = 'output window, operand 2']
    %15 = vsyncpa [#allocation6], 0
    %s16 = scalar_lea.sflag [#allocation6], 1
    %17 = vsyncpa %s16, 0
    %18 = vsyncpa [#allocation9], 0
    %19 = vsyncpa [#allocation12], 0
    %20 = vsyncpa [#allocation15], 0
    %21 = vsyncpa [#allocation7], 0
    %s22 = scalar_lea.sflag [#allocation7], 1
    %23 = vsyncpa %s22, 0
    %24 = vsyncpa [#allocation19], 0
    %s25 = scalar_lea.sflag [#allocation19], 1
    %26 = vsyncpa %s25, 0
    loop: start=0, step=1, limit=4
    $region2: #{vtp_wrapper_forward.5} parent=1 // loop_pre_header
      _
    $region3: #{vtp_wrapper_forward.5} parent=1 // loop_header
      %s28 = sphi 0, %s32
      %p29 = scmp.ge.s32.totalorder %s28, 4
      %s35 = sphi 0, %s54
      %s36 = sphi 0, %s50
      %s37 = sphi 0, %s46
      %s38 = sphi 0, %s35
      %s39 = sphi 0, %s36
      %s40 = sphi 0, %s37
      %s41 = sphi 0, %s38
      %s42 = sphi 0, %s39
      %s43 = sphi 0, %s40
      %s59 = sphi 0, %s61
      %s62 = sphi 0, %s59
      %s63 = sphi 0, %s62
      %s79 = sphi 0, %s63
      %s87 = sphi 0, %s89
      %s90 = sphi 0, %s87
      %s91 = sphi 0, %s90
      %s107 = sphi 0, %s91
      %s115 = sphi 0, %s117
      %s118 = sphi 0, %s115
      %s119 = sphi 0, %s118
      %s135 = sphi 0, %s119
      %s143 = sphi 0, %s145
      %s146 = sphi 0, %s143
      %s147 = sphi 0, %s146
      %s163 = sphi 0, %s147
      %s169 = sphi 0, %s171
      %s172 = sphi 0, %s169
      %s173 = sphi 0, %s172
      %s189 = sphi 0, %s173
      %s195 = sphi 0, %s197
      %s198 = sphi 0, %s195
      %s199 = sphi 0, %s198
      %s215 = sphi 0, %s199
      %s221 = sphi 0, %s223
      %s224 = sphi 0, %s221
      %s225 = sphi 0, %s224
      %s241 = sphi 0, %s225
      %s249 = sphi 0, %s251
      %s252 = sphi 0, %s249
      %s253 = sphi 0, %s252
      %s269 = sphi 0, %s253
      %s277 = sphi 0, %s279
      %s280 = sphi 0, %s277
      %s281 = sphi 0, %s280
      %s297 = sphi 0, %s281
      %s305 = sphi 0, %s307
      %s308 = sphi 0, %s305
      %s309 = sphi 0, %s308
      %s325 = sphi 0, %s309
    $region4: #{vtp_wrapper_forward.5} parent=1 // loop_header_branch
      %31 = sbr.rel (%p29) target = $region8
    $region5: #{vtp_wrapper_forward.5} parent=1 // loop_body
      %s33 = ssub.s32 %s28, 1
      %s34 = ssub.s32 %s28, 2
      %s44 = sadd.s32 1, %s37
      %p45 = scmp.ge.s32.totalorder %s44, 1
      %s46 = scalar_select %p45, 0, %s44
      %s47 = sadd.s32 1, %s36
      %s48 = scalar_select %p45, %s47, %s36
      %p49 = scmp.ge.s32.totalorder %s48, 1
      %s50 = scalar_select %p49, 0, %s48
      %s51 = sadd.s32 1, %s35
      %s52 = scalar_select %p49, %s51, %s35
      %p53 = scmp.ge.s32.totalorder %s52, 2
      %s54 = scalar_select %p53, 0, %s52
      %s55 = ssub.s32 %s35, %s54
      %s56 = ssub.s32 %s37, %s46
      %s57 = sor.u32 %s55, %s56
      %p58 = scmp.eq.s32.totalorder %s57, 0
      %s60 = sadd.s32 %s59, 1
      %s61 = scalar_select %p58, %s59, %s60
      %p64 = pneg %p58
      %p65 = scmp.eq.s32.totalorder %s28, 1
      %p66 = por %p64, %p65
      %p67 = scmp.ne.s32.totalorder %s59, %s62
      %p68 = scmp.eq.s32.totalorder %s28, 0
      %p69 = por %p67, %p68
      %p70 = scmp.ne.s32.totalorder %s59, %s62
      %p71 = scmp.eq.s32.totalorder %s33, 1
      %p72 = por %p70, %p71
      %p73 = scmp.ne.s32.totalorder %s62, %s63
      %p74 = scmp.eq.s32.totalorder %s33, 0
      %p75 = por %p73, %p74
      %p76 = scmp.ne.s32.totalorder %s62, %s63
      %p77 = scmp.eq.s32.totalorder %s34, 1
      %p78 = por %p76, %p77
      %p80 = scmp.ne.s32.totalorder %s63, %s79
      %p81 = scmp.eq.s32.totalorder %s34, 0
      %p82 = por %p80, %p81
      %s83 = ssub.s32 %s37, %s46
      %s84 = ssub.s32 %s36, %s50
      %s85 = sor.u32 %s83, %s84
      %p86 = scmp.eq.s32.totalorder %s85, 0
      %s88 = sadd.s32 %s87, 1
      %s89 = scalar_select %p86, %s87, %s88
      %p92 = pneg %p86
      %p93 = scmp.eq.s32.totalorder %s28, 1
      %p94 = por %p92, %p93
      %p95 = scmp.ne.s32.totalorder %s87, %s90
      %p96 = scmp.eq.s32.totalorder %s28, 0
      %p97 = por %p95, %p96
      %p98 = scmp.ne.s32.totalorder %s87, %s90
      %p99 = scmp.eq.s32.totalorder %s33, 1
      %p100 = por %p98, %p99
      %p101 = scmp.ne.s32.totalorder %s90, %s91
      %p102 = scmp.eq.s32.totalorder %s33, 0
      %p103 = por %p101, %p102
      %p104 = scmp.ne.s32.totalorder %s90, %s91
      %p105 = scmp.eq.s32.totalorder %s34, 1
      %p106 = por %p104, %p105
      %p108 = scmp.ne.s32.totalorder %s91, %s107
      %p109 = scmp.eq.s32.totalorder %s34, 0
      %p110 = por %p108, %p109
      %s111 = ssub.s32 %s37, %s46
      %s112 = ssub.s32 %s36, %s50
      %s113 = sor.u32 %s111, %s112
      %p114 = scmp.eq.s32.totalorder %s113, 0
      %s116 = sadd.s32 %s115, 1
      %s117 = scalar_select %p114, %s115, %s116
      %p120 = pneg %p114
      %p121 = scmp.eq.s32.totalorder %s28, 1
      %p122 = por %p120, %p121
      %p123 = scmp.ne.s32.totalorder %s115, %s118
      %p124 = scmp.eq.s32.totalorder %s28, 0
      %p125 = por %p123, %p124
      %p126 = scmp.ne.s32.totalorder %s115, %s118
      %p127 = scmp.eq.s32.totalorder %s33, 1
      %p128 = por %p126, %p127
      %p129 = scmp.ne.s32.totalorder %s118, %s119
      %p130 = scmp.eq.s32.totalorder %s33, 0
      %p131 = por %p129, %p130
      %p132 = scmp.ne.s32.totalorder %s118, %s119
      %p133 = scmp.eq.s32.totalorder %s34, 1
      %p134 = por %p132, %p133
      %p136 = scmp.ne.s32.totalorder %s119, %s135
      %p137 = scmp.eq.s32.totalorder %s34, 0
      %p138 = por %p136, %p137
      %s139 = ssub.s32 %s37, %s46
      %s140 = ssub.s32 %s36, %s50
      %s141 = sor.u32 %s139, %s140
      %p142 = scmp.eq.s32.totalorder %s141, 0
      %s144 = sadd.s32 %s143, 1
      %s145 = scalar_select %p142, %s143, %s144
      %p148 = pneg %p142
      %p149 = scmp.eq.s32.totalorder %s28, 1
      %p150 = por %p148, %p149
      %p151 = scmp.ne.s32.totalorder %s143, %s146
      %p152 = scmp.eq.s32.totalorder %s28, 0
      %p153 = por %p151, %p152
      %p154 = scmp.ne.s32.totalorder %s143, %s146
      %p155 = scmp.eq.s32.totalorder %s33, 1
      %p156 = por %p154, %p155
      %p157 = scmp.ne.s32.totalorder %s146, %s147
      %p158 = scmp.eq.s32.totalorder %s33, 0
      %p159 = por %p157, %p158
      %p160 = scmp.ne.s32.totalorder %s146, %s147
      %p161 = scmp.eq.s32.totalorder %s34, 1
      %p162 = por %p160, %p161
      %p164 = scmp.ne.s32.totalorder %s147, %s163
      %p165 = scmp.eq.s32.totalorder %s34, 0
      %p166 = por %p164, %p165
      %s167 = ssub.s32 %s36, %s50
      %p168 = scmp.eq.s32.totalorder %s167, 0
      %s170 = sadd.s32 %s169, 1
      %s171 = scalar_select %p168, %s169, %s170
      %p174 = pneg %p168
      %p175 = scmp.eq.s32.totalorder %s28, 1
      %p176 = por %p174, %p175
      %p177 = scmp.ne.s32.totalorder %s169, %s172
      %p178 = scmp.eq.s32.totalorder %s28, 0
      %p179 = por %p177, %p178
      %p180 = scmp.ne.s32.totalorder %s169, %s172
      %p181 = scmp.eq.s32.totalorder %s33, 1
      %p182 = por %p180, %p181
      %p183 = scmp.ne.s32.totalorder %s172, %s173
      %p184 = scmp.eq.s32.totalorder %s33, 0
      %p185 = por %p183, %p184
      %p186 = scmp.ne.s32.totalorder %s172, %s173
      %p187 = scmp.eq.s32.totalorder %s34, 1
      %p188 = por %p186, %p187
      %p190 = scmp.ne.s32.totalorder %s173, %s189
      %p191 = scmp.eq.s32.totalorder %s34, 0
      %p192 = por %p190, %p191
      %s193 = ssub.s32 %s36, %s50
      %p194 = scmp.eq.s32.totalorder %s193, 0
      %s196 = sadd.s32 %s195, 1
      %s197 = scalar_select %p194, %s195, %s196
      %p200 = pneg %p194
      %p201 = scmp.eq.s32.totalorder %s28, 1
      %p202 = por %p200, %p201
      %p203 = scmp.ne.s32.totalorder %s195, %s198
      %p204 = scmp.eq.s32.totalorder %s28, 0
      %p205 = por %p203, %p204
      %p206 = scmp.ne.s32.totalorder %s195, %s198
      %p207 = scmp.eq.s32.totalorder %s33, 1
      %p208 = por %p206, %p207
      %p209 = scmp.ne.s32.totalorder %s198, %s199
      %p210 = scmp.eq.s32.totalorder %s33, 0
      %p211 = por %p209, %p210
      %p212 = scmp.ne.s32.totalorder %s198, %s199
      %p213 = scmp.eq.s32.totalorder %s34, 1
      %p214 = por %p212, %p213
      %p216 = scmp.ne.s32.totalorder %s199, %s215
      %p217 = scmp.eq.s32.totalorder %s34, 0
      %p218 = por %p216, %p217
      %s219 = ssub.s32 %s36, %s50
      %p220 = scmp.eq.s32.totalorder %s219, 0
      %s222 = sadd.s32 %s221, 1
      %s223 = scalar_select %p220, %s221, %s222
      %p226 = pneg %p220
      %p227 = scmp.eq.s32.totalorder %s28, 1
      %p228 = por %p226, %p227
      %p229 = scmp.ne.s32.totalorder %s221, %s224
      %p230 = scmp.eq.s32.totalorder %s28, 0
      %p231 = por %p229, %p230
      %p232 = scmp.ne.s32.totalorder %s221, %s224
      %p233 = scmp.eq.s32.totalorder %s33, 1
      %p234 = por %p232, %p233
      %p235 = scmp.ne.s32.totalorder %s224, %s225
      %p236 = scmp.eq.s32.totalorder %s33, 0
      %p237 = por %p235, %p236
      %p238 = scmp.ne.s32.totalorder %s224, %s225
      %p239 = scmp.eq.s32.totalorder %s34, 1
      %p240 = por %p238, %p239
      %p242 = scmp.ne.s32.totalorder %s225, %s241
      %p243 = scmp.eq.s32.totalorder %s34, 0
      %p244 = por %p242, %p243
      %s245 = ssub.s32 %s35, %s54
      %s246 = ssub.s32 %s36, %s50
      %s247 = sor.u32 %s245, %s246
      %p248 = scmp.eq.s32.totalorder %s247, 0
      %s250 = sadd.s32 %s249, 1
      %s251 = scalar_select %p248, %s249, %s250
      %p254 = pneg %p248
      %p255 = scmp.eq.s32.totalorder %s28, 1
      %p256 = por %p254, %p255
      %p257 = scmp.ne.s32.totalorder %s249, %s252
      %p258 = scmp.eq.s32.totalorder %s28, 0
      %p259 = por %p257, %p258
      %p260 = scmp.ne.s32.totalorder %s249, %s252
      %p261 = scmp.eq.s32.totalorder %s33, 1
      %p262 = por %p260, %p261
      %p263 = scmp.ne.s32.totalorder %s252, %s253
      %p264 = scmp.eq.s32.totalorder %s33, 0
      %p265 = por %p263, %p264
      %p266 = scmp.ne.s32.totalorder %s252, %s253
      %p267 = scmp.eq.s32.totalorder %s34, 1
      %p268 = por %p266, %p267
      %p270 = scmp.ne.s32.totalorder %s253, %s269
      %p271 = scmp.eq.s32.totalorder %s34, 0
      %p272 = por %p270, %p271
      %s273 = ssub.s32 %s35, %s54
      %s274 = ssub.s32 %s36, %s50
      %s275 = sor.u32 %s273, %s274
      %p276 = scmp.eq.s32.totalorder %s275, 0
      %s278 = sadd.s32 %s277, 1
      %s279 = scalar_select %p276, %s277, %s278
      %p282 = pneg %p276
      %p283 = scmp.eq.s32.totalorder %s28, 1
      %p284 = por %p282, %p283
      %p285 = scmp.ne.s32.totalorder %s277, %s280
      %p286 = scmp.eq.s32.totalorder %s28, 0
      %p287 = por %p285, %p286
      %p288 = scmp.ne.s32.totalorder %s277, %s280
      %p289 = scmp.eq.s32.totalorder %s33, 1
      %p290 = por %p288, %p289
      %p291 = scmp.ne.s32.totalorder %s280, %s281
      %p292 = scmp.eq.s32.totalorder %s33, 0
      %p293 = por %p291, %p292
      %p294 = scmp.ne.s32.totalorder %s280, %s281
      %p295 = scmp.eq.s32.totalorder %s34, 1
      %p296 = por %p294, %p295
      %p298 = scmp.ne.s32.totalorder %s281, %s297
      %p299 = scmp.eq.s32.totalorder %s34, 0
      %p300 = por %p298, %p299
      %s301 = ssub.s32 %s35, %s54
      %s302 = ssub.s32 %s36, %s50
      %s303 = sor.u32 %s301, %s302
      %p304 = scmp.eq.s32.totalorder %s303, 0
      %s306 = sadd.s32 %s305, 1
      %s307 = scalar_select %p304, %s305, %s306
      %p310 = pneg %p304
      %p311 = scmp.eq.s32.totalorder %s28, 1
      %p312 = por %p310, %p311
      %p313 = scmp.ne.s32.totalorder %s305, %s308
      %p314 = scmp.eq.s32.totalorder %s28, 0
      %p315 = por %p313, %p314
      %p316 = scmp.ne.s32.totalorder %s305, %s308
      %p317 = scmp.eq.s32.totalorder %s33, 1
      %p318 = por %p316, %p317
      %p319 = scmp.ne.s32.totalorder %s308, %s309
      %p320 = scmp.eq.s32.totalorder %s33, 0
      %p321 = por %p319, %p320
      %p322 = scmp.ne.s32.totalorder %s308, %s309
      %p323 = scmp.eq.s32.totalorder %s34, 1
      %p324 = por %p322, %p323
      %p326 = scmp.ne.s32.totalorder %s309, %s325
      %p327 = scmp.eq.s32.totalorder %s34, 0
      %p328 = por %p326, %p327
      %p329 = scmp.le.s32.totalorder 1, %s28
      %p330 = scmp.lt.s32.totalorder %s28, 3
      %p331 = pnand %p329, %p330
      %p332 = pneg %p331
      // Predicated region
      $region9: #{vtp_wrapper_forward.5} parent=5 // pred_check
        _
      $region10: #{vtp_wrapper_forward.5} parent=5 // pred_check_branch
        %334 = sbr.rel (%p331) target = $region12
      $region11: #{vtp_wrapper_forward.5} parent=5 // pred_region
        %s335 = ssub.s32 %s28, 1
        // Predicated region
        $region13: #{vtp_wrapper_forward.5} parent=11 // pred_check
          %p336 = pneg %p103
        $region14: #{vtp_wrapper_forward.5} parent=11 // pred_check_branch
          %338 = sbr.rel (%p336) target = $region16
        $region15: #{vtp_wrapper_forward.5} parent=11 // pred_region
          %s339 = smul.u32 16, %s40
          %s341 = ssub.s32 1024, 1024
          %342 = vsyncadd [#allocation9], %s341
          %s343 = sadd.s32 %s39, %s339
          %s344 = smul.addr %s343, 64
          %s345 = scalar_lea.hbm %s1, %s344
          %s346 = sshll.u32 [#allocation8], 4
          %s347 = int_to_ptr.vmem [resolvable:$true] %s346
          %352 = dma.hbm_to_vmem [thread:$0]  %s345, 1024, %s347, [#allocation9], 64, 64, 4
        $region16: #{vtp_wrapper_forward.5} parent=11 // pred_fallthru
          _
        // Predicated region
        $region17: #{vtp_wrapper_forward.5} parent=11 // pred_check
          %p353 = pneg %p131
        $region18: #{vtp_wrapper_forward.5} parent=11 // pred_check_branch
          %355 = sbr.rel (%p353) target = $region20
        $region19: #{vtp_wrapper_forward.5} parent=11 // pred_region
          %s356 = smul.u32 16, %s40
          %s358 = ssub.s32 1024, 1024
          %359 = vsyncadd [#allocation9], %s358
          %s360 = sadd.s32 %s39, %s356
          %s361 = smul.addr %s360, 64
          %s362 = scalar_lea.hbm %s2, %s361
          %s363 = sshll.u32 [#allocation10], 4
          %s364 = int_to_ptr.vmem [resolvable:$true] %s363
          %369 = dma.hbm_to_vmem [thread:$0]  %s362, 1024, %s364, [#allocation9], 64, 64, 4
        $region20: #{vtp_wrapper_forward.5} parent=11 // pred_fallthru
          _
        // Predicated region
        $region21: #{vtp_wrapper_forward.5} parent=11 // pred_check
          %p370 = pneg %p159
        $region22: #{vtp_wrapper_forward.5} parent=11 // pred_check_branch
          %372 = sbr.rel (%p370) target = $region24
        $region23: #{vtp_wrapper_forward.5} parent=11 // pred_region
          %s373 = smul.u32 16, %s40
          %s375 = ssub.s32 1024, 1024
          %376 = vsyncadd [#allocation12], %s375
          %s377 = sadd.s32 %s39, %s373
          %s378 = smul.addr %s377, 64
          %s379 = scalar_lea.hbm %s3, %s378
          %s380 = sshll.u32 [#allocation11], 4
          %s381 = int_to_ptr.vmem [resolvable:$true] %s380
          %386 = dma.hbm_to_vmem [thread:$0]  %s379, 1024, %s381, [#allocation12], 64, 64, 4
        $region24: #{vtp_wrapper_forward.5} parent=11 // pred_fallthru
          _
        // Predicated region
        $region25: #{vtp_wrapper_forward.5} parent=11 // pred_check
          %p387 = pneg %p185
        $region26: #{vtp_wrapper_forward.5} parent=11 // pred_check_branch
          %389 = sbr.rel (%p387) target = $region28
        $region27: #{vtp_wrapper_forward.5} parent=11 // pred_region
          %s391 = ssub.s32 16, 16
          %392 = vsyncadd [#allocation12], %s391
          %s393 = smul.addr %s39, 16
          %s394 = scalar_lea.hbm %s4, %s393
          %s396 = sshll.u32 [#allocation13], 4
          %s397 = int_to_ptr.vmem [resolvable:$true] %s396
          %399 = dma.hbm_to_vmem [thread:$0]  %s394, 16, %s397, [#allocation12]
        $region28: #{vtp_wrapper_forward.5} parent=11 // pred_fallthru
          _
        // Predicated region
        $region29: #{vtp_wrapper_forward.5} parent=11 // pred_check
          %p400 = pneg %p211
        $region30: #{vtp_wrapper_forward.5} parent=11 // pred_check_branch
          %402 = sbr.rel (%p400) target = $region32
        $region31: #{vtp_wrapper_forward.5} parent=11 // pred_region
          %s404 = ssub.s32 16, 16
          %405 = vsyncadd [#allocation15], %s404
          %s406 = smul.addr %s39, 16
          %s407 = scalar_lea.hbm %s5, %s406
          %s409 = sshll.u32 [#allocation14], 4
          %s410 = int_to_ptr.vmem [resolvable:$true] %s409
          %412 = dma.hbm_to_vmem [thread:$0]  %s407, 16, %s410, [#allocation15]
        $region32: #{vtp_wrapper_forward.5} parent=11 // pred_fallthru
          _
        // Predicated region
        $region33: #{vtp_wrapper_forward.5} parent=11 // pred_check
          %p413 = pneg %p237
        $region34: #{vtp_wrapper_forward.5} parent=11 // pred_check_branch
          %415 = sbr.rel (%p413) target = $region36
        $region35: #{vtp_wrapper_forward.5} parent=11 // pred_region
          %s417 = ssub.s32 16, 16
          %418 = vsyncadd [#allocation15], %s417
          %s419 = smul.addr %s39, 16
          %s420 = scalar_lea.hbm %s6, %s419
          %s422 = sshll.u32 [#allocation16], 4
          %s423 = int_to_ptr.vmem [resolvable:$true] %s422
          %425 = dma.hbm_to_vmem [thread:$0]  %s420, 16, %s423, [#allocation15]
        $region36: #{vtp_wrapper_forward.5} parent=11 // pred_fallthru
          _
      $region12: #{vtp_wrapper_forward.5} parent=5 // pred_fallthru
        _
      %p426 = scmp.lt.s32.totalorder %s28, 2
      // Predicated region
      $region37: #{vtp_wrapper_forward.5} parent=5 // pred_check
        %p427 = pneg %p426
      $region38: #{vtp_wrapper_forward.5} parent=5 // pred_check_branch
        %429 = sbr.rel (%p427) target = $region40
      $region39: #{vtp_wrapper_forward.5} parent=5 // pred_region
        // Predicated region
        $region41: #{vtp_wrapper_forward.5} parent=39 // pred_check
          %p430 = pneg %p69
        $region42: #{vtp_wrapper_forward.5} parent=39 // pred_check_branch
          %432 = sbr.rel (%p430) target = $region44
        $region43: #{vtp_wrapper_forward.5} parent=39 // pred_region
          %s433 = sand.u32 %s59, 1
          %s434 = scalar_lea.sflag [#allocation6], %s433
          %s435 = sand.u32 %s59, 1
          %s436 = smul.addr %s435, 32
          %s437 = scalar_lea.vmem [#allocation5], %s436
          %s438 = smul.u32 8, %s35
          %s440 = ssub.s32 512, 512
          %441 = vsyncadd %s434, %s440
          %s442 = sadd.s32 %s37, %s438
          %s443 = smul.addr %s442, 64
          %s444 = scalar_lea.hbm %s0, %s443
          %s445 = sshll.u32 %s437, 4
          %s446 = int_to_ptr.vmem [resolvable:$true] %s445
          %451 = dma.hbm_to_vmem [thread:$0]  %s444, 512, %s446, %s434, 64, 64, 4
        $region44: #{vtp_wrapper_forward.5} parent=39 // pred_fallthru
          _
      $region40: #{vtp_wrapper_forward.5} parent=5 // pred_fallthru
        _
      %p452 = scmp.le.s32.totalorder 1, %s28
      %p453 = scmp.lt.s32.totalorder %s28, 3
      %p454 = pnand %p452, %p453
      %p455 = pneg %p454
      // Predicated region
      $region45: #{vtp_wrapper_forward.5} parent=5 // pred_check
        _
      $region46: #{vtp_wrapper_forward.5} parent=5 // pred_check_branch
        %457 = sbr.rel (%p454) target = $region48
      $region47: #{vtp_wrapper_forward.5} parent=5 // pred_region
        %s458 = ssub.s32 %s28, 1
        %s459 = sand.u32 %s62, 1
        %s460 = scalar_lea.sflag [#allocation6], %s459
        %s461 = sand.u32 %s62, 1
        %s462 = smul.addr %s461, 32
        %s463 = scalar_lea.vmem [#allocation5], %s462
        // Predicated region
        $region49: #{vtp_wrapper_forward.5} parent=47 // pred_check
          %p464 = pneg %p75
        $region50: #{vtp_wrapper_forward.5} parent=47 // pred_check_branch
          %466 = sbr.rel (%p464) target = $region52
        $region51: #{vtp_wrapper_forward.5} parent=47 // pred_region
          %467 = dma.done %s460, 512
        $region52: #{vtp_wrapper_forward.5} parent=47 // pred_fallthru
          _
        // Predicated region
        $region53: #{vtp_wrapper_forward.5} parent=47 // pred_check
          %p468 = pneg %p103
        $region54: #{vtp_wrapper_forward.5} parent=47 // pred_check_branch
          %470 = sbr.rel (%p468) target = $region56
        $region55: #{vtp_wrapper_forward.5} parent=47 // pred_region
          %471 = dma.done [#allocation9], 1024
        $region56: #{vtp_wrapper_forward.5} parent=47 // pred_fallthru
          _
        // Predicated region
        $region57: #{vtp_wrapper_forward.5} parent=47 // pred_check
          %p472 = pneg %p131
        $region58: #{vtp_wrapper_forward.5} parent=47 // pred_check_branch
          %474 = sbr.rel (%p472) target = $region60
        $region59: #{vtp_wrapper_forward.5} parent=47 // pred_region
          %475 = dma.done [#allocation9], 1024
        $region60: #{vtp_wrapper_forward.5} parent=47 // pred_fallthru
          _
        // Predicated region
        $region61: #{vtp_wrapper_forward.5} parent=47 // pred_check
          %p476 = pneg %p159
        $region62: #{vtp_wrapper_forward.5} parent=47 // pred_check_branch
          %478 = sbr.rel (%p476) target = $region64
        $region63: #{vtp_wrapper_forward.5} parent=47 // pred_region
          %479 = dma.done [#allocation12], 1024
        $region64: #{vtp_wrapper_forward.5} parent=47 // pred_fallthru
          _
        // Predicated region
        $region65: #{vtp_wrapper_forward.5} parent=47 // pred_check
          %p480 = pneg %p185
        $region66: #{vtp_wrapper_forward.5} parent=47 // pred_check_branch
          %482 = sbr.rel (%p480) target = $region68
        $region67: #{vtp_wrapper_forward.5} parent=47 // pred_region
          %483 = dma.done [#allocation12], 16
        $region68: #{vtp_wrapper_forward.5} parent=47 // pred_fallthru
          _
        // Predicated region
        $region69: #{vtp_wrapper_forward.5} parent=47 // pred_check
          %p484 = pneg %p211
        $region70: #{vtp_wrapper_forward.5} parent=47 // pred_check_branch
          %486 = sbr.rel (%p484) target = $region72
        $region71: #{vtp_wrapper_forward.5} parent=47 // pred_region
          %487 = dma.done [#allocation15], 16
        $region72: #{vtp_wrapper_forward.5} parent=47 // pred_fallthru
          _
        // Predicated region
        $region73: #{vtp_wrapper_forward.5} parent=47 // pred_check
          %p488 = pneg %p237
        $region74: #{vtp_wrapper_forward.5} parent=47 // pred_check_branch
          %490 = sbr.rel (%p488) target = $region76
        $region75: #{vtp_wrapper_forward.5} parent=47 // pred_region
          %491 = dma.done [#allocation15], 16
        $region76: #{vtp_wrapper_forward.5} parent=47 // pred_fallthru
          _
        %s492 = sand.u32 %s62, 1
        %s493 = scalar_lea.sflag [#allocation6], %s492
        %s494 = sand.u32 %s62, 1
        %s495 = smul.addr %s494, 32
        %s496 = scalar_lea.vmem [#allocation5], %s495
        %p497 = pneg %p75
        %p498 = pneg %p72
        %p499 = pneg %p103
        %p500 = pneg %p100
        %p501 = pneg %p131
        %p502 = pneg %p128
        %p503 = pneg %p159
        %p504 = pneg %p156
        %p505 = pneg %p185
        %p506 = pneg %p182
        %p507 = pneg %p211
        %p508 = pneg %p208
        %p509 = pneg %p237
        %p510 = pneg %p234
        %p511 = pneg %p265
        %p512 = pneg %p262
        %s513 = sand.u32 %s252, 1
        %s514 = scalar_lea.sflag [#allocation7], %s513
        %s515 = sand.u32 %s252, 1
        %s516 = smul.addr %s515, 32
        %s517 = scalar_lea.vmem [#allocation17], %s516
        %p518 = pneg %p293
        %p519 = pneg %p290
        %s520 = sand.u32 %s33, 1
        %s521 = scalar_lea.sflag [#allocation19], %s520
        %s522 = sand.u32 %s280, 1
        %s523 = smul.addr %s522, 32
        %s524 = scalar_lea.vmem [#allocation18], %s523
        %p525 = pneg %p321
        %p526 = pneg %p318
        %s527 = sand.u32 %s33, 1
        %s528 = scalar_lea.sflag [#allocation19], %s527
        %s529 = sand.u32 %s308, 1
        %s530 = smul.addr %s529, 32
        %s531 = scalar_lea.vmem [#allocation20], %s530
        %s532 = smul.u32 8, %s38
        %s533 = smul.u32 16, %s40
        %s534 = smul.u32 16, %s40
        %s535 = smul.u32 16, %s40
        %s536 = smul.u32 8, %s38
        %s537 = smul.u32 8, %s38
        %s538 = smul.u32 8, %s38
        %p540 = scmp.eq.s32.totalorder %s40, 0
        // Predicated region
        $region77: #{vtp_wrapper_forward.5} parent=47 // pred_check
          %p541 = pneg %p540
        $region78: #{vtp_wrapper_forward.5} parent=47 // pred_check_branch
          %543 = sbr.rel (%p541) target = $region80
        $region79: #{vtp_wrapper_forward.5} parent=47 // pred_region
          %544 = vst [vmem:[#allocation2] sm:$0xff] 0.0
          %545 = vst [vmem:[#allocation2 + $0x8] sm:$0xff] 0.0
          %546 = vst [vmem:[#allocation2 + $0x10] sm:$0xff] 0.0
          %547 = vst [vmem:[#allocation2 + $0x18] sm:$0xff] 0.0
          %548 = vst [vmem:[#allocation2 + $0x20] sm:$0xff] 0.0
          %549 = vst [vmem:[#allocation2 + $0x28] sm:$0xff] 0.0
          %550 = vst [vmem:[#allocation2 + $0x30] sm:$0xff] 0.0
          %551 = vst [vmem:[#allocation2 + $0x38] sm:$0xff] 0.0
          %552 = vst [vmem:[#allocation3] sm:$0xff] 0.0
          %553 = vst [vmem:[#allocation3 + $0x8] sm:$0xff] 0.0
          %554 = vst [vmem:[#allocation3 + $0x10] sm:$0xff] 0.0
          %555 = vst [vmem:[#allocation3 + $0x18] sm:$0xff] 0.0
          %556 = vst [vmem:[#allocation3 + $0x20] sm:$0xff] 0.0
          %557 = vst [vmem:[#allocation3 + $0x28] sm:$0xff] 0.0
          %558 = vst [vmem:[#allocation3 + $0x30] sm:$0xff] 0.0
          %559 = vst [vmem:[#allocation3 + $0x38] sm:$0xff] 0.0
          %560 = vst [vmem:[#allocation4] sm:$0xff] 0.0
          %561 = vst [vmem:[#allocation4 + $0x8] sm:$0xff] 0.0
          %562 = vst [vmem:[#allocation4 + $0x10] sm:$0xff] 0.0
          %563 = vst [vmem:[#allocation4 + $0x18] sm:$0xff] 0.0
          %564 = vst [vmem:[#allocation4 + $0x20] sm:$0xff] 0.0
          %565 = vst [vmem:[#allocation4 + $0x28] sm:$0xff] 0.0
          %566 = vst [vmem:[#allocation4 + $0x30] sm:$0xff] 0.0
          %567 = vst [vmem:[#allocation4 + $0x38] sm:$0xff] 0.0
        $region80: #{vtp_wrapper_forward.5} parent=47 // pred_fallthru
          _
        %v568 = vld [vmem:[%s463] sm:$0xf]
        %v569 = vld [vmem:[%s463 + $0x4] sm:$0xf]
        %v570 = vld [vmem:[%s463 + $0x8] sm:$0xf]
        %v571 = vld [vmem:[%s463 + $0xc] sm:$0xf]
        %v572 = vld [vmem:[%s463 + $0x10] sm:$0xf]
        %v573 = vld [vmem:[%s463 + $0x14] sm:$0xf]
        %v574 = vld [vmem:[%s463 + $0x18] sm:$0xf]
        %v575 = vld [vmem:[%s463 + $0x1c] sm:$0xf]
        %v576 = vld [vmem:[#allocation2] sm:$0xff]
        %v577 = vld [vmem:[#allocation2 + $0x8] sm:$0xff]
        %v578 = vld [vmem:[#allocation2 + $0x10] sm:$0xff]
        %v579 = vld [vmem:[#allocation2 + $0x18] sm:$0xff]
        %v580 = vld [vmem:[#allocation2 + $0x20] sm:$0xff]
        %v581 = vld [vmem:[#allocation2 + $0x28] sm:$0xff]
        %v582 = vld [vmem:[#allocation2 + $0x30] sm:$0xff]
        %v583 = vld [vmem:[#allocation2 + $0x38] sm:$0xff]
        %v584 = vld [vmem:[#allocation8] sm:$0xf]
        %v585 = vld [vmem:[#allocation8 + $0x4] sm:$0xf]
        %v586 = vld [vmem:[#allocation8 + $0x8] sm:$0xf]
        %v587 = vld [vmem:[#allocation8 + $0xc] sm:$0xf]
        %v588 = vld [vmem:[#allocation8 + $0x10] sm:$0xf]
        %v589 = vld [vmem:[#allocation8 + $0x14] sm:$0xf]
        %v590 = vld [vmem:[#allocation8 + $0x18] sm:$0xf]
        %v591 = vld [vmem:[#allocation8 + $0x1c] sm:$0xf]
        %v592 = vld [vmem:[#allocation8 + $0x20] sm:$0xf]
        %v593 = vld [vmem:[#allocation8 + $0x24] sm:$0xf]
        %v594 = vld [vmem:[#allocation8 + $0x28] sm:$0xf]
        %v595 = vld [vmem:[#allocation8 + $0x2c] sm:$0xf]
        %v596 = vld [vmem:[#allocation8 + $0x30] sm:$0xf]
        %v597 = vld [vmem:[#allocation8 + $0x34] sm:$0xf]
        %v598 = vld [vmem:[#allocation8 + $0x38] sm:$0xf]
        %v599 = vld [vmem:[#allocation8 + $0x3c] sm:$0xf]
        %v608 = vunpack.c.l.b16 %v568
        %v609 = vunpack.c.l.b16 %v569
        %v610 = vunpack.c.l.b16 %v570
        %v611 = vunpack.c.l.b16 %v571
        %v612 = vunpack.c.l.b16 %v572
        %v613 = vunpack.c.l.b16 %v573
        %v614 = vunpack.c.l.b16 %v574
        %v615 = vunpack.c.l.b16 %v575
        %v616 = vpack.c.b16 %v609, %v608
        %v617 = vpack.c.b16 %v611, %v610
        %v618 = vpack.c.b16 %v613, %v612
        %v619 = vpack.c.b16 %v615, %v614
        %v640 = vunpack.c.l.b16 %v584
        %v641 = vunpack.c.l.b16 %v585
        %v642 = vunpack.c.l.b16 %v586
        %v643 = vunpack.c.l.b16 %v587
        %v644 = vunpack.c.l.b16 %v588
        %v645 = vunpack.c.l.b16 %v589
        %v646 = vunpack.c.l.b16 %v590
        %v647 = vunpack.c.l.b16 %v591
        %v648 = vunpack.c.l.b16 %v592
        %v649 = vunpack.c.l.b16 %v593
        %v650 = vunpack.c.l.b16 %v594
        %v651 = vunpack.c.l.b16 %v595
        %v652 = vunpack.c.l.b16 %v596
        %v653 = vunpack.c.l.b16 %v597
        %v654 = vunpack.c.l.b16 %v598
        %v655 = vunpack.c.l.b16 %v599
        %v656 = vpack.c.b16 %v641, %v640
        %v657 = vpack.c.b16 %v643, %v642
        %v658 = vpack.c.b16 %v645, %v644
        %v659 = vpack.c.b16 %v647, %v646
        %v660 = vpack.c.b16 %v649, %v648
        %v661 = vpack.c.b16 %v651, %v650
        %v662 = vpack.c.b16 %v653, %v652
        %v663 = vpack.c.b16 %v655, %v654
        %672 = vmatprep.subr.bf16.mxu0 0
        %673 = vmatpush1.bf16.msra.mxu0 %v656
        %674 = vmatprep.subr.bf16.mxu0 0
        %675 = vmatpush1.bf16.msra.mxu0 %v657
        %676 = vmatprep.subr.bf16.mxu0 0
        %677 = vmatpush1.bf16.msra.mxu0 %v658
        %678 = vmatprep.subr.bf16.mxu0 0
        %679 = vmatpush1.bf16.msra.mxu0 %v659
        %680 = vmatprep.subr.bf16.mxu0 0
        %681 = vmatpush1.bf16.msra.mxu0 %v660
        %682 = vmatprep.subr.bf16.mxu0 0
        %683 = vmatpush1.bf16.msra.mxu0 %v661
        %684 = vmatprep.subr.bf16.mxu0 0
        %685 = vmatpush1.bf16.msra.mxu0 %v662
        %686 = vmatprep.subr.bf16.mxu0 0
        %687 = vmatpush1.bf16.msra.mxu0 %v663
        %688 = vmatprep.subr.bf16.mxu0 0
        %689 = vmatpush1.bf16.msra.mxu0 0
        %690 = vmatprep.subr.bf16.mxu0 0
        %691 = vmatpush1.bf16.msra.mxu0 0
        %692 = vmatprep.subr.bf16.mxu0 0
        %693 = vmatpush1.bf16.msra.mxu0 0
        %694 = vmatprep.subr.bf16.mxu0 0
        %695 = vmatpush1.bf16.msra.mxu0 0
        %696 = vmatprep.subr.bf16.mxu0 0
        %697 = vmatpush1.bf16.msra.mxu0 0
        %698 = vmatprep.subr.bf16.mxu0 0
        %699 = vmatpush1.bf16.msra.mxu0 0
        %700 = vmatprep.subr.bf16.mxu0 0
        %701 = vmatpush1.bf16.msra.mxu0 0
        %702 = vmatprep.subr.bf16.mxu0 0
        %703 = vmatpush1.bf16.msra.mxu0 0
        %704 = vmatprep.mubr.bf16.mxu0 0
        %705 = vmatmul.mubr.bf16.gmra.mrb[0].mxu0 %v616
        %v706 = vpop.f32.mrb[0].mxu0
        %v707 = vadd.f32 0.0, %v706
        %v708 = vpop.f32.mrb[0].mxu0
        %v709 = vpop.f32.mrb[0].mxu0
        %v710 = vadd.f32 0.0, %v709
        %v711 = vpop.f32.mrb[0].mxu0
        %712 = vmatprep.mubr.bf16.mxu0 0
        %713 = vmatmul.mubr.bf16.gmra.mrb[0].mxu0 %v617
        %v714 = vpop.f32.mrb[0].mxu0
        %v715 = vadd.f32 0.0, %v714
        %v716 = vpop.f32.mrb[0].mxu0
        %v717 = vpop.f32.mrb[0].mxu0
        %v718 = vadd.f32 0.0, %v717
        %v719 = vpop.f32.mrb[0].mxu0
        %720 = vmatprep.mubr.bf16.mxu0 0
        %721 = vmatmul.mubr.bf16.gmra.mrb[0].mxu0 %v618
        %v722 = vpop.f32.mrb[0].mxu0
        %v723 = vadd.f32 0.0, %v722
        %v724 = vpop.f32.mrb[0].mxu0
        %v725 = vpop.f32.mrb[0].mxu0
        %v726 = vadd.f32 0.0, %v725
        %v727 = vpop.f32.mrb[0].mxu0
        %728 = vmatprep.mubr.bf16.mxu0 0
        %729 = vmatmul.mubr.bf16.gmra.mrb[0].mxu0 %v619
        %v730 = vpop.f32.mrb[0].mxu0
        %v731 = vadd.f32 0.0, %v730
        %v732 = vpop.f32.mrb[0].mxu0
        %v733 = vpop.f32.mrb[0].mxu0
        %v734 = vadd.f32 0.0, %v733
        %v735 = vpop.f32.mrb[0].mxu0
        %736 = vdwg.mxu0
        %v737 = vadd.f32 %v576, %v707
        %v738 = vadd.f32 %v577, %v710
        %v739 = vadd.f32 %v578, %v715
        %v740 = vadd.f32 %v579, %v718
        %v741 = vadd.f32 %v580, %v723
        %v742 = vadd.f32 %v581, %v726
        %v743 = vadd.f32 %v582, %v731
        %v744 = vadd.f32 %v583, %v734
        %745 = vst [vmem:[#allocation2] sm:$0xff] %v737
        %746 = vst [vmem:[#allocation2 + $0x8] sm:$0xff] %v738
        %747 = vst [vmem:[#allocation2 + $0x10] sm:$0xff] %v739
        %748 = vst [vmem:[#allocation2 + $0x18] sm:$0xff] %v740
        %749 = vst [vmem:[#allocation2 + $0x20] sm:$0xff] %v741
        %750 = vst [vmem:[#allocation2 + $0x28] sm:$0xff] %v742
        %751 = vst [vmem:[#allocation2 + $0x30] sm:$0xff] %v743
        %752 = vst [vmem:[#allocation2 + $0x38] sm:$0xff] %v744
        %v753 = vld [vmem:[#allocation3] sm:$0xff]
        %v754 = vld [vmem:[#allocation3 + $0x8] sm:$0xff]
        %v755 = vld [vmem:[#allocation3 + $0x10] sm:$0xff]
        %v756 = vld [vmem:[#allocation3 + $0x18] sm:$0xff]
        %v757 = vld [vmem:[#allocation3 + $0x20] sm:$0xff]
        %v758 = vld [vmem:[#allocation3 + $0x28] sm:$0xff]
        %v759 = vld [vmem:[#allocation3 + $0x30] sm:$0xff]
        %v760 = vld [vmem:[#allocation3 + $0x38] sm:$0xff]
        %v761 = vld [vmem:[#allocation10] sm:$0xf]
        %v762 = vld [vmem:[#allocation10 + $0x4] sm:$0xf]
        %v763 = vld [vmem:[#allocation10 + $0x8] sm:$0xf]
        %v764 = vld [vmem:[#allocation10 + $0xc] sm:$0xf]
        %v765 = vld [vmem:[#allocation10 + $0x10] sm:$0xf]
        %v766 = vld [vmem:[#allocation10 + $0x14] sm:$0xf]
        %v767 = vld [vmem:[#allocation10 + $0x18] sm:$0xf]
        %v768 = vld [vmem:[#allocation10 + $0x1c] sm:$0xf]
        %v769 = vld [vmem:[#allocation10 + $0x20] sm:$0xf]
        %v770 = vld [vmem:[#allocation10 + $0x24] sm:$0xf]
        %v771 = vld [vmem:[#allocation10 + $0x28] sm:$0xf]
        %v772 = vld [vmem:[#allocation10 + $0x2c] sm:$0xf]
        %v773 = vld [vmem:[#allocation10 + $0x30] sm:$0xf]
        %v774 = vld [vmem:[#allocation10 + $0x34] sm:$0xf]
        %v775 = vld [vmem:[#allocation10 + $0x38] sm:$0xf]
        %v776 = vld [vmem:[#allocation10 + $0x3c] sm:$0xf]
        %v793 = vunpack.c.l.b16 %v761
        %v794 = vunpack.c.l.b16 %v762
        %v795 = vunpack.c.l.b16 %v763
        %v796 = vunpack.c.l.b16 %v764
        %v797 = vunpack.c.l.b16 %v765
        %v798 = vunpack.c.l.b16 %v766
        %v799 = vunpack.c.l.b16 %v767
        %v800 = vunpack.c.l.b16 %v768
        %v801 = vunpack.c.l.b16 %v769
        %v802 = vunpack.c.l.b16 %v770
        %v803 = vunpack.c.l.b16 %v771
        %v804 = vunpack.c.l.b16 %v772
        %v805 = vunpack.c.l.b16 %v773
        %v806 = vunpack.c.l.b16 %v774
        %v807 = vunpack.c.l.b16 %v775
        %v808 = vunpack.c.l.b16 %v776
        %v809 = vpack.c.b16 %v794, %v793
        %v810 = vpack.c.b16 %v796, %v795
        %v811 = vpack.c.b16 %v798, %v797
        %v812 = vpack.c.b16 %v800, %v799
        %v813 = vpack.c.b16 %v802, %v801
        %v814 = vpack.c.b16 %v804, %v803
        %v815 = vpack.c.b16 %v806, %v805
        %v816 = vpack.c.b16 %v808, %v807
        %825 = vmatprep.subr.bf16.mxu0 0
        %826 = vmatpush1.bf16.msra.mxu0 %v809
        %827 = vmatprep.subr.bf16.mxu0 0
        %828 = vmatpush1.bf16.msra.mxu0 %v810
        %829 = vmatprep.subr.bf16.mxu0 0
        %830 = vmatpush1.bf16.msra.mxu0 %v811
        %831 = vmatprep.subr.bf16.mxu0 0
        %832 = vmatpush1.bf16.msra.mxu0 %v812
        %833 = vmatprep.subr.bf16.mxu0 0
        %834 = vmatpush1.bf16.msra.mxu0 %v813
        %835 = vmatprep.subr.bf16.mxu0 0
        %836 = vmatpush1.bf16.msra.mxu0 %v814
        %837 = vmatprep.subr.bf16.mxu0 0
        %838 = vmatpush1.bf16.msra.mxu0 %v815
        %839 = vmatprep.subr.bf16.mxu0 0
        %840 = vmatpush1.bf16.msra.mxu0 %v816
        %841 = vmatprep.subr.bf16.mxu0 0
        %842 = vmatpush1.bf16.msra.mxu0 0
        %843 = vmatprep.subr.bf16.mxu0 0
        %844 = vmatpush1.bf16.msra.mxu0 0
        %845 = vmatprep.subr.bf16.mxu0 0
        %846 = vmatpush1.bf16.msra.mxu0 0
        %847 = vmatprep.subr.bf16.mxu0 0
        %848 = vmatpush1.bf16.msra.mxu0 0
        %849 = vmatprep.subr.bf16.mxu0 0
        %850 = vmatpush1.bf16.msra.mxu0 0
        %851 = vmatprep.subr.bf16.mxu0 0
        %852 = vmatpush1.bf16.msra.mxu0 0
        %853 = vmatprep.subr.bf16.mxu0 0
        %854 = vmatpush1.bf16.msra.mxu0 0
        %855 = vmatprep.subr.bf16.mxu0 0
        %856 = vmatpush1.bf16.msra.mxu0 0
        %857 = vmatprep.mubr.bf16.mxu0 0
        %858 = vmatmul.mubr.bf16.gmra.mrb[0].mxu0 %v616
        %v859 = vpop.f32.mrb[0].mxu0
        %v860 = vadd.f32 0.0, %v859
        %v861 = vpop.f32.mrb[0].mxu0
        %v862 = vpop.f32.mrb[0].mxu0
        %v863 = vadd.f32 0.0, %v862
        %v864 = vpop.f32.mrb[0].mxu0
        %865 = vmatprep.mubr.bf16.mxu0 0
        %866 = vmatmul.mubr.bf16.gmra.mrb[0].mxu0 %v617
        %v867 = vpop.f32.mrb[0].mxu0
        %v868 = vadd.f32 0.0, %v867
        %v869 = vpop.f32.mrb[0].mxu0
        %v870 = vpop.f32.mrb[0].mxu0
        %v871 = vadd.f32 0.0, %v870
        %v872 = vpop.f32.mrb[0].mxu0
        %873 = vmatprep.mubr.bf16.mxu0 0
        %874 = vmatmul.mubr.bf16.gmra.mrb[0].mxu0 %v618
        %v875 = vpop.f32.mrb[0].mxu0
        %v876 = vadd.f32 0.0, %v875
        %v877 = vpop.f32.mrb[0].mxu0
        %v878 = vpop.f32.mrb[0].mxu0
        %v879 = vadd.f32 0.0, %v878
        %v880 = vpop.f32.mrb[0].mxu0
        %881 = vmatprep.mubr.bf16.mxu0 0
        %882 = vmatmul.mubr.bf16.gmra.mrb[0].mxu0 %v619
        %v883 = vpop.f32.mrb[0].mxu0
        %v884 = vadd.f32 0.0, %v883
        %v885 = vpop.f32.mrb[0].mxu0
        %v886 = vpop.f32.mrb[0].mxu0
        %v887 = vadd.f32 0.0, %v886
        %v888 = vpop.f32.mrb[0].mxu0
        %889 = vdwg.mxu0
        %v890 = vadd.f32 %v753, %v860
        %v891 = vadd.f32 %v754, %v863
        %v892 = vadd.f32 %v755, %v868
        %v893 = vadd.f32 %v756, %v871
        %v894 = vadd.f32 %v757, %v876
        %v895 = vadd.f32 %v758, %v879
        %v896 = vadd.f32 %v759, %v884
        %v897 = vadd.f32 %v760, %v887
        %898 = vst [vmem:[#allocation3] sm:$0xff] %v890
        %899 = vst [vmem:[#allocation3 + $0x8] sm:$0xff] %v891
        %900 = vst [vmem:[#allocation3 + $0x10] sm:$0xff] %v892
        %901 = vst [vmem:[#allocation3 + $0x18] sm:$0xff] %v893
        %902 = vst [vmem:[#allocation3 + $0x20] sm:$0xff] %v894
        %903 = vst [vmem:[#allocation3 + $0x28] sm:$0xff] %v895
        %904 = vst [vmem:[#allocation3 + $0x30] sm:$0xff] %v896
        %905 = vst [vmem:[#allocation3 + $0x38] sm:$0xff] %v897
        %v906 = vld [vmem:[#allocation4] sm:$0xff]
        %v907 = vld [vmem:[#allocation4 + $0x8] sm:$0xff]
        %v908 = vld [vmem:[#allocation4 + $0x10] sm:$0xff]
        %v909 = vld [vmem:[#allocation4 + $0x18] sm:$0xff]
        %v910 = vld [vmem:[#allocation4 + $0x20] sm:$0xff]
        %v911 = vld [vmem:[#allocation4 + $0x28] sm:$0xff]
        %v912 = vld [vmem:[#allocation4 + $0x30] sm:$0xff]
        %v913 = vld [vmem:[#allocation4 + $0x38] sm:$0xff]
        %v914 = vld [vmem:[#allocation11] sm:$0xf]
        %v915 = vld [vmem:[#allocation11 + $0x4] sm:$0xf]
        %v916 = vld [vmem:[#allocation11 + $0x8] sm:$0xf]
        %v917 = vld [vmem:[#allocation11 + $0xc] sm:$0xf]
        %v918 = vld [vmem:[#allocation11 + $0x10] sm:$0xf]
        %v919 = vld [vmem:[#allocation11 + $0x14] sm:$0xf]
        %v920 = vld [vmem:[#allocation11 + $0x18] sm:$0xf]
        %v921 = vld [vmem:[#allocation11 + $0x1c] sm:$0xf]
        %v922 = vld [vmem:[#allocation11 + $0x20] sm:$0xf]
        %v923 = vld [vmem:[#allocation11 + $0x24] sm:$0xf]
        %v924 = vld [vmem:[#allocation11 + $0x28] sm:$0xf]
        %v925 = vld [vmem:[#allocation11 + $0x2c] sm:$0xf]
        %v926 = vld [vmem:[#allocation11 + $0x30] sm:$0xf]
        %v927 = vld [vmem:[#allocation11 + $0x34] sm:$0xf]
        %v928 = vld [vmem:[#allocation11 + $0x38] sm:$0xf]
        %v929 = vld [vmem:[#allocation11 + $0x3c] sm:$0xf]
        %v946 = vunpack.c.l.b16 %v914
        %v947 = vunpack.c.l.b16 %v915
        %v948 = vunpack.c.l.b16 %v916
        %v949 = vunpack.c.l.b16 %v917
        %v950 = vunpack.c.l.b16 %v918
        %v951 = vunpack.c.l.b16 %v919
        %v952 = vunpack.c.l.b16 %v920
        %v953 = vunpack.c.l.b16 %v921
        %v954 = vunpack.c.l.b16 %v922
        %v955 = vunpack.c.l.b16 %v923
        %v956 = vunpack.c.l.b16 %v924
        %v957 = vunpack.c.l.b16 %v925
        %v958 = vunpack.c.l.b16 %v926
        %v959 = vunpack.c.l.b16 %v927
        %v960 = vunpack.c.l.b16 %v928
        %v961 = vunpack.c.l.b16 %v929
        %v962 = vpack.c.b16 %v947, %v946
        %v963 = vpack.c.b16 %v949, %v948
        %v964 = vpack.c.b16 %v951, %v950
        %v965 = vpack.c.b16 %v953, %v952
        %v966 = vpack.c.b16 %v955, %v954
        %v967 = vpack.c.b16 %v957, %v956
        %v968 = vpack.c.b16 %v959, %v958
        %v969 = vpack.c.b16 %v961, %v960
        %978 = vmatprep.subr.bf16.mxu0 0
        %979 = vmatpush1.bf16.msra.mxu0 %v962
        %980 = vmatprep.subr.bf16.mxu0 0
        %981 = vmatpush1.bf16.msra.mxu0 %v963
        %982 = vmatprep.subr.bf16.mxu0 0
        %983 = vmatpush1.bf16.msra.mxu0 %v964
        %984 = vmatprep.subr.bf16.mxu0 0
        %985 = vmatpush1.bf16.msra.mxu0 %v965
        %986 = vmatprep.subr.bf16.mxu0 0
        %987 = vmatpush1.bf16.msra.mxu0 %v966
        %988 = vmatprep.subr.bf16.mxu0 0
        %989 = vmatpush1.bf16.msra.mxu0 %v967
        %990 = vmatprep.subr.bf16.mxu0 0
        %991 = vmatpush1.bf16.msra.mxu0 %v968
        %992 = vmatprep.subr.bf16.mxu0 0
        %993 = vmatpush1.bf16.msra.mxu0 %v969
        %994 = vmatprep.subr.bf16.mxu0 0
        %995 = vmatpush1.bf16.msra.mxu0 0
        %996 = vmatprep.subr.bf16.mxu0 0
        %997 = vmatpush1.bf16.msra.mxu0 0
        %998 = vmatprep.subr.bf16.mxu0 0
        %999 = vmatpush1.bf16.msra.mxu0 0
        %1000 = vmatprep.subr.bf16.mxu0 0
        %1001 = vmatpush1.bf16.msra.mxu0 0
        %1002 = vmatprep.subr.bf16.mxu0 0
        %1003 = vmatpush1.bf16.msra.mxu0 0
        %1004 = vmatprep.subr.bf16.mxu0 0
        %1005 = vmatpush1.bf16.msra.mxu0 0
        %1006 = vmatprep.subr.bf16.mxu0 0
        %1007 = vmatpush1.bf16.msra.mxu0 0
        %1008 = vmatprep.subr.bf16.mxu0 0
        %1009 = vmatpush1.bf16.msra.mxu0 0
        %1010 = vmatprep.mubr.bf16.mxu0 0
        %1011 = vmatmul.mubr.bf16.gmra.mrb[0].mxu0 %v616
        %v1012 = vpop.f32.mrb[0].mxu0
        %v1013 = vadd.f32 0.0, %v1012
        %v1014 = vpop.f32.mrb[0].mxu0
        %v1015 = vpop.f32.mrb[0].mxu0
        %v1016 = vadd.f32 0.0, %v1015
        %v1017 = vpop.f32.mrb[0].mxu0
        %1018 = vmatprep.mubr.bf16.mxu0 0
        %1019 = vmatmul.mubr.bf16.gmra.mrb[0].mxu0 %v617
        %v1020 = vpop.f32.mrb[0].mxu0
        %v1021 = vadd.f32 0.0, %v1020
        %v1022 = vpop.f32.mrb[0].mxu0
        %v1023 = vpop.f32.mrb[0].mxu0
        %v1024 = vadd.f32 0.0, %v1023
        %v1025 = vpop.f32.mrb[0].mxu0
        %1026 = vmatprep.mubr.bf16.mxu0 0
        %1027 = vmatmul.mubr.bf16.gmra.mrb[0].mxu0 %v618
        %v1028 = vpop.f32.mrb[0].mxu0
        %v1029 = vadd.f32 0.0, %v1028
        %v1030 = vpop.f32.mrb[0].mxu0
        %v1031 = vpop.f32.mrb[0].mxu0
        %v1032 = vadd.f32 0.0, %v1031
        %v1033 = vpop.f32.mrb[0].mxu0
        %1034 = vmatprep.mubr.bf16.mxu0 0
        %1035 = vmatmul.mubr.bf16.gmra.mrb[0].mxu0 %v619
        %v1036 = vpop.f32.mrb[0].mxu0
        %v1037 = vadd.f32 0.0, %v1036
        %v1038 = vpop.f32.mrb[0].mxu0
        %v1039 = vpop.f32.mrb[0].mxu0
        %v1040 = vadd.f32 0.0, %v1039
        %v1041 = vpop.f32.mrb[0].mxu0
        %1042 = vdwg.mxu0
        %v1043 = vadd.f32 %v906, %v1013
        %v1044 = vadd.f32 %v907, %v1016
        %v1045 = vadd.f32 %v908, %v1021
        %v1046 = vadd.f32 %v909, %v1024
        %v1047 = vadd.f32 %v910, %v1029
        %v1048 = vadd.f32 %v911, %v1032
        %v1049 = vadd.f32 %v912, %v1037
        %v1050 = vadd.f32 %v913, %v1040
        %1051 = vst [vmem:[#allocation4] sm:$0xff] %v1043
        %1052 = vst [vmem:[#allocation4 + $0x8] sm:$0xff] %v1044
        %1053 = vst [vmem:[#allocation4 + $0x10] sm:$0xff] %v1045
        %1054 = vst [vmem:[#allocation4 + $0x18] sm:$0xff] %v1046
        %1055 = vst [vmem:[#allocation4 + $0x20] sm:$0xff] %v1047
        %1056 = vst [vmem:[#allocation4 + $0x28] sm:$0xff] %v1048
        %1057 = vst [vmem:[#allocation4 + $0x30] sm:$0xff] %v1049
        %1058 = vst [vmem:[#allocation4 + $0x38] sm:$0xff] %v1050
        // Predicated region
        $region81: #{vtp_wrapper_forward.5} parent=47 // pred_check
          %p1059 = pneg %p540
        $region82: #{vtp_wrapper_forward.5} parent=47 // pred_check_branch
          %1061 = sbr.rel (%p1059) target = $region84
        $region83: #{vtp_wrapper_forward.5} parent=47 // pred_region
          %v1062 = vld [vmem:[#allocation2] sm:$0xff]
          %v1063 = vld [vmem:[#allocation2 + $0x8] sm:$0xff]
          %v1064 = vld [vmem:[#allocation2 + $0x10] sm:$0xff]
          %v1065 = vld [vmem:[#allocation2 + $0x18] sm:$0xff]
          %v1066 = vld [vmem:[#allocation2 + $0x20] sm:$0xff]
          %v1067 = vld [vmem:[#allocation2 + $0x28] sm:$0xff]
          %v1068 = vld [vmem:[#allocation2 + $0x30] sm:$0xff]
          %v1069 = vld [vmem:[#allocation2 + $0x38] sm:$0xff]
          %v1070 = vld [vmem:[#allocation13] sm:$0x1]
          %v1072 = vlaneseq
          %v1073 = vshrl.u32 %v1072, 7
          %v1074 = vsub.s32 0, %v1073
          %v1075 = vrot.slane %v1070, %v1074
          %v1077 = vadd.f32 %v1062, %v1075
          %v1078 = vadd.f32 %v1063, %v1075
          %v1079 = vadd.f32 %v1064, %v1075
          %v1080 = vadd.f32 %v1065, %v1075
          %v1081 = vadd.f32 %v1066, %v1075
          %v1082 = vadd.f32 %v1067, %v1075
          %v1083 = vadd.f32 %v1068, %v1075
          %v1084 = vadd.f32 %v1069, %v1075
          %v1085 = vpack.c.bf16 %v1078, %v1077
          %v1086 = vpack.c.bf16 %v1080, %v1079
          %v1087 = vpack.c.bf16 %v1082, %v1081
          %v1088 = vpack.c.bf16 %v1084, %v1083
          %v1093 = vunpack.c.l.b16 %v1085
          %v1094 = vunpack.c.h.b16 %v1085
          %v1095 = vunpack.c.l.b16 %v1086
          %v1096 = vunpack.c.h.b16 %v1086
          %v1097 = vunpack.c.l.b16 %v1087
          %v1098 = vunpack.c.h.b16 %v1087
          %v1099 = vunpack.c.l.b16 %v1088
          %v1100 = vunpack.c.h.b16 %v1088
          %v1101 = vpack.c.b16 %v1093, %v1093
          %v1102 = vpack.c.b16 %v1094, %v1094
          %v1103 = vpack.c.b16 %v1095, %v1095
          %v1104 = vpack.c.b16 %v1096, %v1096
          %v1105 = vpack.c.b16 %v1097, %v1097
          %v1106 = vpack.c.b16 %v1098, %v1098
          %v1107 = vpack.c.b16 %v1099, %v1099
          %v1108 = vpack.c.b16 %v1100, %v1100
          %1117 = vst [vmem:[%s517] sm:$0xf] %v1101
          %1118 = vst [vmem:[%s517 + $0x4] sm:$0xf] %v1102
          %1119 = vst [vmem:[%s517 + $0x8] sm:$0xf] %v1103
          %1120 = vst [vmem:[%s517 + $0xc] sm:$0xf] %v1104
          %1121 = vst [vmem:[%s517 + $0x10] sm:$0xf] %v1105
          %1122 = vst [vmem:[%s517 + $0x14] sm:$0xf] %v1106
          %1123 = vst [vmem:[%s517 + $0x18] sm:$0xf] %v1107
          %1124 = vst [vmem:[%s517 + $0x1c] sm:$0xf] %v1108
          %v1125 = vld [vmem:[#allocation3] sm:$0xff]
          %v1126 = vld [vmem:[#allocation3 + $0x8] sm:$0xff]
          %v1127 = vld [vmem:[#allocation3 + $0x10] sm:$0xff]
          %v1128 = vld [vmem:[#allocation3 + $0x18] sm:$0xff]
          %v1129 = vld [vmem:[#allocation3 + $0x20] sm:$0xff]
          %v1130 = vld [vmem:[#allocation3 + $0x28] sm:$0xff]
          %v1131 = vld [vmem:[#allocation3 + $0x30] sm:$0xff]
          %v1132 = vld [vmem:[#allocation3 + $0x38] sm:$0xff]
          %v1133 = vld [vmem:[#allocation14] sm:$0x1]
          %v1135 = vlaneseq
          %v1136 = vshrl.u32 %v1135, 7
          %v1137 = vsub.s32 0, %v1136
          %v1138 = vrot.slane %v1133, %v1137
          %v1140 = vadd.f32 %v1125, %v1138
          %v1141 = vadd.f32 %v1126, %v1138
          %v1142 = vadd.f32 %v1127, %v1138
          %v1143 = vadd.f32 %v1128, %v1138
          %v1144 = vadd.f32 %v1129, %v1138
          %v1145 = vadd.f32 %v1130, %v1138
          %v1146 = vadd.f32 %v1131, %v1138
          %v1147 = vadd.f32 %v1132, %v1138
          %v1148 = vpack.c.bf16 %v1141, %v1140
          %v1149 = vpack.c.bf16 %v1143, %v1142
          %v1150 = vpack.c.bf16 %v1145, %v1144
          %v1151 = vpack.c.bf16 %v1147, %v1146
          %v1156 = vunpack.c.l.b16 %v1148
          %v1157 = vunpack.c.h.b16 %v1148
          %v1158 = vunpack.c.l.b16 %v1149
          %v1159 = vunpack.c.h.b16 %v1149
          %v1160 = vunpack.c.l.b16 %v1150
          %v1161 = vunpack.c.h.b16 %v1150
          %v1162 = vunpack.c.l.b16 %v1151
          %v1163 = vunpack.c.h.b16 %v1151
          %v1164 = vpack.c.b16 %v1156, %v1156
          %v1165 = vpack.c.b16 %v1157, %v1157
          %v1166 = vpack.c.b16 %v1158, %v1158
          %v1167 = vpack.c.b16 %v1159, %v1159
          %v1168 = vpack.c.b16 %v1160, %v1160
          %v1169 = vpack.c.b16 %v1161, %v1161
          %v1170 = vpack.c.b16 %v1162, %v1162
          %v1171 = vpack.c.b16 %v1163, %v1163
          %1180 = vst [vmem:[%s524] sm:$0xf] %v1164
          %1181 = vst [vmem:[%s524 + $0x4] sm:$0xf] %v1165
          %1182 = vst [vmem:[%s524 + $0x8] sm:$0xf] %v1166
          %1183 = vst [vmem:[%s524 + $0xc] sm:$0xf] %v1167
          %1184 = vst [vmem:[%s524 + $0x10] sm:$0xf] %v1168
          %1185 = vst [vmem:[%s524 + $0x14] sm:$0xf] %v1169
          %1186 = vst [vmem:[%s524 + $0x18] sm:$0xf] %v1170
          %1187 = vst [vmem:[%s524 + $0x1c] sm:$0xf] %v1171
          %v1188 = vld [vmem:[#allocation4] sm:$0xff]
          %v1189 = vld [vmem:[#allocation4 + $0x8] sm:$0xff]
          %v1190 = vld [vmem:[#allocation4 + $0x10] sm:$0xff]
          %v1191 = vld [vmem:[#allocation4 + $0x18] sm:$0xff]
          %v1192 = vld [vmem:[#allocation4 + $0x20] sm:$0xff]
          %v1193 = vld [vmem:[#allocation4 + $0x28] sm:$0xff]
          %v1194 = vld [vmem:[#allocation4 + $0x30] sm:$0xff]
          %v1195 = vld [vmem:[#allocation4 + $0x38] sm:$0xff]
          %v1196 = vld [vmem:[#allocation16] sm:$0x1]
          %v1198 = vlaneseq
          %v1199 = vshrl.u32 %v1198, 7
          %v1200 = vsub.s32 0, %v1199
          %v1201 = vrot.slane %v1196, %v1200
          %v1203 = vadd.f32 %v1188, %v1201
          %v1204 = vadd.f32 %v1189, %v1201
          %v1205 = vadd.f32 %v1190, %v1201
          %v1206 = vadd.f32 %v1191, %v1201
          %v1207 = vadd.f32 %v1192, %v1201
          %v1208 = vadd.f32 %v1193, %v1201
          %v1209 = vadd.f32 %v1194, %v1201
          %v1210 = vadd.f32 %v1195, %v1201
          %v1211 = vpack.c.bf16 %v1204, %v1203
          %v1212 = vpack.c.bf16 %v1206, %v1205
          %v1213 = vpack.c.bf16 %v1208, %v1207
          %v1214 = vpack.c.bf16 %v1210, %v1209
          %v1219 = vunpack.c.l.b16 %v1211
          %v1220 = vunpack.c.h.b16 %v1211
          %v1221 = vunpack.c.l.b16 %v1212
          %v1222 = vunpack.c.h.b16 %v1212
          %v1223 = vunpack.c.l.b16 %v1213
          %v1224 = vunpack.c.h.b16 %v1213
          %v1225 = vunpack.c.l.b16 %v1214
          %v1226 = vunpack.c.h.b16 %v1214
          %v1227 = vpack.c.b16 %v1219, %v1219
          %v1228 = vpack.c.b16 %v1220, %v1220
          %v1229 = vpack.c.b16 %v1221, %v1221
          %v1230 = vpack.c.b16 %v1222, %v1222
          %v1231 = vpack.c.b16 %v1223, %v1223
          %v1232 = vpack.c.b16 %v1224, %v1224
          %v1233 = vpack.c.b16 %v1225, %v1225
          %v1234 = vpack.c.b16 %v1226, %v1226
          %1243 = vst [vmem:[%s531] sm:$0xf] %v1227
          %1244 = vst [vmem:[%s531 + $0x4] sm:$0xf] %v1228
          %1245 = vst [vmem:[%s531 + $0x8] sm:$0xf] %v1229
          %1246 = vst [vmem:[%s531 + $0xc] sm:$0xf] %v1230
          %1247 = vst [vmem:[%s531 + $0x10] sm:$0xf] %v1231
          %1248 = vst [vmem:[%s531 + $0x14] sm:$0xf] %v1232
          %1249 = vst [vmem:[%s531 + $0x18] sm:$0xf] %v1233
          %1250 = vst [vmem:[%s531 + $0x1c] sm:$0xf] %v1234
        $region84: #{vtp_wrapper_forward.5} parent=47 // pred_fallthru
          _
        %s1251 = sand.u32 %s252, 1
        %s1252 = scalar_lea.sflag [#allocation7], %s1251
        %s1253 = sand.u32 %s252, 1
        %s1254 = smul.addr %s1253, 32
        %s1255 = scalar_lea.vmem [#allocation17], %s1254
        %s1256 = sand.u32 %s33, 1
        %s1257 = scalar_lea.sflag [#allocation19], %s1256
        %s1258 = sand.u32 %s280, 1
        %s1259 = smul.addr %s1258, 32
        %s1260 = scalar_lea.vmem [#allocation18], %s1259
        %s1261 = sand.u32 %s33, 1
        %s1262 = scalar_lea.sflag [#allocation19], %s1261
        %s1263 = sand.u32 %s308, 1
        %s1264 = smul.addr %s1263, 32
        %s1265 = scalar_lea.vmem [#allocation20], %s1264
        // Predicated region
        $region85: #{vtp_wrapper_forward.5} parent=47 // pred_check
          %p1266 = pneg %p262
        $region86: #{vtp_wrapper_forward.5} parent=47 // pred_check_branch
          %1268 = sbr.rel (%p1266) target = $region88
        $region87: #{vtp_wrapper_forward.5} parent=47 // pred_region
          %s1269 = smul.u32 8, %s38
          %s1271 = ssub.s32 512, 512
          %1272 = vsyncadd %s1252, %s1271
          %s1273 = sadd.s32 %s39, %s1269
          %s1274 = smul.addr %s1273, 64
          %s1275 = scalar_lea.hbm %s7, %s1274
          %s1276 = sshll.u32 %s1255, 4
          %s1277 = int_to_ptr.vmem [resolvable:$true] %s1276
          %1282 = dma.vmem_to_hbm [thread:$0]  %s1277, 512, %s1275, %s1252, 64, 64, 4
        $region88: #{vtp_wrapper_forward.5} parent=47 // pred_fallthru
          _
        // Predicated region
        $region89: #{vtp_wrapper_forward.5} parent=47 // pred_check
          %p1283 = pneg %p290
        $region90: #{vtp_wrapper_forward.5} parent=47 // pred_check_branch
          %1285 = sbr.rel (%p1283) target = $region92
        $region91: #{vtp_wrapper_forward.5} parent=47 // pred_region
          %s1286 = smul.u32 8, %s38
          %s1288 = ssub.s32 512, 512
          %1289 = vsyncadd %s1257, %s1288
          %s1290 = sadd.s32 %s39, %s1286
          %s1291 = smul.addr %s1290, 64
          %s1292 = scalar_lea.hbm %s8, %s1291
          %s1293 = sshll.u32 %s1260, 4
          %s1294 = int_to_ptr.vmem [resolvable:$true] %s1293
          %1299 = dma.vmem_to_hbm [thread:$0]  %s1294, 512, %s1292, %s1257, 64, 64, 4
        $region92: #{vtp_wrapper_forward.5} parent=47 // pred_fallthru
          _
        // Predicated region
        $region93: #{vtp_wrapper_forward.5} parent=47 // pred_check
          %p1300 = pneg %p318
        $region94: #{vtp_wrapper_forward.5} parent=47 // pred_check_branch
          %1302 = sbr.rel (%p1300) target = $region96
        $region95: #{vtp_wrapper_forward.5} parent=47 // pred_region
          %s1303 = smul.u32 8, %s38
          %s1305 = ssub.s32 512, 512
          %1306 = vsyncadd %s1262, %s1305
          %s1307 = sadd.s32 %s39, %s1303
          %s1308 = smul.addr %s1307, 64
          %s1309 = scalar_lea.hbm %s9, %s1308
          %s1310 = sshll.u32 %s1265, 4
          %s1311 = int_to_ptr.vmem [resolvable:$true] %s1310
          %1316 = dma.vmem_to_hbm [thread:$0]  %s1311, 512, %s1309, %s1262, 64, 64, 4
        $region96: #{vtp_wrapper_forward.5} parent=47 // pred_fallthru
          _
      $region48: #{vtp_wrapper_forward.5} parent=5 // pred_fallthru
        _
      %p1317 = scmp.le.s32.totalorder 2, %s28
      // Predicated region
      $region97: #{vtp_wrapper_forward.5} parent=5 // pred_check
        %p1318 = pneg %p1317
      $region98: #{vtp_wrapper_forward.5} parent=5 // pred_check_branch
        %1320 = sbr.rel (%p1318) target = $region100
      $region99: #{vtp_wrapper_forward.5} parent=5 // pred_region
        %s1321 = ssub.s32 %s28, 2
        // Predicated region
        $region101: #{vtp_wrapper_forward.5} parent=99 // pred_check
          %p1322 = pneg %p268
        $region102: #{vtp_wrapper_forward.5} parent=99 // pred_check_branch
          %1324 = sbr.rel (%p1322) target = $region104
        $region103: #{vtp_wrapper_forward.5} parent=99 // pred_region
          %s1325 = sand.u32 %s253, 1
          %s1326 = scalar_lea.sflag [#allocation7], %s1325
          %s1327 = sand.u32 %s253, 1
          %s1328 = smul.addr %s1327, 32
          %s1329 = scalar_lea.vmem [#allocation17], %s1328
          %1330 = dma.done %s1326, 512
        $region104: #{vtp_wrapper_forward.5} parent=99 // pred_fallthru
          _
        // Predicated region
        $region105: #{vtp_wrapper_forward.5} parent=99 // pred_check
          %p1331 = pneg %p296
        $region106: #{vtp_wrapper_forward.5} parent=99 // pred_check_branch
          %1333 = sbr.rel (%p1331) target = $region108
        $region107: #{vtp_wrapper_forward.5} parent=99 // pred_region
          %s1334 = sand.u32 %s34, 1
          %s1335 = scalar_lea.sflag [#allocation19], %s1334
          %s1336 = sand.u32 %s281, 1
          %s1337 = smul.addr %s1336, 32
          %s1338 = scalar_lea.vmem [#allocation18], %s1337
          %1339 = dma.done %s1335, 512
        $region108: #{vtp_wrapper_forward.5} parent=99 // pred_fallthru
          _
        // Predicated region
        $region109: #{vtp_wrapper_forward.5} parent=99 // pred_check
          %p1340 = pneg %p324
        $region110: #{vtp_wrapper_forward.5} parent=99 // pred_check_branch
          %1342 = sbr.rel (%p1340) target = $region112
        $region111: #{vtp_wrapper_forward.5} parent=99 // pred_region
          %s1343 = sand.u32 %s34, 1
          %s1344 = scalar_lea.sflag [#allocation19], %s1343
          %s1345 = sand.u32 %s309, 1
          %s1346 = smul.addr %s1345, 32
          %s1347 = scalar_lea.vmem [#allocation20], %s1346
          %1348 = dma.done %s1344, 512
        $region112: #{vtp_wrapper_forward.5} parent=99 // pred_fallthru
          _
      $region100: #{vtp_wrapper_forward.5} parent=5 // pred_fallthru
        _
    $region6: #{vtp_wrapper_forward.5} parent=1 // loop_footer
      %s32 = sadd.s32 1, %s28
    $region7: #{vtp_wrapper_forward.5} parent=1 // loop_footer_branch
      %27 = sbr.rel target = $region3
    $region8: #{vtp_wrapper_forward.5} parent=1 // loop_exit
      _
    %1349 = vsyncpa [#allocation6], 1
    %s1350 = scalar_lea.sflag [#allocation6], 1
    %1351 = vsyncpa %s1350, 1
    %1352 = vsyncpa [#allocation9], 1
    %1353 = vsyncpa [#allocation12], 1
    %1354 = vsyncpa [#allocation15], 1
    %1355 = vsyncpa [#allocation7], 1
    %s1356 = scalar_lea.sflag [#allocation7], 1
    %1357 = vsyncpa %s1356, 1
    %1358 = vsyncpa [#allocation19], 1
    %s1359 = scalar_lea.sflag [#allocation19], 1
    %1360 = vsyncpa %s1359, 1

</llo_original>
